<compile_context>
chip_gen: v7x
topology: tpu7x:2x2x1
jax: 0.10.0
libtpu: 0.0.40
codegen_flags: <defaults>
</compile_context>

<pallas_src>
import jax
import jax.numpy as jnp
from jax import lax
from jax.experimental import pallas as pl
from jax.experimental.pallas import tpu as pltpu

LAYERS = [16, 16]   # cfg.LAYERS
LAMBDA = 1.0        # cfg.TRAIN.LAMBDA


# ----------------------------- fused Pallas kernel ---------------------------

def _full_spec(shape):
    return pl.BlockSpec(shape, lambda i: (0,) * len(shape))


def _make_fused_kernel(num_feat, layers, e_pos, e_neg, lam):
    """Builds the fused SGCN forward kernel for static shapes."""
    num_deep = len(layers) - 1
    c_last = layers[-1]
    ep, en = e_pos, e_neg

    def kernel(*refs):
        (a_pos_ref, a_neg_ref, a_pos_sl_ref, a_neg_sl_ref, x_ref,
         wpb_ref, bpb_ref, wnb_ref, bnb_ref) = refs[:9]
        k = 9
        deep = []
        for _ in range(num_deep):
            deep.append(tuple(r[...] for r in refs[k:k + 4]))
            k += 4
        regw = refs[k][...]
        sel = refs[k + 1][...]
        onehot = refs[k + 2][...]
        zp_ref, zn_ref, loss_ref = refs[k + 3], refs[k + 4], refs[k + 5]

        def dot(a, b):
            return jnp.dot(a, b, preferred_element_type=jnp.float32)

        def norm_tanh(y):
            # tanh(F.normalize(y, p=2, dim=-1)); rsqrt -> EUP slot
            ss = jnp.sum(y * y, axis=-1, keepdims=True)
            return jnp.tanh(y * lax.rsqrt(jnp.maximum(ss, 1e-24)))

        x = x_ref[...]
        a_pos = a_pos_ref[...]
        a_neg = a_neg_ref[...]
        wpb, bpb = wpb_ref[...], bpb_ref[...]
        wnb, bnb = wnb_ref[...], bnb_ref[...]

        # --- base aggregators:  cat(A@X, X) @ W  ==  (A@X)@W[:F] + X@W[F:] ---
        f = num_feat
        h_pos = norm_tanh(dot(dot(a_pos, x), wpb[:f]) + dot(x, wpb[f:]) + bpb)
        h_neg = norm_tanh(dot(dot(a_neg, x), wnb[:f]) + dot(x, wnb[f:]) + bnb)

        # --- deep signed-SAGE layers (weights split in thirds, no concat) ---
        if num_deep:
            a_pos_sl = a_pos_sl_ref[...]
            a_neg_sl = a_neg_sl_ref[...]
        for d in range(num_deep):
            wp, bp, wn, bn = deep[d]
            c = layers[d]
            hp_new = norm_tanh(dot(dot(a_pos_sl, h_pos), wp[:c])
                               + dot(dot(a_neg_sl, h_neg), wp[c:2 * c])
                               + dot(h_pos, wp[2 * c:]) + bp)
            hn_new = norm_tanh(dot(dot(a_pos_sl, h_neg), wn[:c])
                               + dot(dot(a_neg_sl, h_pos), wn[c:2 * c])
                               + dot(h_neg, wn[2 * c:]) + bn)
            h_pos, h_neg = hp_new, hn_new

        # z = cat(h_pos, h_neg, dim=1) — emitted as the two halves (lane concat
        # done once in glue); all loss math below works on the halves directly.
        zp_ref[...] = h_pos
        zn_ref[...] = h_neg

        # --- one MXU gather of all needed z rows: sel rows are one-hot(node) ---
        # sel row layout: [pos_i | pos_j | pos_k | neg_i | neg_j | neg_k]
        gp = dot(sel, h_pos)            # (3ep+3en, C)  pos-half of gathered z
        gn = dot(sel, h_neg)            # (3ep+3en, C)  neg-half of gathered z

        def rows(t, start, size):
            return t[start:start + size]

        def sqdist(ap, an, bp, bn):     # ||[ap|an]-[bp|bn]||^2 computed half-wise
            return (jnp.sum((ap - bp) ** 2, axis=-1, keepdims=True)
                    + jnp.sum((an - bn) ** 2, axis=-1, keepdims=True))

        pzi_p, pzi_n = rows(gp, 0, ep),                  rows(gn, 0, ep)
        pzj_p, pzj_n = rows(gp, ep, ep),                 rows(gn, ep, ep)
        pzk_p, pzk_n = rows(gp, 2 * ep, ep),             rows(gn, 2 * ep, ep)
        nzi_p, nzi_n = rows(gp, 3 * ep, en),             rows(gn, 3 * ep, en)
        nzj_p, nzj_n = rows(gp, 3 * ep + en, en),        rows(gn, 3 * ep + en, en)
        nzk_p, nzk_n = rows(gp, 3 * ep + 2 * en, en),    rows(gn, 3 * ep + 2 * en, en)

        # --- hinge embedding losses ---
        d_pij = sqdist(pzi_p, pzi_n, pzj_p, pzj_n)
        d_pik = sqdist(pzi_p, pzi_n, pzk_p, pzk_n)
        loss_pos = jnp.mean(jnp.maximum(d_pij - d_pik, 0.0))
        d_nij = sqdist(nzi_p, nzi_n, nzj_p, nzj_n)
        d_nik = sqdist(nzi_p, nzi_n, nzk_p, nzk_n)
        loss_neg = jnp.mean(jnp.maximum(d_nik - d_nij, 0.0))

        # --- regression loss: cat(z_l, z_r) @ W_reg  ==  z_l@W_a + z_r@W_b ---
        c = c_last
        pa = dot(gp, regw[0:c]) + dot(gn, regw[c:2 * c])          # left-partner term
        pb = dot(gp, regw[2 * c:3 * c]) + dot(gn, regw[3 * c:])   # right-partner term

        logits = jnp.concatenate([
            rows(pa, 0, ep)           + rows(pb, ep, ep),                 # pos        (i,j)
            rows(pa, 3 * ep, en)      + rows(pb, 3 * ep + en, en),        # neg        (i,j)
            rows(pa, 3 * ep, en)      + rows(pb, 3 * ep + 2 * en, en),    # surr_neg_i (i,k)
            rows(pa, 3 * ep + en, en) + rows(pb, 3 * ep + 2 * en, en),    # surr_neg_j (j,k)
            rows(pa, 0, ep)           + rows(pb, 2 * ep, ep),             # surr_pos_i (i,k)
            rows(pa, ep, ep)          + rows(pb, 2 * ep, ep),             # surr_pos_j (j,k)
        ], axis=0)                                                        # (3ep+3en, 3)

        m = jnp.max(logits, axis=-1, keepdims=True)
        lse = jnp.log(jnp.sum(jnp.exp(logits - m), axis=-1, keepdims=True)) + m
        logsoft = logits - lse
        nll = -jnp.sum(logsoft * onehot, axis=-1, keepdims=True)
        reg_loss = jnp.mean(nll)                                          # NLL mean

        total = reg_loss + lam * (loss_pos + loss_neg)
        loss_ref[...] = total * jnp.ones((1, 1), jnp.float32)

    return kernel


# ------------------------------- glue (JAX) ----------------------------------

def build_mean_adjs(edge_index, num_nodes):
    """One scatter per sign; derive both the no-self-loop and self-loop
    mean-normalized adjacencies (matches scatter_mean of SignedSAGEConvolution)."""
    row, col = edge_index[0], edge_index[1]
    keep = (row != col).astype(jnp.float32)          # remove_self_loops
    A = jnp.zeros((num_nodes, num_nodes), jnp.float32).at[row, col].add(keep)
    deg = jnp.sum(A, axis=1, keepdims=True)
    A_mean = A / jnp.maximum(deg, 1.0)
    A_sl_mean = (A + jnp.eye(num_nodes, dtype=jnp.float32)) / (deg + 1.0)
    return A_mean, A_sl_mean


def init_sage_params(key, in_ch, out_ch):
    # original SGCN "uniform(size, tensor)": bound = 1/sqrt(in_ch)
    k1, k2 = jax.random.split(key)
    bound = 1.0 / (in_ch ** 0.5)
    w = jax.random.uniform(k1, (in_ch, out_ch), jnp.float32, -bound, bound)
    b = jax.random.uniform(k2, (1, out_ch), jnp.float32, -bound, bound)
    return w, b


def init_params(key, num_features):
    keys = jax.random.split(key, 2 * len(LAYERS) + 1)
    params = {
        "pos_base": init_sage_params(keys[0], 2 * num_features, LAYERS[0]),
        "neg_base": init_sage_params(keys[1], 2 * num_features, LAYERS[0]),
        "pos_deep": [],
        "neg_deep": [],
    }
    for i in range(1, len(LAYERS)):
        params["pos_deep"].append(init_sage_params(keys[2 * i], 3 * LAYERS[i - 1], LAYERS[i]))
        params["neg_deep"].append(init_sage_params(keys[2 * i + 1], 3 * LAYERS[i - 1], LAYERS[i]))
    # regression_weights: xavier_normal_, shape (4*neurons[-1], 3)
    fan_in, fan_out = 4 * LAYERS[-1], 3
    std = (2.0 / (fan_in + fan_out)) ** 0.5
    params["reg_w"] = std * jax.random.normal(keys[-1], (fan_in, fan_out), jnp.float32)
    return params


def sgcn_forward(params, X, pos_edges, neg_edges, target, pos_surr, neg_surr):
    N, F_in = X.shape
    e_pos = pos_edges.shape[1]
    e_neg = neg_edges.shape[1]

    A_pos, A_pos_sl = build_mean_adjs(pos_edges, N)
    A_neg, A_neg_sl = build_mean_adjs(neg_edges, N)

    # one-hot row-selection matrix: the 6 z-row gathers become a single in-kernel matmul
    sel = jnp.concatenate([
        jax.nn.one_hot(pos_edges[0], N, dtype=jnp.float32),
        jax.nn.one_hot(pos_edges[1], N, dtype=jnp.float32),
        jax.nn.one_hot(pos_surr, N, dtype=jnp.float32),
        jax.nn.one_hot(neg_edges[0], N, dtype=jnp.float32),
        jax.nn.one_hot(neg_edges[1], N, dtype=jnp.float32),
        jax.nn.one_hot(neg_surr, N, dtype=jnp.float32),
    ], axis=0)                                     # (3*e_pos + 3*e_neg, N)
    onehot = jax.nn.one_hot(target, 3, dtype=jnp.float32)

    inputs = [A_pos, A_neg, A_pos_sl, A_neg_sl, X,
              params["pos_base"][0], params["pos_base"][1],
              params["neg_base"][0], params["neg_base"][1]]
    for (wp, bp), (wn, bn) in zip(params["pos_deep"], params["neg_deep"]):
        inputs += [wp, bp, wn, bn]
    inputs += [params["reg_w"], sel, onehot]

    kernel = _make_fused_kernel(F_in, tuple(LAYERS), e_pos, e_neg, LAMBDA)
    c_last = LAYERS[-1]

    zp, zn, loss = pl.pallas_call(
        kernel,
        out_shape=(jax.ShapeDtypeStruct((N, c_last), jnp.float32),
                   jax.ShapeDtypeStruct((N, c_last), jnp.float32),
                   jax.ShapeDtypeStruct((1, 1), jnp.float32)),
        grid=(1,),
        in_specs=[_full_spec(a.shape) for a in inputs],
        out_specs=(_full_spec((N, c_last)), _full_spec((N, c_last)), _full_spec((1, 1))),
        compiler_params=pltpu.CompilerParams(dimension_semantics=("arbitrary",)),
    )(*inputs)

    z = jnp.concatenate([zp, zn], axis=1)          # final z materialization (tiny)
    return loss[0, 0], z


# ---------------------------------- main --------------------------------------

if __name__ == "__main__":
    N, F = 32, 8          # shape = (num_nodes, num_features)
    E_POS, E_NEG = 40, 24

    key = jax.random.PRNGKey(0)
    k_x, k_pe, k_ne, k_ps, k_ns, k_params = jax.random.split(key, 6)

    X = jax.random.normal(k_x, (N, F), jnp.float32)
    positive_edges = jax.random.randint(k_pe, (2, E_POS), 0, N, jnp.int32)
    negative_edges = jax.random.randint(k_ne, (2, E_NEG), 0, N, jnp.int32)
    # surrogate node indices (deterministic replacement for python random.choice)
    pos_surrogates = jax.random.randint(k_ps, (E_POS,), 0, N, jnp.int32)
    neg_surrogates = jax.random.randint(k_ns, (E_NEG,), 0, N, jnp.int32)
    # target layout matches original SGCN: pos->0, neg->1, surrogate pairs->2
    target = jnp.concatenate([
        jnp.zeros((E_POS,), jnp.int32),
        jnp.ones((E_NEG,), jnp.int32),
        jnp.full((2 * (E_POS + E_NEG),), 2, jnp.int32),
    ])

    params = init_params(k_params, F)

    fwd = jax.jit(sgcn_forward)
    loss, z = fwd(params, X, positive_edges, negative_edges, target,
                  pos_surrogates, neg_surrogates)
    jax.block_until_ready((loss, z))
    assert z.shape == (N, 2 * LAYERS[-1])
    assert loss.shape == ()
    print("KERNEL_OK")
</pallas_src>

<mosaic_0001>
module attributes {stable_mosaic.version = 11 : i64} {
  func.func @kernel(%arg0: i32, %arg1: memref<32x32xf32, #tpu.memory_space<vmem>>, %arg2: memref<32x32xf32, #tpu.memory_space<vmem>>, %arg3: memref<32x32xf32, #tpu.memory_space<vmem>>, %arg4: memref<32x32xf32, #tpu.memory_space<vmem>>, %arg5: memref<32x8xf32, #tpu.memory_space<vmem>>, %arg6: memref<16x16xf32, #tpu.memory_space<vmem>>, %arg7: memref<1x16xf32, #tpu.memory_space<vmem>>, %arg8: memref<16x16xf32, #tpu.memory_space<vmem>>, %arg9: memref<1x16xf32, #tpu.memory_space<vmem>>, %arg10: memref<48x16xf32, #tpu.memory_space<vmem>>, %arg11: memref<1x16xf32, #tpu.memory_space<vmem>>, %arg12: memref<48x16xf32, #tpu.memory_space<vmem>>, %arg13: memref<1x16xf32, #tpu.memory_space<vmem>>, %arg14: memref<64x3xf32, #tpu.memory_space<vmem>>, %arg15: memref<192x32xf32, #tpu.memory_space<vmem>>, %arg16: memref<192x3xf32, #tpu.memory_space<vmem>>, %arg17: memref<32x16xf32, #tpu.memory_space<vmem>>, %arg18: memref<32x16xf32, #tpu.memory_space<vmem>>, %arg19: memref<1x1xf32, #tpu.memory_space<vmem>>) attributes {dimension_semantics = [#tpu.dimension_semantics<arbitrary>], iteration_bounds = array<i64: 1>, scalar_prefetch = 0 : i64, scratch_operands = 0 : i64, tpu.core_type = #tpu.core_type<tc>, window_params = [{pipeline_mode = #tpu.pipeline_mode<synchronous>, transform_indices = @transform_0, window_bounds = array<i64: 32, 32>}, {pipeline_mode = #tpu.pipeline_mode<synchronous>, transform_indices = @transform_1, window_bounds = array<i64: 32, 32>}, {pipeline_mode = #tpu.pipeline_mode<synchronous>, transform_indices = @transform_2, window_bounds = array<i64: 32, 32>}, {pipeline_mode = #tpu.pipeline_mode<synchronous>, transform_indices = @transform_3, window_bounds = array<i64: 32, 32>}, {pipeline_mode = #tpu.pipeline_mode<synchronous>, transform_indices = @transform_4, window_bounds = array<i64: 32, 8>}, {pipeline_mode = #tpu.pipeline_mode<synchronous>, transform_indices = @transform_5, window_bounds = array<i64: 16, 16>}, {pipeline_mode = #tpu.pipeline_mode<synchronous>, transform_indices = @transform_6, window_bounds = array<i64: 1, 16>}, {pipeline_mode = #tpu.pipeline_mode<synchronous>, transform_indices = @transform_7, window_bounds = array<i64: 16, 16>}, {pipeline_mode = #tpu.pipeline_mode<synchronous>, transform_indices = @transform_8, window_bounds = array<i64: 1, 16>}, {pipeline_mode = #tpu.pipeline_mode<synchronous>, transform_indices = @transform_9, window_bounds = array<i64: 48, 16>}, {pipeline_mode = #tpu.pipeline_mode<synchronous>, transform_indices = @transform_10, window_bounds = array<i64: 1, 16>}, {pipeline_mode = #tpu.pipeline_mode<synchronous>, transform_indices = @transform_11, window_bounds = array<i64: 48, 16>}, {pipeline_mode = #tpu.pipeline_mode<synchronous>, transform_indices = @transform_12, window_bounds = array<i64: 1, 16>}, {pipeline_mode = #tpu.pipeline_mode<synchronous>, transform_indices = @transform_13, window_bounds = array<i64: 64, 3>}, {pipeline_mode = #tpu.pipeline_mode<synchronous>, transform_indices = @transform_14, window_bounds = array<i64: 192, 32>}, {pipeline_mode = #tpu.pipeline_mode<synchronous>, transform_indices = @transform_15, window_bounds = array<i64: 192, 3>}, {pipeline_mode = #tpu.pipeline_mode<synchronous>, transform_indices = @transform_16, window_bounds = array<i64: 32, 16>}, {pipeline_mode = #tpu.pipeline_mode<synchronous>, transform_indices = @transform_17, window_bounds = array<i64: 32, 16>}, {pipeline_mode = #tpu.pipeline_mode<synchronous>, transform_indices = @transform_18, window_bounds = array<i64: 1, 1>}]} {
    %c0 = arith.constant 0 : index
    %c0_0 = arith.constant 0 : index
    %0 = vector.load %arg10[%c0, %c0_0] : memref<48x16xf32, #tpu.memory_space<vmem>>, vector<48x16xf32>
    %c0_1 = arith.constant 0 : index
    %c0_2 = arith.constant 0 : index
    %1 = vector.load %arg11[%c0_1, %c0_2] : memref<1x16xf32, #tpu.memory_space<vmem>>, vector<1x16xf32>
    %c0_3 = arith.constant 0 : index
    %c0_4 = arith.constant 0 : index
    %2 = vector.load %arg12[%c0_3, %c0_4] : memref<48x16xf32, #tpu.memory_space<vmem>>, vector<48x16xf32>
    %c0_5 = arith.constant 0 : index
    %c0_6 = arith.constant 0 : index
    %3 = vector.load %arg13[%c0_5, %c0_6] : memref<1x16xf32, #tpu.memory_space<vmem>>, vector<1x16xf32>
    %c0_7 = arith.constant 0 : index
    %c0_8 = arith.constant 0 : index
    %4 = vector.load %arg14[%c0_7, %c0_8] : memref<64x3xf32, #tpu.memory_space<vmem>>, vector<64x3xf32>
    %c0_9 = arith.constant 0 : index
    %c0_10 = arith.constant 0 : index
    %5 = vector.load %arg15[%c0_9, %c0_10] : memref<192x32xf32, #tpu.memory_space<vmem>>, vector<192x32xf32>
    %c0_11 = arith.constant 0 : index
    %c0_12 = arith.constant 0 : index
    %6 = vector.load %arg16[%c0_11, %c0_12] : memref<192x3xf32, #tpu.memory_space<vmem>>, vector<192x3xf32>
    %c0_13 = arith.constant 0 : index
    %c0_14 = arith.constant 0 : index
    %7 = vector.load %arg5[%c0_13, %c0_14] : memref<32x8xf32, #tpu.memory_space<vmem>>, vector<32x8xf32>
    %c0_15 = arith.constant 0 : index
    %c0_16 = arith.constant 0 : index
    %8 = vector.load %arg1[%c0_15, %c0_16] : memref<32x32xf32, #tpu.memory_space<vmem>>, vector<32x32xf32>
    %c0_17 = arith.constant 0 : index
    %c0_18 = arith.constant 0 : index
    %9 = vector.load %arg2[%c0_17, %c0_18] : memref<32x32xf32, #tpu.memory_space<vmem>>, vector<32x32xf32>
    %c0_19 = arith.constant 0 : index
    %c0_20 = arith.constant 0 : index
    %10 = vector.load %arg6[%c0_19, %c0_20] : memref<16x16xf32, #tpu.memory_space<vmem>>, vector<16x16xf32>
    %c0_21 = arith.constant 0 : index
    %c0_22 = arith.constant 0 : index
    %11 = vector.load %arg7[%c0_21, %c0_22] : memref<1x16xf32, #tpu.memory_space<vmem>>, vector<1x16xf32>
    %c0_23 = arith.constant 0 : index
    %c0_24 = arith.constant 0 : index
    %12 = vector.load %arg8[%c0_23, %c0_24] : memref<16x16xf32, #tpu.memory_space<vmem>>, vector<16x16xf32>
    %c0_25 = arith.constant 0 : index
    %c0_26 = arith.constant 0 : index
    %13 = vector.load %arg9[%c0_25, %c0_26] : memref<1x16xf32, #tpu.memory_space<vmem>>, vector<1x16xf32>
    %cst = arith.constant dense<0.000000e+00> : vector<32x8xf32>
    %14 = tpu.matmul %8, %7, %cst {dimension_numbers = #tpu.dot_dimension_numbers<[1], [0], [0], [1], [0, 0, 1, 1], [], []>} : vector<32x32xf32>, vector<32x8xf32>, vector<32x8xf32> -> vector<32x8xf32>
    %15 = vector.extract_strided_slice %10 {offsets = [0, 0], sizes = [8, 16], strides = [1, 1]} : vector<16x16xf32> to vector<8x16xf32>
    %cst_27 = arith.constant dense<0.000000e+00> : vector<32x16xf32>
    %16 = tpu.matmul %14, %15, %cst_27 {dimension_numbers = #tpu.dot_dimension_numbers<[1], [0], [0], [1], [0, 0, 1, 1], [], []>} : vector<32x8xf32>, vector<8x16xf32>, vector<32x16xf32> -> vector<32x16xf32>
    %17 = vector.extract_strided_slice %10 {offsets = [8, 0], sizes = [8, 16], strides = [1, 1]} : vector<16x16xf32> to vector<8x16xf32>
    %cst_28 = arith.constant dense<0.000000e+00> : vector<32x16xf32>
    %18 = tpu.matmul %7, %17, %cst_28 {dimension_numbers = #tpu.dot_dimension_numbers<[1], [0], [0], [1], [0, 0, 1, 1], [], []>} : vector<32x8xf32>, vector<8x16xf32>, vector<32x16xf32> -> vector<32x16xf32>
    %19 = arith.addf %16, %18 : vector<32x16xf32>
    %20 = vector.broadcast %11 : vector<1x16xf32> to vector<32x16xf32>
    %21 = arith.addf %19, %20 : vector<32x16xf32>
    %22 = arith.mulf %21, %21 : vector<32x16xf32>
    %cst_29 = arith.constant dense<0.000000e+00> : vector<32xf32>
    %23 = vector.multi_reduction <add>, %22, %cst_29 [1] : vector<32x16xf32> to vector<32xf32>
    %24 = vector.shape_cast %23 : vector<32xf32> to vector<32x1xf32>
    %cst_30 = arith.constant 1.000000e-24 : f32
    %25 = vector.broadcast %cst_30 : f32 to vector<32x1xf32>
    %26 = arith.maximumf %24, %25 : vector<32x1xf32>
    %27 = math.rsqrt %26 : vector<32x1xf32>
    %28 = vector.broadcast %27 : vector<32x1xf32> to vector<32x16xf32>
    %29 = arith.mulf %21, %28 : vector<32x16xf32>
    %30 = math.tanh %29 : vector<32x16xf32>
    %cst_31 = arith.constant dense<0.000000e+00> : vector<32x8xf32>
    %31 = tpu.matmul %9, %7, %cst_31 {dimension_numbers = #tpu.dot_dimension_numbers<[1], [0], [0], [1], [0, 0, 1, 1], [], []>} : vector<32x32xf32>, vector<32x8xf32>, vector<32x8xf32> -> vector<32x8xf32>
    %32 = vector.extract_strided_slice %12 {offsets = [0, 0], sizes = [8, 16], strides = [1, 1]} : vector<16x16xf32> to vector<8x16xf32>
    %cst_32 = arith.constant dense<0.000000e+00> : vector<32x16xf32>
    %33 = tpu.matmul %31, %32, %cst_32 {dimension_numbers = #tpu.dot_dimension_numbers<[1], [0], [0], [1], [0, 0, 1, 1], [], []>} : vector<32x8xf32>, vector<8x16xf32>, vector<32x16xf32> -> vector<32x16xf32>
    %34 = vector.extract_strided_slice %12 {offsets = [8, 0], sizes = [8, 16], strides = [1, 1]} : vector<16x16xf32> to vector<8x16xf32>
    %cst_33 = arith.constant dense<0.000000e+00> : vector<32x16xf32>
    %35 = tpu.matmul %7, %34, %cst_33 {dimension_numbers = #tpu.dot_dimension_numbers<[1], [0], [0], [1], [0, 0, 1, 1], [], []>} : vector<32x8xf32>, vector<8x16xf32>, vector<32x16xf32> -> vector<32x16xf32>
    %36 = arith.addf %33, %35 : vector<32x16xf32>
    %37 = vector.broadcast %13 : vector<1x16xf32> to vector<32x16xf32>
    %38 = arith.addf %36, %37 : vector<32x16xf32>
    %39 = arith.mulf %38, %38 : vector<32x16xf32>
    %cst_34 = arith.constant dense<0.000000e+00> : vector<32xf32>
    %40 = vector.multi_reduction <add>, %39, %cst_34 [1] : vector<32x16xf32> to vector<32xf32>
    %41 = vector.shape_cast %40 : vector<32xf32> to vector<32x1xf32>
    %cst_35 = arith.constant 1.000000e-24 : f32
    %42 = vector.broadcast %cst_35 : f32 to vector<32x1xf32>
    %43 = arith.maximumf %41, %42 : vector<32x1xf32>
    %44 = math.rsqrt %43 : vector<32x1xf32>
    %45 = vector.broadcast %44 : vector<32x1xf32> to vector<32x16xf32>
    %46 = arith.mulf %38, %45 : vector<32x16xf32>
    %47 = math.tanh %46 : vector<32x16xf32>
    %c0_36 = arith.constant 0 : index
    %c0_37 = arith.constant 0 : index
    %48 = vector.load %arg3[%c0_36, %c0_37] : memref<32x32xf32, #tpu.memory_space<vmem>>, vector<32x32xf32>
    %c0_38 = arith.constant 0 : index
    %c0_39 = arith.constant 0 : index
    %49 = vector.load %arg4[%c0_38, %c0_39] : memref<32x32xf32, #tpu.memory_space<vmem>>, vector<32x32xf32>
    %cst_40 = arith.constant dense<0.000000e+00> : vector<32x16xf32>
    %50 = tpu.matmul %48, %30, %cst_40 {dimension_numbers = #tpu.dot_dimension_numbers<[1], [0], [0], [1], [0, 0, 1, 1], [], []>} : vector<32x32xf32>, vector<32x16xf32>, vector<32x16xf32> -> vector<32x16xf32>
    %51 = vector.extract_strided_slice %0 {offsets = [0, 0], sizes = [16, 16], strides = [1, 1]} : vector<48x16xf32> to vector<16x16xf32>
    %cst_41 = arith.constant dense<0.000000e+00> : vector<32x16xf32>
    %52 = tpu.matmul %50, %51, %cst_41 {dimension_numbers = #tpu.dot_dimension_numbers<[1], [0], [0], [1], [0, 0, 1, 1], [], []>} : vector<32x16xf32>, vector<16x16xf32>, vector<32x16xf32> -> vector<32x16xf32>
    %cst_42 = arith.constant dense<0.000000e+00> : vector<32x16xf32>
    %53 = tpu.matmul %49, %47, %cst_42 {dimension_numbers = #tpu.dot_dimension_numbers<[1], [0], [0], [1], [0, 0, 1, 1], [], []>} : vector<32x32xf32>, vector<32x16xf32>, vector<32x16xf32> -> vector<32x16xf32>
    %54 = vector.extract_strided_slice %0 {offsets = [16, 0], sizes = [16, 16], strides = [1, 1]} : vector<48x16xf32> to vector<16x16xf32>
    %cst_43 = arith.constant dense<0.000000e+00> : vector<32x16xf32>
    %55 = tpu.matmul %53, %54, %cst_43 {dimension_numbers = #tpu.dot_dimension_numbers<[1], [0], [0], [1], [0, 0, 1, 1], [], []>} : vector<32x16xf32>, vector<16x16xf32>, vector<32x16xf32> -> vector<32x16xf32>
    %56 = arith.addf %52, %55 : vector<32x16xf32>
    %57 = vector.extract_strided_slice %0 {offsets = [32, 0], sizes = [16, 16], strides = [1, 1]} : vector<48x16xf32> to vector<16x16xf32>
    %cst_44 = arith.constant dense<0.000000e+00> : vector<32x16xf32>
    %58 = tpu.matmul %30, %57, %cst_44 {dimension_numbers = #tpu.dot_dimension_numbers<[1], [0], [0], [1], [0, 0, 1, 1], [], []>} : vector<32x16xf32>, vector<16x16xf32>, vector<32x16xf32> -> vector<32x16xf32>
    %59 = arith.addf %56, %58 : vector<32x16xf32>
    %60 = vector.broadcast %1 : vector<1x16xf32> to vector<32x16xf32>
    %61 = arith.addf %59, %60 : vector<32x16xf32>
    %62 = arith.mulf %61, %61 : vector<32x16xf32>
    %cst_45 = arith.constant dense<0.000000e+00> : vector<32xf32>
    %63 = vector.multi_reduction <add>, %62, %cst_45 [1] : vector<32x16xf32> to vector<32xf32>
    %64 = vector.shape_cast %63 : vector<32xf32> to vector<32x1xf32>
    %cst_46 = arith.constant 1.000000e-24 : f32
    %65 = vector.broadcast %cst_46 : f32 to vector<32x1xf32>
    %66 = arith.maximumf %64, %65 : vector<32x1xf32>
    %67 = math.rsqrt %66 : vector<32x1xf32>
    %68 = vector.broadcast %67 : vector<32x1xf32> to vector<32x16xf32>
    %69 = arith.mulf %61, %68 : vector<32x16xf32>
    %70 = math.tanh %69 : vector<32x16xf32>
    %cst_47 = arith.constant dense<0.000000e+00> : vector<32x16xf32>
    %71 = tpu.matmul %48, %47, %cst_47 {dimension_numbers = #tpu.dot_dimension_numbers<[1], [0], [0], [1], [0, 0, 1, 1], [], []>} : vector<32x32xf32>, vector<32x16xf32>, vector<32x16xf32> -> vector<32x16xf32>
    %72 = vector.extract_strided_slice %2 {offsets = [0, 0], sizes = [16, 16], strides = [1, 1]} : vector<48x16xf32> to vector<16x16xf32>
    %cst_48 = arith.constant dense<0.000000e+00> : vector<32x16xf32>
    %73 = tpu.matmul %71, %72, %cst_48 {dimension_numbers = #tpu.dot_dimension_numbers<[1], [0], [0], [1], [0, 0, 1, 1], [], []>} : vector<32x16xf32>, vector<16x16xf32>, vector<32x16xf32> -> vector<32x16xf32>
    %cst_49 = arith.constant dense<0.000000e+00> : vector<32x16xf32>
    %74 = tpu.matmul %49, %30, %cst_49 {dimension_numbers = #tpu.dot_dimension_numbers<[1], [0], [0], [1], [0, 0, 1, 1], [], []>} : vector<32x32xf32>, vector<32x16xf32>, vector<32x16xf32> -> vector<32x16xf32>
    %75 = vector.extract_strided_slice %2 {offsets = [16, 0], sizes = [16, 16], strides = [1, 1]} : vector<48x16xf32> to vector<16x16xf32>
    %cst_50 = arith.constant dense<0.000000e+00> : vector<32x16xf32>
    %76 = tpu.matmul %74, %75, %cst_50 {dimension_numbers = #tpu.dot_dimension_numbers<[1], [0], [0], [1], [0, 0, 1, 1], [], []>} : vector<32x16xf32>, vector<16x16xf32>, vector<32x16xf32> -> vector<32x16xf32>
    %77 = arith.addf %73, %76 : vector<32x16xf32>
    %78 = vector.extract_strided_slice %2 {offsets = [32, 0], sizes = [16, 16], strides = [1, 1]} : vector<48x16xf32> to vector<16x16xf32>
    %cst_51 = arith.constant dense<0.000000e+00> : vector<32x16xf32>
    %79 = tpu.matmul %47, %78, %cst_51 {dimension_numbers = #tpu.dot_dimension_numbers<[1], [0], [0], [1], [0, 0, 1, 1], [], []>} : vector<32x16xf32>, vector<16x16xf32>, vector<32x16xf32> -> vector<32x16xf32>
    %80 = arith.addf %77, %79 : vector<32x16xf32>
    %81 = vector.broadcast %3 : vector<1x16xf32> to vector<32x16xf32>
    %82 = arith.addf %80, %81 : vector<32x16xf32>
    %83 = arith.mulf %82, %82 : vector<32x16xf32>
    %cst_52 = arith.constant dense<0.000000e+00> : vector<32xf32>
    %84 = vector.multi_reduction <add>, %83, %cst_52 [1] : vector<32x16xf32> to vector<32xf32>
    %85 = vector.shape_cast %84 : vector<32xf32> to vector<32x1xf32>
    %cst_53 = arith.constant 1.000000e-24 : f32
    %86 = vector.broadcast %cst_53 : f32 to vector<32x1xf32>
    %87 = arith.maximumf %85, %86 : vector<32x1xf32>
    %88 = math.rsqrt %87 : vector<32x1xf32>
    %89 = vector.broadcast %88 : vector<32x1xf32> to vector<32x16xf32>
    %90 = arith.mulf %82, %89 : vector<32x16xf32>
    %91 = math.tanh %90 : vector<32x16xf32>
    %c0_54 = arith.constant 0 : index
    %c0_55 = arith.constant 0 : index
    %92 = vector.load %arg17[%c0_54, %c0_55] : memref<32x16xf32, #tpu.memory_space<vmem>>, vector<32x16xf32>
    tpu.vector_store %arg17[%c0_54, %c0_55], %70 {strides = array<i32>} : memref<32x16xf32, #tpu.memory_space<vmem>>, vector<32x16xf32>,
    %c0_56 = arith.constant 0 : index
    %c0_57 = arith.constant 0 : index
    %93 = vector.load %arg18[%c0_56, %c0_57] : memref<32x16xf32, #tpu.memory_space<vmem>>, vector<32x16xf32>
    tpu.vector_store %arg18[%c0_56, %c0_57], %91 {strides = array<i32>} : memref<32x16xf32, #tpu.memory_space<vmem>>, vector<32x16xf32>,
    %cst_58 = arith.constant dense<0.000000e+00> : vector<192x16xf32>
    %94 = tpu.matmul %5, %70, %cst_58 {dimension_numbers = #tpu.dot_dimension_numbers<[1], [0], [0], [1], [0, 0, 1, 1], [], []>} : vector<192x32xf32>, vector<32x16xf32>, vector<192x16xf32> -> vector<192x16xf32>
    %cst_59 = arith.constant dense<0.000000e+00> : vector<192x16xf32>
    %95 = tpu.matmul %5, %91, %cst_59 {dimension_numbers = #tpu.dot_dimension_numbers<[1], [0], [0], [1], [0, 0, 1, 1], [], []>} : vector<192x32xf32>, vector<32x16xf32>, vector<192x16xf32> -> vector<192x16xf32>
    %96 = vector.extract_strided_slice %94 {offsets = [0, 0], sizes = [40, 16], strides = [1, 1]} : vector<192x16xf32> to vector<40x16xf32>
    %97 = vector.extract_strided_slice %95 {offsets = [0, 0], sizes = [40, 16], strides = [1, 1]} : vector<192x16xf32> to vector<40x16xf32>
    %98 = vector.extract_strided_slice %94 {offsets = [40, 0], sizes = [40, 16], strides = [1, 1]} : vector<192x16xf32> to vector<40x16xf32>
    %99 = vector.extract_strided_slice %95 {offsets = [40, 0], sizes = [40, 16], strides = [1, 1]} : vector<192x16xf32> to vector<40x16xf32>
    %100 = vector.extract_strided_slice %94 {offsets = [80, 0], sizes = [40, 16], strides = [1, 1]} : vector<192x16xf32> to vector<40x16xf32>
    %101 = vector.extract_strided_slice %95 {offsets = [80, 0], sizes = [40, 16], strides = [1, 1]} : vector<192x16xf32> to vector<40x16xf32>
    %102 = vector.extract_strided_slice %94 {offsets = [120, 0], sizes = [24, 16], strides = [1, 1]} : vector<192x16xf32> to vector<24x16xf32>
    %103 = vector.extract_strided_slice %95 {offsets = [120, 0], sizes = [24, 16], strides = [1, 1]} : vector<192x16xf32> to vector<24x16xf32>
    %104 = vector.extract_strided_slice %94 {offsets = [144, 0], sizes = [24, 16], strides = [1, 1]} : vector<192x16xf32> to vector<24x16xf32>
    %105 = vector.extract_strided_slice %95 {offsets = [144, 0], sizes = [24, 16], strides = [1, 1]} : vector<192x16xf32> to vector<24x16xf32>
    %106 = vector.extract_strided_slice %94 {offsets = [168, 0], sizes = [24, 16], strides = [1, 1]} : vector<192x16xf32> to vector<24x16xf32>
    %107 = vector.extract_strided_slice %95 {offsets = [168, 0], sizes = [24, 16], strides = [1, 1]} : vector<192x16xf32> to vector<24x16xf32>
    %108 = arith.subf %96, %98 : vector<40x16xf32>
    %109 = arith.mulf %108, %108 : vector<40x16xf32>
    %cst_60 = arith.constant dense<0.000000e+00> : vector<40xf32>
    %110 = vector.multi_reduction <add>, %109, %cst_60 [1] : vector<40x16xf32> to vector<40xf32>
    %111 = vector.shape_cast %110 : vector<40xf32> to vector<40x1xf32>
    %112 = arith.subf %97, %99 : vector<40x16xf32>
    %113 = arith.mulf %112, %112 : vector<40x16xf32>
    %cst_61 = arith.constant dense<0.000000e+00> : vector<40xf32>
    %114 = vector.multi_reduction <add>, %113, %cst_61 [1] : vector<40x16xf32> to vector<40xf32>
    %115 = vector.shape_cast %114 : vector<40xf32> to vector<40x1xf32>
    %116 = arith.addf %111, %115 : vector<40x1xf32>
    %117 = arith.subf %96, %100 : vector<40x16xf32>
    %118 = arith.mulf %117, %117 : vector<40x16xf32>
    %cst_62 = arith.constant dense<0.000000e+00> : vector<40xf32>
    %119 = vector.multi_reduction <add>, %118, %cst_62 [1] : vector<40x16xf32> to vector<40xf32>
    %120 = vector.shape_cast %119 : vector<40xf32> to vector<40x1xf32>
    %121 = arith.subf %97, %101 : vector<40x16xf32>
    %122 = arith.mulf %121, %121 : vector<40x16xf32>
    %cst_63 = arith.constant dense<0.000000e+00> : vector<40xf32>
    %123 = vector.multi_reduction <add>, %122, %cst_63 [1] : vector<40x16xf32> to vector<40xf32>
    %124 = vector.shape_cast %123 : vector<40xf32> to vector<40x1xf32>
    %125 = arith.addf %120, %124 : vector<40x1xf32>
    %126 = arith.subf %116, %125 : vector<40x1xf32>
    %cst_64 = arith.constant 0.000000e+00 : f32
    %127 = vector.broadcast %cst_64 : f32 to vector<40x1xf32>
    %128 = arith.maximumf %126, %127 : vector<40x1xf32>
    %129 = vector.shape_cast %128 : vector<40x1xf32> to vector<1x40x1xf32>
    %cst_65 = arith.constant dense<0.000000e+00> : vector<1xf32>
    %130 = vector.multi_reduction <add>, %129, %cst_65 [1, 2] : vector<1x40x1xf32> to vector<1xf32>
    %131 = vector.shape_cast %130 : vector<1xf32> to vector<1x1x1xf32>
    %132 = vector.extract %131[0, 0, 0] : f32 from vector<1x1x1xf32>
    %cst_66 = arith.constant 4.000000e+01 : f32
    %133 = arith.divf %132, %cst_66 : f32
    %134 = arith.subf %102, %104 : vector<24x16xf32>
    %135 = arith.mulf %134, %134 : vector<24x16xf32>
    %cst_67 = arith.constant dense<0.000000e+00> : vector<24xf32>
    %136 = vector.multi_reduction <add>, %135, %cst_67 [1] : vector<24x16xf32> to vector<24xf32>
    %137 = vector.shape_cast %136 : vector<24xf32> to vector<24x1xf32>
    %138 = arith.subf %103, %105 : vector<24x16xf32>
    %139 = arith.mulf %138, %138 : vector<24x16xf32>
    %cst_68 = arith.constant dense<0.000000e+00> : vector<24xf32>
    %140 = vector.multi_reduction <add>, %139, %cst_68 [1] : vector<24x16xf32> to vector<24xf32>
    %141 = vector.shape_cast %140 : vector<24xf32> to vector<24x1xf32>
    %142 = arith.addf %137, %141 : vector<24x1xf32>
    %143 = arith.subf %102, %106 : vector<24x16xf32>
    %144 = arith.mulf %143, %143 : vector<24x16xf32>
    %cst_69 = arith.constant dense<0.000000e+00> : vector<24xf32>
    %145 = vector.multi_reduction <add>, %144, %cst_69 [1] : vector<24x16xf32> to vector<24xf32>
    %146 = vector.shape_cast %145 : vector<24xf32> to vector<24x1xf32>
    %147 = arith.subf %103, %107 : vector<24x16xf32>
    %148 = arith.mulf %147, %147 : vector<24x16xf32>
    %cst_70 = arith.constant dense<0.000000e+00> : vector<24xf32>
    %149 = vector.multi_reduction <add>, %148, %cst_70 [1] : vector<24x16xf32> to vector<24xf32>
    %150 = vector.shape_cast %149 : vector<24xf32> to vector<24x1xf32>
    %151 = arith.addf %146, %150 : vector<24x1xf32>
    %152 = arith.subf %151, %142 : vector<24x1xf32>
    %cst_71 = arith.constant 0.000000e+00 : f32
    %153 = vector.broadcast %cst_71 : f32 to vector<24x1xf32>
    %154 = arith.maximumf %152, %153 : vector<24x1xf32>
    %155 = vector.shape_cast %154 : vector<24x1xf32> to vector<1x24x1xf32>
    %cst_72 = arith.constant dense<0.000000e+00> : vector<1xf32>
    %156 = vector.multi_reduction <add>, %155, %cst_72 [1, 2] : vector<1x24x1xf32> to vector<1xf32>
    %157 = vector.shape_cast %156 : vector<1xf32> to vector<1x1x1xf32>
    %158 = vector.extract %157[0, 0, 0] : f32 from vector<1x1x1xf32>
    %cst_73 = arith.constant 2.400000e+01 : f32
    %159 = arith.divf %158, %cst_73 : f32
    %160 = vector.extract_strided_slice %4 {offsets = [0, 0], sizes = [16, 3], strides = [1, 1]} : vector<64x3xf32> to vector<16x3xf32>
    %cst_74 = arith.constant dense<0.000000e+00> : vector<192x3xf32>
    %161 = tpu.matmul %94, %160, %cst_74 {dimension_numbers = #tpu.dot_dimension_numbers<[1], [0], [0], [1], [0, 0, 1, 1], [], []>} : vector<192x16xf32>, vector<16x3xf32>, vector<192x3xf32> -> vector<192x3xf32>
    %162 = vector.extract_strided_slice %4 {offsets = [16, 0], sizes = [16, 3], strides = [1, 1]} : vector<64x3xf32> to vector<16x3xf32>
    %cst_75 = arith.constant dense<0.000000e+00> : vector<192x3xf32>
    %163 = tpu.matmul %95, %162, %cst_75 {dimension_numbers = #tpu.dot_dimension_numbers<[1], [0], [0], [1], [0, 0, 1, 1], [], []>} : vector<192x16xf32>, vector<16x3xf32>, vector<192x3xf32> -> vector<192x3xf32>
    %164 = arith.addf %161, %163 : vector<192x3xf32>
    %165 = vector.extract_strided_slice %4 {offsets = [32, 0], sizes = [16, 3], strides = [1, 1]} : vector<64x3xf32> to vector<16x3xf32>
    %cst_76 = arith.constant dense<0.000000e+00> : vector<192x3xf32>
    %166 = tpu.matmul %94, %165, %cst_76 {dimension_numbers = #tpu.dot_dimension_numbers<[1], [0], [0], [1], [0, 0, 1, 1], [], []>} : vector<192x16xf32>, vector<16x3xf32>, vector<192x3xf32> -> vector<192x3xf32>
    %167 = vector.extract_strided_slice %4 {offsets = [48, 0], sizes = [16, 3], strides = [1, 1]} : vector<64x3xf32> to vector<16x3xf32>
    %cst_77 = arith.constant dense<0.000000e+00> : vector<192x3xf32>
    %168 = tpu.matmul %95, %167, %cst_77 {dimension_numbers = #tpu.dot_dimension_numbers<[1], [0], [0], [1], [0, 0, 1, 1], [], []>} : vector<192x16xf32>, vector<16x3xf32>, vector<192x3xf32> -> vector<192x3xf32>
    %169 = arith.addf %166, %168 : vector<192x3xf32>
    %170 = vector.extract_strided_slice %164 {offsets = [0, 0], sizes = [40, 3], strides = [1, 1]} : vector<192x3xf32> to vector<40x3xf32>
    %171 = vector.extract_strided_slice %169 {offsets = [40, 0], sizes = [40, 3], strides = [1, 1]} : vector<192x3xf32> to vector<40x3xf32>
    %172 = arith.addf %170, %171 : vector<40x3xf32>
    %173 = vector.extract_strided_slice %164 {offsets = [120, 0], sizes = [24, 3], strides = [1, 1]} : vector<192x3xf32> to vector<24x3xf32>
    %174 = vector.extract_strided_slice %169 {offsets = [144, 0], sizes = [24, 3], strides = [1, 1]} : vector<192x3xf32> to vector<24x3xf32>
    %175 = arith.addf %173, %174 : vector<24x3xf32>
    %176 = vector.extract_strided_slice %164 {offsets = [120, 0], sizes = [24, 3], strides = [1, 1]} : vector<192x3xf32> to vector<24x3xf32>
    %177 = vector.extract_strided_slice %169 {offsets = [168, 0], sizes = [24, 3], strides = [1, 1]} : vector<192x3xf32> to vector<24x3xf32>
    %178 = arith.addf %176, %177 : vector<24x3xf32>
    %179 = vector.extract_strided_slice %164 {offsets = [144, 0], sizes = [24, 3], strides = [1, 1]} : vector<192x3xf32> to vector<24x3xf32>
    %180 = vector.extract_strided_slice %169 {offsets = [168, 0], sizes = [24, 3], strides = [1, 1]} : vector<192x3xf32> to vector<24x3xf32>
    %181 = arith.addf %179, %180 : vector<24x3xf32>
    %182 = vector.extract_strided_slice %164 {offsets = [0, 0], sizes = [40, 3], strides = [1, 1]} : vector<192x3xf32> to vector<40x3xf32>
    %183 = vector.extract_strided_slice %169 {offsets = [80, 0], sizes = [40, 3], strides = [1, 1]} : vector<192x3xf32> to vector<40x3xf32>
    %184 = arith.addf %182, %183 : vector<40x3xf32>
    %185 = vector.extract_strided_slice %164 {offsets = [40, 0], sizes = [40, 3], strides = [1, 1]} : vector<192x3xf32> to vector<40x3xf32>
    %186 = vector.extract_strided_slice %169 {offsets = [80, 0], sizes = [40, 3], strides = [1, 1]} : vector<192x3xf32> to vector<40x3xf32>
    %187 = arith.addf %185, %186 : vector<40x3xf32>
    %188 = tpu.concatenate %172, %175, %178, %181, %184, %187 in 0 : vector<40x3xf32>, vector<24x3xf32>, vector<24x3xf32>, vector<24x3xf32>, vector<40x3xf32>, vector<40x3xf32> -> vector<192x3xf32>
    %cst_78 = arith.constant dense<0xFF800000> : vector<192xf32>
    %189 = vector.multi_reduction <maximumf>, %188, %cst_78 [1] : vector<192x3xf32> to vector<192xf32>
    %190 = vector.shape_cast %189 : vector<192xf32> to vector<192x1xf32>
    %191 = vector.broadcast %190 : vector<192x1xf32> to vector<192x3xf32>
    %192 = arith.subf %188, %191 : vector<192x3xf32>
    %193 = math.exp %192 : vector<192x3xf32>
    %cst_79 = arith.constant dense<0.000000e+00> : vector<192xf32>
    %194 = vector.multi_reduction <add>, %193, %cst_79 [1] : vector<192x3xf32> to vector<192xf32>
    %195 = vector.shape_cast %194 : vector<192xf32> to vector<192x1xf32>
    %196 = math.log %195 : vector<192x1xf32>
    %197 = arith.addf %196, %190 : vector<192x1xf32>
    %198 = vector.broadcast %197 : vector<192x1xf32> to vector<192x3xf32>
    %199 = arith.subf %188, %198 : vector<192x3xf32>
    %200 = arith.mulf %199, %6 : vector<192x3xf32>
    %cst_80 = arith.constant dense<0.000000e+00> : vector<192xf32>
    %201 = vector.multi_reduction <add>, %200, %cst_80 [1] : vector<192x3xf32> to vector<192xf32>
    %202 = vector.shape_cast %201 : vector<192xf32> to vector<192x1xf32>
    %cst_81 = arith.constant 0.000000e+00 : f32
    %203 = vector.broadcast %cst_81 : f32 to vector<192x1xf32>
    %204 = arith.subf %203, %202 : vector<192x1xf32>
    %205 = vector.shape_cast %204 : vector<192x1xf32> to vector<1x192x1xf32>
    %cst_82 = arith.constant dense<0.000000e+00> : vector<1xf32>
    %206 = vector.multi_reduction <add>, %205, %cst_82 [1, 2] : vector<1x192x1xf32> to vector<1xf32>
    %207 = vector.shape_cast %206 : vector<1xf32> to vector<1x1x1xf32>
    %208 = vector.extract %207[0, 0, 0] : f32 from vector<1x1x1xf32>
    %cst_83 = arith.constant 1.920000e+02 : f32
    %209 = arith.divf %208, %cst_83 : f32
    %210 = arith.addf %133, %159 : f32
    %cst_84 = arith.constant 1.000000e+00 : f32
    %211 = arith.mulf %cst_84, %210 : f32
    %212 = arith.addf %209, %211 : f32
    %cst_85 = arith.constant 1.000000e+00 : f32
    %213 = vector.broadcast %cst_85 : f32 to vector<1x1xf32>
    %214 = vector.broadcast %212 : f32 to vector<1x1xf32>
    %215 = arith.mulf %214, %213 : vector<1x1xf32>
    %c0_86 = arith.constant 0 : index
    %c0_87 = arith.constant 0 : index
    %216 = vector.load %arg19[%c0_86, %c0_87] : memref<1x1xf32, #tpu.memory_space<vmem>>, vector<1x1xf32>
    tpu.vector_store %arg19[%c0_86, %c0_87], %215 {strides = array<i32>} : memref<1x1xf32, #tpu.memory_space<vmem>>, vector<1x1xf32>,
    return
  }
  func.func @transform_0(%arg0: i32) -> (i32, i32) {
    %c0_i32 = arith.constant 0 : i32
    %c0_i32_0 = arith.constant 0 : i32
    %c0_i32_1 = arith.constant 0 : i32
    return %c0_i32, %c0_i32_0 : i32, i32
  }
  func.func @transform_1(%arg0: i32) -> (i32, i32) {
    %c0_i32 = arith.constant 0 : i32
    %c0_i32_0 = arith.constant 0 : i32
    %c0_i32_1 = arith.constant 0 : i32
    return %c0_i32, %c0_i32_0 : i32, i32
  }
  func.func @transform_2(%arg0: i32) -> (i32, i32) {
    %c0_i32 = arith.constant 0 : i32
    %c0_i32_0 = arith.constant 0 : i32
    %c0_i32_1 = arith.constant 0 : i32
    return %c0_i32, %c0_i32_0 : i32, i32
  }
  func.func @transform_3(%arg0: i32) -> (i32, i32) {
    %c0_i32 = arith.constant 0 : i32
    %c0_i32_0 = arith.constant 0 : i32
    %c0_i32_1 = arith.constant 0 : i32
    return %c0_i32, %c0_i32_0 : i32, i32
  }
  func.func @transform_4(%arg0: i32) -> (i32, i32) {
    %c0_i32 = arith.constant 0 : i32
    %c0_i32_0 = arith.constant 0 : i32
    %c0_i32_1 = arith.constant 0 : i32
    return %c0_i32, %c0_i32_0 : i32, i32
  }
  func.func @transform_5(%arg0: i32) -> (i32, i32) {
    %c0_i32 = arith.constant 0 : i32
    %c0_i32_0 = arith.constant 0 : i32
    %c0_i32_1 = arith.constant 0 : i32
    return %c0_i32, %c0_i32_0 : i32, i32
  }
  func.func @transform_6(%arg0: i32) -> (i32, i32) {
    %c0_i32 = arith.constant 0 : i32
    %c0_i32_0 = arith.constant 0 : i32
    %c0_i32_1 = arith.constant 0 : i32
    return %c0_i32, %c0_i32_0 : i32, i32
  }
  func.func @transform_7(%arg0: i32) -> (i32, i32) {
    %c0_i32 = arith.constant 0 : i32
    %c0_i32_0 = arith.constant 0 : i32
    %c0_i32_1 = arith.constant 0 : i32
    return %c0_i32, %c0_i32_0 : i32, i32
  }
  func.func @transform_8(%arg0: i32) -> (i32, i32) {
    %c0_i32 = arith.constant 0 : i32
    %c0_i32_0 = arith.constant 0 : i32
    %c0_i32_1 = arith.constant 0 : i32
    return %c0_i32, %c0_i32_0 : i32, i32
  }
  func.func @transform_9(%arg0: i32) -> (i32, i32) {
    %c0_i32 = arith.constant 0 : i32
    %c0_i32_0 = arith.constant 0 : i32
    %c0_i32_1 = arith.constant 0 : i32
    return %c0_i32, %c0_i32_0 : i32, i32
  }
  func.func @transform_10(%arg0: i32) -> (i32, i32) {
    %c0_i32 = arith.constant 0 : i32
    %c0_i32_0 = arith.constant 0 : i32
    %c0_i32_1 = arith.constant 0 : i32
    return %c0_i32, %c0_i32_0 : i32, i32
  }
  func.func @transform_11(%arg0: i32) -> (i32, i32) {
    %c0_i32 = arith.constant 0 : i32
    %c0_i32_0 = arith.constant 0 : i32
    %c0_i32_1 = arith.constant 0 : i32
    return %c0_i32, %c0_i32_0 : i32, i32
  }
  func.func @transform_12(%arg0: i32) -> (i32, i32) {
    %c0_i32 = arith.constant 0 : i32
    %c0_i32_0 = arith.constant 0 : i32
    %c0_i32_1 = arith.constant 0 : i32
    return %c0_i32, %c0_i32_0 : i32, i32
  }
  func.func @transform_13(%arg0: i32) -> (i32, i32) {
    %c0_i32 = arith.constant 0 : i32
    %c0_i32_0 = arith.constant 0 : i32
    %c0_i32_1 = arith.constant 0 : i32
    return %c0_i32, %c0_i32_0 : i32, i32
  }
  func.func @transform_14(%arg0: i32) -> (i32, i32) {
    %c0_i32 = arith.constant 0 : i32
    %c0_i32_0 = arith.constant 0 : i32
    %c0_i32_1 = arith.constant 0 : i32
    return %c0_i32, %c0_i32_0 : i32, i32
  }
  func.func @transform_15(%arg0: i32) -> (i32, i32) {
    %c0_i32 = arith.constant 0 : i32
    %c0_i32_0 = arith.constant 0 : i32
    %c0_i32_1 = arith.constant 0 : i32
    return %c0_i32, %c0_i32_0 : i32, i32
  }
  func.func @transform_16(%arg0: i32) -> (i32, i32) {
    %c0_i32 = arith.constant 0 : i32
    %c0_i32_0 = arith.constant 0 : i32
    %c0_i32_1 = arith.constant 0 : i32
    return %c0_i32, %c0_i32_0 : i32, i32
  }
  func.func @transform_17(%arg0: i32) -> (i32, i32) {
    %c0_i32 = arith.constant 0 : i32
    %c0_i32_0 = arith.constant 0 : i32
    %c0_i32_1 = arith.constant 0 : i32
    return %c0_i32, %c0_i32_0 : i32, i32
  }
  func.func @transform_18(%arg0: i32) -> (i32, i32) {
    %c0_i32 = arith.constant 0 : i32
    %c0_i32_0 = arith.constant 0 : i32
    %c0_i32_1 = arith.constant 0 : i32
    return %c0_i32, %c0_i32_0 : i32, i32
  }
}

</mosaic_0001>

<llo_original>
// kernel: sgcn_forward.1
$region0: #{sgcn_forward.1}
  #allocation0 [shape = 'u32[]', space=smem, size = 0x4, offset = 0x4, fixed_abs, tag = 'smem constant byte address 0x4 - core index']
  #allocation1 [shape = 'u32[144,128]{1,0:T(1,128)}', space=vmem, size = 0x12000, scoped, tag = 'internal scratch']
  %s0 = inlined_call_operand.vmem [shape: f32[32,32], index: 0, kind: input, shape index: {}]
  %s1 = inlined_call_operand.vmem [shape: f32[32,32], index: 1, kind: input, shape index: {}]
  %s2 = inlined_call_operand.vmem [shape: f32[32,32], index: 2, kind: input, shape index: {}]
  %s3 = inlined_call_operand.vmem [shape: f32[32,32], index: 3, kind: input, shape index: {}]
  %s4 = inlined_call_operand.vmem [shape: f32[32,8], index: 4, kind: input, shape index: {}]
  %s5 = inlined_call_operand.vmem [shape: f32[16,16], index: 5, kind: input, shape index: {}]
  %s6 = inlined_call_operand.vmem [shape: f32[1,16], index: 6, kind: input, shape index: {}]
  %s7 = inlined_call_operand.vmem [shape: f32[16,16], index: 7, kind: input, shape index: {}]
  %s8 = inlined_call_operand.vmem [shape: f32[1,16], index: 8, kind: input, shape index: {}]
  %s9 = inlined_call_operand.vmem [shape: f32[48,16], index: 9, kind: input, shape index: {}]
  %s10 = inlined_call_operand.vmem [shape: f32[1,16], index: 10, kind: input, shape index: {}]
  %s11 = inlined_call_operand.vmem [shape: f32[48,16], index: 11, kind: input, shape index: {}]
  %s12 = inlined_call_operand.vmem [shape: f32[1,16], index: 12, kind: input, shape index: {}]
  %s13 = inlined_call_operand.vmem [shape: f32[64,3], index: 13, kind: input, shape index: {}]
  %s14 = inlined_call_operand.vmem [shape: f32[192,32], index: 14, kind: input, shape index: {}]
  %s15 = inlined_call_operand.vmem [shape: f32[192,3], index: 15, kind: input, shape index: {}]
  %s16 = inlined_call_operand.vmem [shape: f32[32,16], index: 16, kind: output, shape index: {0}]
  %s17 = inlined_call_operand.vmem [shape: f32[32,16], index: 17, kind: output, shape index: {1}]
  %s18 = inlined_call_operand.hbm [shape: f32[1,1], index: 18, kind: output, shape index: {2}]
  %19 = xla_tuple %s16, %s17, %s18
  %s20 = sld [smem:[#allocation0]]
  $region90: #{sgcn_forward.1} parent=0
    _
  %s22 = ssub.s32 1, %s20
  %s23 = scalar_select 0, %s22, %s20
  $region1: #{sgcn_forward.1} parent=0
    #allocation2 [shape = 'u8[512]{0}', space=vmem, size = 0x400, scoped, tag = 'output window, operand 2, single buffered']
    #allocation3 [shape = 's32[1]{0}', space=sflag, size = 0x4, scoped, tag = 'scoped memory for sgcn_forward.1']
    %24 = vsyncpa [#allocation3], 0
    // Predicated region
    $region2: #{sgcn_forward.1} parent=1 // pred_check
      _
    $region3: #{sgcn_forward.1} parent=1 // pred_check_branch
      %26 = sbr.rel (0) target = $region5
    $region4: #{sgcn_forward.1} parent=1 // pred_region
      _
    $region5: #{sgcn_forward.1} parent=1 // pred_fallthru
      _
    // Predicated region
    $region6: #{sgcn_forward.1} parent=1 // pred_check
      _
    $region7: #{sgcn_forward.1} parent=1 // pred_check_branch
      %28 = sbr.rel (0) target = $region9
    $region8: #{sgcn_forward.1} parent=1 // pred_region
      _
    $region9: #{sgcn_forward.1} parent=1 // pred_fallthru
      _
    // Predicated region
    $region10: #{sgcn_forward.1} parent=1 // pred_check
      _
    $region11: #{sgcn_forward.1} parent=1 // pred_check_branch
      %30 = sbr.rel (0) target = $region13
    $region12: #{sgcn_forward.1} parent=1 // pred_region
      _
    $region13: #{sgcn_forward.1} parent=1 // pred_fallthru
      _
    // Predicated region
    $region14: #{sgcn_forward.1} parent=1 // pred_check
      _
    $region15: #{sgcn_forward.1} parent=1 // pred_check_branch
      %32 = sbr.rel (0) target = $region17
    $region16: #{sgcn_forward.1} parent=1 // pred_region
      _
    $region17: #{sgcn_forward.1} parent=1 // pred_fallthru
      _
    // Predicated region
    $region18: #{sgcn_forward.1} parent=1 // pred_check
      _
    $region19: #{sgcn_forward.1} parent=1 // pred_check_branch
      %34 = sbr.rel (0) target = $region21
    $region20: #{sgcn_forward.1} parent=1 // pred_region
      _
    $region21: #{sgcn_forward.1} parent=1 // pred_fallthru
      _
    // Predicated region
    $region22: #{sgcn_forward.1} parent=1 // pred_check
      _
    $region23: #{sgcn_forward.1} parent=1 // pred_check_branch
      %36 = sbr.rel (0) target = $region25
    $region24: #{sgcn_forward.1} parent=1 // pred_region
      _
    $region25: #{sgcn_forward.1} parent=1 // pred_fallthru
      _
    // Predicated region
    $region26: #{sgcn_forward.1} parent=1 // pred_check
      _
    $region27: #{sgcn_forward.1} parent=1 // pred_check_branch
      %38 = sbr.rel (0) target = $region29
    $region28: #{sgcn_forward.1} parent=1 // pred_region
      _
    $region29: #{sgcn_forward.1} parent=1 // pred_fallthru
      _
    // Predicated region
    $region30: #{sgcn_forward.1} parent=1 // pred_check
      _
    $region31: #{sgcn_forward.1} parent=1 // pred_check_branch
      %40 = sbr.rel (0) target = $region33
    $region32: #{sgcn_forward.1} parent=1 // pred_region
      _
    $region33: #{sgcn_forward.1} parent=1 // pred_fallthru
      _
    // Predicated region
    $region34: #{sgcn_forward.1} parent=1 // pred_check
      _
    $region35: #{sgcn_forward.1} parent=1 // pred_check_branch
      %42 = sbr.rel (0) target = $region37
    $region36: #{sgcn_forward.1} parent=1 // pred_region
      _
    $region37: #{sgcn_forward.1} parent=1 // pred_fallthru
      _
    // Predicated region
    $region38: #{sgcn_forward.1} parent=1 // pred_check
      _
    $region39: #{sgcn_forward.1} parent=1 // pred_check_branch
      %44 = sbr.rel (0) target = $region41
    $region40: #{sgcn_forward.1} parent=1 // pred_region
      _
    $region41: #{sgcn_forward.1} parent=1 // pred_fallthru
      _
    // Predicated region
    $region42: #{sgcn_forward.1} parent=1 // pred_check
      _
    $region43: #{sgcn_forward.1} parent=1 // pred_check_branch
      %46 = sbr.rel (0) target = $region45
    $region44: #{sgcn_forward.1} parent=1 // pred_region
      _
    $region45: #{sgcn_forward.1} parent=1 // pred_fallthru
      _
    // Predicated region
    $region46: #{sgcn_forward.1} parent=1 // pred_check
      _
    $region47: #{sgcn_forward.1} parent=1 // pred_check_branch
      %48 = sbr.rel (0) target = $region49
    $region48: #{sgcn_forward.1} parent=1 // pred_region
      _
    $region49: #{sgcn_forward.1} parent=1 // pred_fallthru
      _
    // Predicated region
    $region50: #{sgcn_forward.1} parent=1 // pred_check
      _
    $region51: #{sgcn_forward.1} parent=1 // pred_check_branch
      %50 = sbr.rel (0) target = $region53
    $region52: #{sgcn_forward.1} parent=1 // pred_region
      _
    $region53: #{sgcn_forward.1} parent=1 // pred_fallthru
      _
    // Predicated region
    $region54: #{sgcn_forward.1} parent=1 // pred_check
      _
    $region55: #{sgcn_forward.1} parent=1 // pred_check_branch
      %52 = sbr.rel (0) target = $region57
    $region56: #{sgcn_forward.1} parent=1 // pred_region
      _
    $region57: #{sgcn_forward.1} parent=1 // pred_fallthru
      _
    // Predicated region
    $region58: #{sgcn_forward.1} parent=1 // pred_check
      _
    $region59: #{sgcn_forward.1} parent=1 // pred_check_branch
      %54 = sbr.rel (0) target = $region61
    $region60: #{sgcn_forward.1} parent=1 // pred_region
      _
    $region61: #{sgcn_forward.1} parent=1 // pred_fallthru
      _
    // Predicated region
    $region62: #{sgcn_forward.1} parent=1 // pred_check
      _
    $region63: #{sgcn_forward.1} parent=1 // pred_check_branch
      %56 = sbr.rel (0) target = $region65
    $region64: #{sgcn_forward.1} parent=1 // pred_region
      _
    $region65: #{sgcn_forward.1} parent=1 // pred_fallthru
      _
    %v57 = vld [vmem:[%s9] sm:$0xff]
    %v58 = vld [vmem:[%s9 + $0x8] sm:$0xff]
    %v59 = vld [vmem:[%s9 + $0x10] sm:$0xff]
    %v60 = vld [vmem:[%s9 + $0x18] sm:$0xff]
    %v61 = vld [vmem:[%s9 + $0x20] sm:$0xff]
    %v62 = vld [vmem:[%s9 + $0x28] sm:$0xff]
    %v63 = vld [vmem:[%s10] sm:$0x1]
    %v64 = vld [vmem:[%s11] sm:$0xff]
    %v65 = vld [vmem:[%s11 + $0x8] sm:$0xff]
    %v66 = vld [vmem:[%s11 + $0x10] sm:$0xff]
    %v67 = vld [vmem:[%s11 + $0x18] sm:$0xff]
    %v68 = vld [vmem:[%s11 + $0x20] sm:$0xff]
    %v69 = vld [vmem:[%s11 + $0x28] sm:$0xff]
    %v70 = vld [vmem:[%s12] sm:$0x1]
    %v71 = vld [vmem:[%s13] sm:$0xff]
    %v72 = vld [vmem:[%s13 + $0x8] sm:$0xff]
    %v73 = vld [vmem:[%s13 + $0x10] sm:$0xff]
    %v74 = vld [vmem:[%s13 + $0x18] sm:$0xff]
    %v75 = vld [vmem:[%s13 + $0x20] sm:$0xff]
    %v76 = vld [vmem:[%s13 + $0x28] sm:$0xff]
    %v77 = vld [vmem:[%s13 + $0x30] sm:$0xff]
    %v78 = vld [vmem:[%s13 + $0x38] sm:$0xff]
    %v79 = vld [vmem:[%s14] sm:$0xff]
    %v80 = vld [vmem:[%s14 + $0x8] sm:$0xff]
    %v81 = vld [vmem:[%s14 + $0x10] sm:$0xff]
    %v82 = vld [vmem:[%s14 + $0x18] sm:$0xff]
    %v83 = vld [vmem:[%s14 + $0x20] sm:$0xff]
    %v84 = vld [vmem:[%s14 + $0x28] sm:$0xff]
    %v85 = vld [vmem:[%s14 + $0x30] sm:$0xff]
    %v86 = vld [vmem:[%s14 + $0x38] sm:$0xff]
    %v87 = vld [vmem:[%s14 + $0x40] sm:$0xff]
    %v88 = vld [vmem:[%s14 + $0x48] sm:$0xff]
    %v89 = vld [vmem:[%s14 + $0x50] sm:$0xff]
    %v90 = vld [vmem:[%s14 + $0x58] sm:$0xff]
    %v91 = vld [vmem:[%s14 + $0x60] sm:$0xff]
    %v92 = vld [vmem:[%s14 + $0x68] sm:$0xff]
    %v93 = vld [vmem:[%s14 + $0x70] sm:$0xff]
    %v94 = vld [vmem:[%s14 + $0x78] sm:$0xff]
    %v95 = vld [vmem:[%s14 + $0x80] sm:$0xff]
    %v96 = vld [vmem:[%s14 + $0x88] sm:$0xff]
    %v97 = vld [vmem:[%s14 + $0x90] sm:$0xff]
    %v98 = vld [vmem:[%s14 + $0x98] sm:$0xff]
    %v99 = vld [vmem:[%s14 + $0xa0] sm:$0xff]
    %v100 = vld [vmem:[%s14 + $0xa8] sm:$0xff]
    %v101 = vld [vmem:[%s14 + $0xb0] sm:$0xff]
    %v102 = vld [vmem:[%s14 + $0xb8] sm:$0xff]
    %v103 = vld [vmem:[%s15] sm:$0xff]
    %v104 = vld [vmem:[%s15 + $0x8] sm:$0xff]
    %v105 = vld [vmem:[%s15 + $0x10] sm:$0xff]
    %v106 = vld [vmem:[%s15 + $0x18] sm:$0xff]
    %v107 = vld [vmem:[%s15 + $0x20] sm:$0xff]
    %v108 = vld [vmem:[%s15 + $0x28] sm:$0xff]
    %v109 = vld [vmem:[%s15 + $0x30] sm:$0xff]
    %v110 = vld [vmem:[%s15 + $0x38] sm:$0xff]
    %v111 = vld [vmem:[%s15 + $0x40] sm:$0xff]
    %v112 = vld [vmem:[%s15 + $0x48] sm:$0xff]
    %v113 = vld [vmem:[%s15 + $0x50] sm:$0xff]
    %v114 = vld [vmem:[%s15 + $0x58] sm:$0xff]
    %v115 = vld [vmem:[%s15 + $0x60] sm:$0xff]
    %v116 = vld [vmem:[%s15 + $0x68] sm:$0xff]
    %v117 = vld [vmem:[%s15 + $0x70] sm:$0xff]
    %v118 = vld [vmem:[%s15 + $0x78] sm:$0xff]
    %v119 = vld [vmem:[%s15 + $0x80] sm:$0xff]
    %v120 = vld [vmem:[%s15 + $0x88] sm:$0xff]
    %v121 = vld [vmem:[%s15 + $0x90] sm:$0xff]
    %v122 = vld [vmem:[%s15 + $0x98] sm:$0xff]
    %v123 = vld [vmem:[%s15 + $0xa0] sm:$0xff]
    %v124 = vld [vmem:[%s15 + $0xa8] sm:$0xff]
    %v125 = vld [vmem:[%s15 + $0xb0] sm:$0xff]
    %v126 = vld [vmem:[%s15 + $0xb8] sm:$0xff]
    %v127 = vld [vmem:[%s4] sm:$0xff]
    %v128 = vld [vmem:[%s4 + $0x8] sm:$0xff]
    %v129 = vld [vmem:[%s4 + $0x10] sm:$0xff]
    %v130 = vld [vmem:[%s4 + $0x18] sm:$0xff]
    %v131 = vld [vmem:[%s0] sm:$0xff]
    %v132 = vld [vmem:[%s0 + $0x8] sm:$0xff]
    %v133 = vld [vmem:[%s0 + $0x10] sm:$0xff]
    %v134 = vld [vmem:[%s0 + $0x18] sm:$0xff]
    %v135 = vld [vmem:[%s1] sm:$0xff]
    %v136 = vld [vmem:[%s1 + $0x8] sm:$0xff]
    %v137 = vld [vmem:[%s1 + $0x10] sm:$0xff]
    %v138 = vld [vmem:[%s1 + $0x18] sm:$0xff]
    %v139 = vld [vmem:[%s5] sm:$0xff]
    %v140 = vld [vmem:[%s5 + $0x8] sm:$0xff]
    %v141 = vld [vmem:[%s6] sm:$0x1]
    %v142 = vld [vmem:[%s7] sm:$0xff]
    %v143 = vld [vmem:[%s7 + $0x8] sm:$0xff]
    %v144 = vld [vmem:[%s8] sm:$0x1]
    %vm145 = vcmask 261120
    %v147 = vsel %vm145, %v131, 0
    %v150 = vsel %vm145, %v132, 0
    %v153 = vsel %vm145, %v133, 0
    %v156 = vsel %vm145, %v134, 0
    %158 = vmatprep.subr.mxu0 0.0
    %159 = vmatpush1.msra.mxu0 %v127
    %160 = vmatprep.subr.mxu0 0.0
    %161 = vmatpush1.msra.mxu0 %v128
    %162 = vmatprep.subr.mxu0 0.0
    %163 = vmatpush1.msra.mxu0 %v129
    %164 = vmatprep.subr.mxu0 0.0
    %165 = vmatpush1.msra.mxu0 %v130
    %166 = vmatprep.subr.mxu0 0.0
    %167 = vmatpush1.msra.mxu0 0.0
    %168 = vmatprep.subr.mxu0 0.0
    %169 = vmatpush1.msra.mxu0 0.0
    %170 = vmatprep.subr.mxu0 0.0
    %171 = vmatpush1.msra.mxu0 0.0
    %172 = vmatprep.subr.mxu0 0.0
    %173 = vmatpush1.msra.mxu0 0.0
    %174 = vmatprep.subr.mxu0 0.0
    %175 = vmatpush1.msra.mxu0 0.0
    %176 = vmatprep.subr.mxu0 0.0
    %177 = vmatpush1.msra.mxu0 0.0
    %178 = vmatprep.subr.mxu0 0.0
    %179 = vmatpush1.msra.mxu0 0.0
    %180 = vmatprep.subr.mxu0 0.0
    %181 = vmatpush1.msra.mxu0 0.0
    %182 = vmatprep.subr.mxu0 0.0
    %183 = vmatpush1.msra.mxu0 0.0
    %184 = vmatprep.subr.mxu0 0.0
    %185 = vmatpush1.msra.mxu0 0.0
    %186 = vmatprep.subr.mxu0 0.0
    %187 = vmatpush1.msra.mxu0 0.0
    %188 = vmatprep.subr.mxu0 0.0
    %189 = vmatpush1.msra.mxu0 0.0
    %190 = vmatprep.subr.mxu0 0.0
    %191 = vmatpush1.msra.mxu0 0.0
    %192 = vmatprep.subr.mxu0 0.0
    %193 = vmatpush1.msra.mxu0 0.0
    %194 = vmatprep.subr.mxu0 0.0
    %195 = vmatpush1.msra.mxu0 0.0
    %196 = vmatprep.subr.mxu0 0.0
    %197 = vmatpush1.msra.mxu0 0.0
    %198 = vmatprep.subr.mxu0 0.0
    %199 = vmatpush1.msra.mxu0 0.0
    %200 = vmatprep.subr.mxu0 0.0
    %201 = vmatpush1.msra.mxu0 0.0
    %202 = vmatprep.subr.mxu0 0.0
    %203 = vmatpush1.msra.mxu0 0.0
    %204 = vmatprep.subr.mxu0 0.0
    %205 = vmatpush1.msra.mxu0 0.0
    %206 = vmatprep.subr.mxu0 0.0
    %207 = vmatpush1.msra.mxu0 0.0
    %208 = vmatprep.subr.mxu0 0.0
    %209 = vmatpush1.msra.mxu0 0.0
    %210 = vmatprep.subr.mxu0 0.0
    %211 = vmatpush1.msra.mxu0 0.0
    %212 = vmatprep.subr.mxu0 0.0
    %213 = vmatpush1.msra.mxu0 0.0
    %214 = vmatprep.subr.mxu0 0.0
    %215 = vmatpush1.msra.mxu0 0.0
    %216 = vmatprep.subr.mxu0 0.0
    %217 = vmatpush1.msra.mxu0 0.0
    %218 = vmatprep.subr.mxu0 0.0
    %219 = vmatpush1.msra.mxu0 0.0
    %220 = vmatprep.subr.mxu0 0.0
    %221 = vmatpush1.msra.mxu0 0.0
    %222 = vmatprep.mubr.f32.mxu0 0.0
    %223 = vmatmul.mubr.f32.gmra.mrb[0].mxu0 %v147
    %v224 = vpop.f32.mrb[0].mxu0
    %v225 = vadd.f32 0.0, %v224
    %v226 = vpop.f32.mrb[0].mxu0
    %227 = vmatprep.mubr.f32.mxu0 0.0
    %228 = vmatmul.mubr.f32.gmra.mrb[0].mxu0 %v150
    %v229 = vpop.f32.mrb[0].mxu0
    %v230 = vadd.f32 0.0, %v229
    %v231 = vpop.f32.mrb[0].mxu0
    %232 = vmatprep.mubr.f32.mxu0 0.0
    %233 = vmatmul.mubr.f32.gmra.mrb[0].mxu0 %v153
    %v234 = vpop.f32.mrb[0].mxu0
    %v235 = vadd.f32 0.0, %v234
    %v236 = vpop.f32.mrb[0].mxu0
    %237 = vmatprep.mubr.f32.mxu0 0.0
    %238 = vmatmul.mubr.f32.gmra.mrb[0].mxu0 %v156
    %v239 = vpop.f32.mrb[0].mxu0
    %v240 = vadd.f32 0.0, %v239
    %v241 = vpop.f32.mrb[0].mxu0
    %242 = vdwg.mxu0
    %vm243 = vcmask 64512
    %v245 = vsel %vm243, %v127, 0
    %v248 = vsel %vm243, %v128, 0
    %v251 = vsel %vm243, %v129, 0
    %v254 = vsel %vm243, %v130, 0
    %256 = vmatprep.subr.mxu0 0.0
    %257 = vmatpush1.msra.mxu0 %v140
    %258 = vmatprep.subr.mxu0 0.0
    %259 = vmatpush1.msra.mxu0 0.0
    %260 = vmatprep.subr.mxu0 0.0
    %261 = vmatpush1.msra.mxu0 0.0
    %262 = vmatprep.subr.mxu0 0.0
    %263 = vmatpush1.msra.mxu0 0.0
    %264 = vmatprep.subr.mxu0 0.0
    %265 = vmatpush1.msra.mxu0 0.0
    %266 = vmatprep.subr.mxu0 0.0
    %267 = vmatpush1.msra.mxu0 0.0
    %268 = vmatprep.subr.mxu0 0.0
    %269 = vmatpush1.msra.mxu0 0.0
    %270 = vmatprep.subr.mxu0 0.0
    %271 = vmatpush1.msra.mxu0 0.0
    %272 = vmatprep.subr.mxu0 0.0
    %273 = vmatpush1.msra.mxu0 0.0
    %274 = vmatprep.subr.mxu0 0.0
    %275 = vmatpush1.msra.mxu0 0.0
    %276 = vmatprep.subr.mxu0 0.0
    %277 = vmatpush1.msra.mxu0 0.0
    %278 = vmatprep.subr.mxu0 0.0
    %279 = vmatpush1.msra.mxu0 0.0
    %280 = vmatprep.subr.mxu0 0.0
    %281 = vmatpush1.msra.mxu0 0.0
    %282 = vmatprep.subr.mxu0 0.0
    %283 = vmatpush1.msra.mxu0 0.0
    %284 = vmatprep.subr.mxu0 0.0
    %285 = vmatpush1.msra.mxu0 0.0
    %286 = vmatprep.subr.mxu0 0.0
    %287 = vmatpush1.msra.mxu0 0.0
    %288 = vmatprep.subr.mxu0 0.0
    %289 = vmatpush1.msra.mxu0 0.0
    %290 = vmatprep.subr.mxu0 0.0
    %291 = vmatpush1.msra.mxu0 0.0
    %292 = vmatprep.subr.mxu0 0.0
    %293 = vmatpush1.msra.mxu0 0.0
    %294 = vmatprep.subr.mxu0 0.0
    %295 = vmatpush1.msra.mxu0 0.0
    %296 = vmatprep.subr.mxu0 0.0
    %297 = vmatpush1.msra.mxu0 0.0
    %298 = vmatprep.subr.mxu0 0.0
    %299 = vmatpush1.msra.mxu0 0.0
    %300 = vmatprep.subr.mxu0 0.0
    %301 = vmatpush1.msra.mxu0 0.0
    %302 = vmatprep.subr.mxu0 0.0
    %303 = vmatpush1.msra.mxu0 0.0
    %304 = vmatprep.subr.mxu0 0.0
    %305 = vmatpush1.msra.mxu0 0.0
    %306 = vmatprep.subr.mxu0 0.0
    %307 = vmatpush1.msra.mxu0 0.0
    %308 = vmatprep.subr.mxu0 0.0
    %309 = vmatpush1.msra.mxu0 0.0
    %310 = vmatprep.subr.mxu0 0.0
    %311 = vmatpush1.msra.mxu0 0.0
    %312 = vmatprep.subr.mxu0 0.0
    %313 = vmatpush1.msra.mxu0 0.0
    %314 = vmatprep.subr.mxu0 0.0
    %315 = vmatpush1.msra.mxu0 0.0
    %316 = vmatprep.subr.mxu0 0.0
    %317 = vmatpush1.msra.mxu0 0.0
    %318 = vmatprep.subr.mxu0 0.0
    %319 = vmatpush1.msra.mxu0 0.0
    %320 = vmatprep.mubr.f32.mxu0 0.0
    %321 = vmatmul.mubr.f32.gmra.mrb[0].mxu0 %v245
    %v322 = vpop.f32.mrb[0].mxu0
    %v323 = vadd.f32 0.0, %v322
    %v324 = vpop.f32.mrb[0].mxu0
    %325 = vmatprep.mubr.f32.mxu0 0.0
    %326 = vmatmul.mubr.f32.gmra.mrb[0].mxu0 %v248
    %v327 = vpop.f32.mrb[0].mxu0
    %v328 = vadd.f32 0.0, %v327
    %v329 = vpop.f32.mrb[0].mxu0
    %330 = vmatprep.mubr.f32.mxu0 0.0
    %331 = vmatmul.mubr.f32.gmra.mrb[0].mxu0 %v251
    %v332 = vpop.f32.mrb[0].mxu0
    %v333 = vadd.f32 0.0, %v332
    %v334 = vpop.f32.mrb[0].mxu0
    %335 = vmatprep.mubr.f32.mxu0 0.0
    %336 = vmatmul.mubr.f32.gmra.mrb[0].mxu0 %v254
    %v337 = vpop.f32.mrb[0].mxu0
    %v338 = vadd.f32 0.0, %v337
    %v339 = vpop.f32.mrb[0].mxu0
    %340 = vdwg.mxu0
    %v342 = vsel %vm243, %v225, 0
    %v345 = vsel %vm243, %v230, 0
    %v348 = vsel %vm243, %v235, 0
    %v351 = vsel %vm243, %v240, 0
    %353 = vmatprep.subr.mxu0 0.0
    %354 = vmatpush1.msra.mxu0 %v139
    %355 = vmatprep.subr.mxu0 0.0
    %356 = vmatpush1.msra.mxu0 0.0
    %357 = vmatprep.subr.mxu0 0.0
    %358 = vmatpush1.msra.mxu0 0.0
    %359 = vmatprep.subr.mxu0 0.0
    %360 = vmatpush1.msra.mxu0 0.0
    %361 = vmatprep.subr.mxu0 0.0
    %362 = vmatpush1.msra.mxu0 0.0
    %363 = vmatprep.subr.mxu0 0.0
    %364 = vmatpush1.msra.mxu0 0.0
    %365 = vmatprep.subr.mxu0 0.0
    %366 = vmatpush1.msra.mxu0 0.0
    %367 = vmatprep.subr.mxu0 0.0
    %368 = vmatpush1.msra.mxu0 0.0
    %369 = vmatprep.subr.mxu0 0.0
    %370 = vmatpush1.msra.mxu0 0.0
    %371 = vmatprep.subr.mxu0 0.0
    %372 = vmatpush1.msra.mxu0 0.0
    %373 = vmatprep.subr.mxu0 0.0
    %374 = vmatpush1.msra.mxu0 0.0
    %375 = vmatprep.subr.mxu0 0.0
    %376 = vmatpush1.msra.mxu0 0.0
    %377 = vmatprep.subr.mxu0 0.0
    %378 = vmatpush1.msra.mxu0 0.0
    %379 = vmatprep.subr.mxu0 0.0
    %380 = vmatpush1.msra.mxu0 0.0
    %381 = vmatprep.subr.mxu0 0.0
    %382 = vmatpush1.msra.mxu0 0.0
    %383 = vmatprep.subr.mxu0 0.0
    %384 = vmatpush1.msra.mxu0 0.0
    %385 = vmatprep.subr.mxu0 0.0
    %386 = vmatpush1.msra.mxu0 0.0
    %387 = vmatprep.subr.mxu0 0.0
    %388 = vmatpush1.msra.mxu0 0.0
    %389 = vmatprep.subr.mxu0 0.0
    %390 = vmatpush1.msra.mxu0 0.0
    %391 = vmatprep.subr.mxu0 0.0
    %392 = vmatpush1.msra.mxu0 0.0
    %393 = vmatprep.subr.mxu0 0.0
    %394 = vmatpush1.msra.mxu0 0.0
    %395 = vmatprep.subr.mxu0 0.0
    %396 = vmatpush1.msra.mxu0 0.0
    %397 = vmatprep.subr.mxu0 0.0
    %398 = vmatpush1.msra.mxu0 0.0
    %399 = vmatprep.subr.mxu0 0.0
    %400 = vmatpush1.msra.mxu0 0.0
    %401 = vmatprep.subr.mxu0 0.0
    %402 = vmatpush1.msra.mxu0 0.0
    %403 = vmatprep.subr.mxu0 0.0
    %404 = vmatpush1.msra.mxu0 0.0
    %405 = vmatprep.subr.mxu0 0.0
    %406 = vmatpush1.msra.mxu0 0.0
    %407 = vmatprep.subr.mxu0 0.0
    %408 = vmatpush1.msra.mxu0 0.0
    %409 = vmatprep.subr.mxu0 0.0
    %410 = vmatpush1.msra.mxu0 0.0
    %411 = vmatprep.subr.mxu0 0.0
    %412 = vmatpush1.msra.mxu0 0.0
    %413 = vmatprep.subr.mxu0 0.0
    %414 = vmatpush1.msra.mxu0 0.0
    %415 = vmatprep.subr.mxu0 0.0
    %416 = vmatpush1.msra.mxu0 0.0
    %417 = vmatprep.mubr.f32.mxu0 0.0
    %418 = vmatmul.mubr.f32.gmra.mrb[0].mxu0 %v342
    %v419 = vpop.f32.mrb[0].mxu0
    %v420 = vadd.f32 %v323, %v419
    %v421 = vpop.f32.mrb[0].mxu0
    %422 = vmatprep.mubr.f32.mxu0 0.0
    %423 = vmatmul.mubr.f32.gmra.mrb[0].mxu0 %v345
    %v424 = vpop.f32.mrb[0].mxu0
    %v425 = vadd.f32 %v328, %v424
    %v426 = vpop.f32.mrb[0].mxu0
    %427 = vmatprep.mubr.f32.mxu0 0.0
    %428 = vmatmul.mubr.f32.gmra.mrb[0].mxu0 %v348
    %v429 = vpop.f32.mrb[0].mxu0
    %v430 = vadd.f32 %v333, %v429
    %v431 = vpop.f32.mrb[0].mxu0
    %432 = vmatprep.mubr.f32.mxu0 0.0
    %433 = vmatmul.mubr.f32.gmra.mrb[0].mxu0 %v351
    %v434 = vpop.f32.mrb[0].mxu0
    %v435 = vadd.f32 %v338, %v434
    %v436 = vpop.f32.mrb[0].mxu0
    %437 = vdwg.mxu0
    %v439 = vlaneseq
    %v440 = vshrl.u32 %v439, 7
    %v441 = vsub.s32 0, %v440
    %v442 = vrot.slane %v141, %v441
    %v444 = vadd.f32 %v420, %v442
    %v445 = vadd.f32 %v425, %v442
    %v446 = vadd.f32 %v430, %v442
    %v447 = vadd.f32 %v435, %v442
    %v448 = vmul.f32 %v444, %v444
    %v449 = vmul.f32 %v445, %v445
    %v450 = vmul.f32 %v446, %v446
    %v451 = vmul.f32 %v447, %v447
    %vm452 = vcmask 130048
    %v453 = vsel %vm452, %v448, 0.0
    %454 = vadd.xlane.f32.xlu0 %v453
    %v455 = vpop.xlane.xlu0 %454
    %v456 = vsel %vm452, %v449, 0.0
    %457 = vadd.xlane.f32.xlu0 %v456
    %v458 = vpop.xlane.xlu0 %457
    %v459 = vsel %vm452, %v450, 0.0
    %460 = vadd.xlane.f32.xlu0 %v459
    %v461 = vpop.xlane.xlu0 %460
    %v462 = vsel %vm452, %v451, 0.0
    %463 = vadd.xlane.f32.xlu0 %v462
    %v464 = vpop.xlane.xlu0 %463
    %v465 = vmax.f32 %v455, 1e-24
    %v466 = vmax.f32 %v458, 1e-24
    %v467 = vmax.f32 %v461, 1e-24
    %v468 = vmax.f32 %v464, 1e-24
    %v469 = vrsqrt.pop %v465
    %v470 = vrsqrt.pop %v466
    %v471 = vrsqrt.pop %v467
    %v472 = vrsqrt.pop %v468
    %v473 = vmul.f32 %v444, %v469
    %v474 = vmul.f32 %v445, %v470
    %v475 = vmul.f32 %v446, %v471
    %v476 = vmul.f32 %v447, %v472
    %v477 = vtanh.pop %v473
    %v478 = vtanh.pop %v474
    %v479 = vtanh.pop %v475
    %v480 = vtanh.pop %v476
    %v482 = vsel %vm145, %v135, 0
    %v485 = vsel %vm145, %v136, 0
    %v488 = vsel %vm145, %v137, 0
    %v491 = vsel %vm145, %v138, 0
    %493 = vmatprep.subr.mxu0 0.0
    %494 = vmatpush1.msra.mxu0 %v127
    %495 = vmatprep.subr.mxu0 0.0
    %496 = vmatpush1.msra.mxu0 %v128
    %497 = vmatprep.subr.mxu0 0.0
    %498 = vmatpush1.msra.mxu0 %v129
    %499 = vmatprep.subr.mxu0 0.0
    %500 = vmatpush1.msra.mxu0 %v130
    %501 = vmatprep.subr.mxu0 0.0
    %502 = vmatpush1.msra.mxu0 0.0
    %503 = vmatprep.subr.mxu0 0.0
    %504 = vmatpush1.msra.mxu0 0.0
    %505 = vmatprep.subr.mxu0 0.0
    %506 = vmatpush1.msra.mxu0 0.0
    %507 = vmatprep.subr.mxu0 0.0
    %508 = vmatpush1.msra.mxu0 0.0
    %509 = vmatprep.subr.mxu0 0.0
    %510 = vmatpush1.msra.mxu0 0.0
    %511 = vmatprep.subr.mxu0 0.0
    %512 = vmatpush1.msra.mxu0 0.0
    %513 = vmatprep.subr.mxu0 0.0
    %514 = vmatpush1.msra.mxu0 0.0
    %515 = vmatprep.subr.mxu0 0.0
    %516 = vmatpush1.msra.mxu0 0.0
    %517 = vmatprep.subr.mxu0 0.0
    %518 = vmatpush1.msra.mxu0 0.0
    %519 = vmatprep.subr.mxu0 0.0
    %520 = vmatpush1.msra.mxu0 0.0
    %521 = vmatprep.subr.mxu0 0.0
    %522 = vmatpush1.msra.mxu0 0.0
    %523 = vmatprep.subr.mxu0 0.0
    %524 = vmatpush1.msra.mxu0 0.0
    %525 = vmatprep.subr.mxu0 0.0
    %526 = vmatpush1.msra.mxu0 0.0
    %527 = vmatprep.subr.mxu0 0.0
    %528 = vmatpush1.msra.mxu0 0.0
    %529 = vmatprep.subr.mxu0 0.0
    %530 = vmatpush1.msra.mxu0 0.0
    %531 = vmatprep.subr.mxu0 0.0
    %532 = vmatpush1.msra.mxu0 0.0
    %533 = vmatprep.subr.mxu0 0.0
    %534 = vmatpush1.msra.mxu0 0.0
    %535 = vmatprep.subr.mxu0 0.0
    %536 = vmatpush1.msra.mxu0 0.0
    %537 = vmatprep.subr.mxu0 0.0
    %538 = vmatpush1.msra.mxu0 0.0
    %539 = vmatprep.subr.mxu0 0.0
    %540 = vmatpush1.msra.mxu0 0.0
    %541 = vmatprep.subr.mxu0 0.0
    %542 = vmatpush1.msra.mxu0 0.0
    %543 = vmatprep.subr.mxu0 0.0
    %544 = vmatpush1.msra.mxu0 0.0
    %545 = vmatprep.subr.mxu0 0.0
    %546 = vmatpush1.msra.mxu0 0.0
    %547 = vmatprep.subr.mxu0 0.0
    %548 = vmatpush1.msra.mxu0 0.0
    %549 = vmatprep.subr.mxu0 0.0
    %550 = vmatpush1.msra.mxu0 0.0
    %551 = vmatprep.subr.mxu0 0.0
    %552 = vmatpush1.msra.mxu0 0.0
    %553 = vmatprep.subr.mxu0 0.0
    %554 = vmatpush1.msra.mxu0 0.0
    %555 = vmatprep.subr.mxu0 0.0
    %556 = vmatpush1.msra.mxu0 0.0
    %557 = vmatprep.mubr.f32.mxu0 0.0
    %558 = vmatmul.mubr.f32.gmra.mrb[0].mxu0 %v482
    %v559 = vpop.f32.mrb[0].mxu0
    %v560 = vadd.f32 0.0, %v559
    %v561 = vpop.f32.mrb[0].mxu0
    %562 = vmatprep.mubr.f32.mxu0 0.0
    %563 = vmatmul.mubr.f32.gmra.mrb[0].mxu0 %v485
    %v564 = vpop.f32.mrb[0].mxu0
    %v565 = vadd.f32 0.0, %v564
    %v566 = vpop.f32.mrb[0].mxu0
    %567 = vmatprep.mubr.f32.mxu0 0.0
    %568 = vmatmul.mubr.f32.gmra.mrb[0].mxu0 %v488
    %v569 = vpop.f32.mrb[0].mxu0
    %v570 = vadd.f32 0.0, %v569
    %v571 = vpop.f32.mrb[0].mxu0
    %572 = vmatprep.mubr.f32.mxu0 0.0
    %573 = vmatmul.mubr.f32.gmra.mrb[0].mxu0 %v491
    %v574 = vpop.f32.mrb[0].mxu0
    %v575 = vadd.f32 0.0, %v574
    %v576 = vpop.f32.mrb[0].mxu0
    %577 = vdwg.mxu0
    %578 = vmatprep.subr.mxu0 0.0
    %579 = vmatpush1.msra.mxu0 %v143
    %580 = vmatprep.subr.mxu0 0.0
    %581 = vmatpush1.msra.mxu0 0.0
    %582 = vmatprep.subr.mxu0 0.0
    %583 = vmatpush1.msra.mxu0 0.0
    %584 = vmatprep.subr.mxu0 0.0
    %585 = vmatpush1.msra.mxu0 0.0
    %586 = vmatprep.subr.mxu0 0.0
    %587 = vmatpush1.msra.mxu0 0.0
    %588 = vmatprep.subr.mxu0 0.0
    %589 = vmatpush1.msra.mxu0 0.0
    %590 = vmatprep.subr.mxu0 0.0
    %591 = vmatpush1.msra.mxu0 0.0
    %592 = vmatprep.subr.mxu0 0.0
    %593 = vmatpush1.msra.mxu0 0.0
    %594 = vmatprep.subr.mxu0 0.0
    %595 = vmatpush1.msra.mxu0 0.0
    %596 = vmatprep.subr.mxu0 0.0
    %597 = vmatpush1.msra.mxu0 0.0
    %598 = vmatprep.subr.mxu0 0.0
    %599 = vmatpush1.msra.mxu0 0.0
    %600 = vmatprep.subr.mxu0 0.0
    %601 = vmatpush1.msra.mxu0 0.0
    %602 = vmatprep.subr.mxu0 0.0
    %603 = vmatpush1.msra.mxu0 0.0
    %604 = vmatprep.subr.mxu0 0.0
    %605 = vmatpush1.msra.mxu0 0.0
    %606 = vmatprep.subr.mxu0 0.0
    %607 = vmatpush1.msra.mxu0 0.0
    %608 = vmatprep.subr.mxu0 0.0
    %609 = vmatpush1.msra.mxu0 0.0
    %610 = vmatprep.subr.mxu0 0.0
    %611 = vmatpush1.msra.mxu0 0.0
    %612 = vmatprep.subr.mxu0 0.0
    %613 = vmatpush1.msra.mxu0 0.0
    %614 = vmatprep.subr.mxu0 0.0
    %615 = vmatpush1.msra.mxu0 0.0
    %616 = vmatprep.subr.mxu0 0.0
    %617 = vmatpush1.msra.mxu0 0.0
    %618 = vmatprep.subr.mxu0 0.0
    %619 = vmatpush1.msra.mxu0 0.0
    %620 = vmatprep.subr.mxu0 0.0
    %621 = vmatpush1.msra.mxu0 0.0
    %622 = vmatprep.subr.mxu0 0.0
    %623 = vmatpush1.msra.mxu0 0.0
    %624 = vmatprep.subr.mxu0 0.0
    %625 = vmatpush1.msra.mxu0 0.0
    %626 = vmatprep.subr.mxu0 0.0
    %627 = vmatpush1.msra.mxu0 0.0
    %628 = vmatprep.subr.mxu0 0.0
    %629 = vmatpush1.msra.mxu0 0.0
    %630 = vmatprep.subr.mxu0 0.0
    %631 = vmatpush1.msra.mxu0 0.0
    %632 = vmatprep.subr.mxu0 0.0
    %633 = vmatpush1.msra.mxu0 0.0
    %634 = vmatprep.subr.mxu0 0.0
    %635 = vmatpush1.msra.mxu0 0.0
    %636 = vmatprep.subr.mxu0 0.0
    %637 = vmatpush1.msra.mxu0 0.0
    %638 = vmatprep.subr.mxu0 0.0
    %639 = vmatpush1.msra.mxu0 0.0
    %640 = vmatprep.subr.mxu0 0.0
    %641 = vmatpush1.msra.mxu0 0.0
    %642 = vmatprep.mubr.f32.mxu0 0.0
    %643 = vmatmul.mubr.f32.gmra.mrb[0].mxu0 %v245
    %v644 = vpop.f32.mrb[0].mxu0
    %v645 = vadd.f32 0.0, %v644
    %v646 = vpop.f32.mrb[0].mxu0
    %647 = vmatprep.mubr.f32.mxu0 0.0
    %648 = vmatmul.mubr.f32.gmra.mrb[0].mxu0 %v248
    %v649 = vpop.f32.mrb[0].mxu0
    %v650 = vadd.f32 0.0, %v649
    %v651 = vpop.f32.mrb[0].mxu0
    %652 = vmatprep.mubr.f32.mxu0 0.0
    %653 = vmatmul.mubr.f32.gmra.mrb[0].mxu0 %v251
    %v654 = vpop.f32.mrb[0].mxu0
    %v655 = vadd.f32 0.0, %v654
    %v656 = vpop.f32.mrb[0].mxu0
    %657 = vmatprep.mubr.f32.mxu0 0.0
    %658 = vmatmul.mubr.f32.gmra.mrb[0].mxu0 %v254
    %v659 = vpop.f32.mrb[0].mxu0
    %v660 = vadd.f32 0.0, %v659
    %v661 = vpop.f32.mrb[0].mxu0
    %662 = vdwg.mxu0
    %v664 = vsel %vm243, %v560, 0
    %v667 = vsel %vm243, %v565, 0
    %v670 = vsel %vm243, %v570, 0
    %v673 = vsel %vm243, %v575, 0
    %675 = vmatprep.subr.mxu0 0.0
    %676 = vmatpush1.msra.mxu0 %v142
    %677 = vmatprep.subr.mxu0 0.0
    %678 = vmatpush1.msra.mxu0 0.0
    %679 = vmatprep.subr.mxu0 0.0
    %680 = vmatpush1.msra.mxu0 0.0
    %681 = vmatprep.subr.mxu0 0.0
    %682 = vmatpush1.msra.mxu0 0.0
    %683 = vmatprep.subr.mxu0 0.0
    %684 = vmatpush1.msra.mxu0 0.0
    %685 = vmatprep.subr.mxu0 0.0
    %686 = vmatpush1.msra.mxu0 0.0
    %687 = vmatprep.subr.mxu0 0.0
    %688 = vmatpush1.msra.mxu0 0.0
    %689 = vmatprep.subr.mxu0 0.0
    %690 = vmatpush1.msra.mxu0 0.0
    %691 = vmatprep.subr.mxu0 0.0
    %692 = vmatpush1.msra.mxu0 0.0
    %693 = vmatprep.subr.mxu0 0.0
    %694 = vmatpush1.msra.mxu0 0.0
    %695 = vmatprep.subr.mxu0 0.0
    %696 = vmatpush1.msra.mxu0 0.0
    %697 = vmatprep.subr.mxu0 0.0
    %698 = vmatpush1.msra.mxu0 0.0
    %699 = vmatprep.subr.mxu0 0.0
    %700 = vmatpush1.msra.mxu0 0.0
    %701 = vmatprep.subr.mxu0 0.0
    %702 = vmatpush1.msra.mxu0 0.0
    %703 = vmatprep.subr.mxu0 0.0
    %704 = vmatpush1.msra.mxu0 0.0
    %705 = vmatprep.subr.mxu0 0.0
    %706 = vmatpush1.msra.mxu0 0.0
    %707 = vmatprep.subr.mxu0 0.0
    %708 = vmatpush1.msra.mxu0 0.0
    %709 = vmatprep.subr.mxu0 0.0
    %710 = vmatpush1.msra.mxu0 0.0
    %711 = vmatprep.subr.mxu0 0.0
    %712 = vmatpush1.msra.mxu0 0.0
    %713 = vmatprep.subr.mxu0 0.0
    %714 = vmatpush1.msra.mxu0 0.0
    %715 = vmatprep.subr.mxu0 0.0
    %716 = vmatpush1.msra.mxu0 0.0
    %717 = vmatprep.subr.mxu0 0.0
    %718 = vmatpush1.msra.mxu0 0.0
    %719 = vmatprep.subr.mxu0 0.0
    %720 = vmatpush1.msra.mxu0 0.0
    %721 = vmatprep.subr.mxu0 0.0
    %722 = vmatpush1.msra.mxu0 0.0
    %723 = vmatprep.subr.mxu0 0.0
    %724 = vmatpush1.msra.mxu0 0.0
    %725 = vmatprep.subr.mxu0 0.0
    %726 = vmatpush1.msra.mxu0 0.0
    %727 = vmatprep.subr.mxu0 0.0
    %728 = vmatpush1.msra.mxu0 0.0
    %729 = vmatprep.subr.mxu0 0.0
    %730 = vmatpush1.msra.mxu0 0.0
    %731 = vmatprep.subr.mxu0 0.0
    %732 = vmatpush1.msra.mxu0 0.0
    %733 = vmatprep.subr.mxu0 0.0
    %734 = vmatpush1.msra.mxu0 0.0
    %735 = vmatprep.subr.mxu0 0.0
    %736 = vmatpush1.msra.mxu0 0.0
    %737 = vmatprep.subr.mxu0 0.0
    %738 = vmatpush1.msra.mxu0 0.0
    %739 = vmatprep.mubr.f32.mxu0 0.0
    %740 = vmatmul.mubr.f32.gmra.mrb[0].mxu0 %v664
    %v741 = vpop.f32.mrb[0].mxu0
    %v742 = vadd.f32 %v645, %v741
    %v743 = vpop.f32.mrb[0].mxu0
    %744 = vmatprep.mubr.f32.mxu0 0.0
    %745 = vmatmul.mubr.f32.gmra.mrb[0].mxu0 %v667
    %v746 = vpop.f32.mrb[0].mxu0
    %v747 = vadd.f32 %v650, %v746
    %v748 = vpop.f32.mrb[0].mxu0
    %749 = vmatprep.mubr.f32.mxu0 0.0
    %750 = vmatmul.mubr.f32.gmra.mrb[0].mxu0 %v670
    %v751 = vpop.f32.mrb[0].mxu0
    %v752 = vadd.f32 %v655, %v751
    %v753 = vpop.f32.mrb[0].mxu0
    %754 = vmatprep.mubr.f32.mxu0 0.0
    %755 = vmatmul.mubr.f32.gmra.mrb[0].mxu0 %v673
    %v756 = vpop.f32.mrb[0].mxu0
    %v757 = vadd.f32 %v660, %v756
    %v758 = vpop.f32.mrb[0].mxu0
    %759 = vdwg.mxu0
    %v761 = vlaneseq
    %v762 = vshrl.u32 %v761, 7
    %v763 = vsub.s32 0, %v762
    %v764 = vrot.slane %v144, %v763
    %v766 = vadd.f32 %v742, %v764
    %v767 = vadd.f32 %v747, %v764
    %v768 = vadd.f32 %v752, %v764
    %v769 = vadd.f32 %v757, %v764
    %v770 = vmul.f32 %v766, %v766
    %v771 = vmul.f32 %v767, %v767
    %v772 = vmul.f32 %v768, %v768
    %v773 = vmul.f32 %v769, %v769
    %v774 = vsel %vm452, %v770, 0.0
    %775 = vadd.xlane.f32.xlu0 %v774
    %v776 = vpop.xlane.xlu0 %775
    %v777 = vsel %vm452, %v771, 0.0
    %778 = vadd.xlane.f32.xlu0 %v777
    %v779 = vpop.xlane.xlu0 %778
    %v780 = vsel %vm452, %v772, 0.0
    %781 = vadd.xlane.f32.xlu0 %v780
    %v782 = vpop.xlane.xlu0 %781
    %v783 = vsel %vm452, %v773, 0.0
    %784 = vadd.xlane.f32.xlu0 %v783
    %v785 = vpop.xlane.xlu0 %784
    %v786 = vmax.f32 %v776, 1e-24
    %v787 = vmax.f32 %v779, 1e-24
    %v788 = vmax.f32 %v782, 1e-24
    %v789 = vmax.f32 %v785, 1e-24
    %v790 = vrsqrt.pop %v786
    %v791 = vrsqrt.pop %v787
    %v792 = vrsqrt.pop %v788
    %v793 = vrsqrt.pop %v789
    %v794 = vmul.f32 %v766, %v790
    %v795 = vmul.f32 %v767, %v791
    %v796 = vmul.f32 %v768, %v792
    %v797 = vmul.f32 %v769, %v793
    %v798 = vtanh.pop %v794
    %v799 = vtanh.pop %v795
    %v800 = vtanh.pop %v796
    %v801 = vtanh.pop %v797
    %v802 = vld [vmem:[%s2] sm:$0xff]
    %v803 = vld [vmem:[%s2 + $0x8] sm:$0xff]
    %v804 = vld [vmem:[%s2 + $0x10] sm:$0xff]
    %v805 = vld [vmem:[%s2 + $0x18] sm:$0xff]
    %v806 = vld [vmem:[%s3] sm:$0xff]
    %v807 = vld [vmem:[%s3 + $0x8] sm:$0xff]
    %v808 = vld [vmem:[%s3 + $0x10] sm:$0xff]
    %v809 = vld [vmem:[%s3 + $0x18] sm:$0xff]
    %v811 = vsel %vm145, %v802, 0
    %v814 = vsel %vm145, %v803, 0
    %v817 = vsel %vm145, %v804, 0
    %v820 = vsel %vm145, %v805, 0
    %822 = vmatprep.subr.mxu0 0.0
    %823 = vmatpush1.msra.mxu0 %v477
    %824 = vmatprep.subr.mxu0 0.0
    %825 = vmatpush1.msra.mxu0 %v478
    %826 = vmatprep.subr.mxu0 0.0
    %827 = vmatpush1.msra.mxu0 %v479
    %828 = vmatprep.subr.mxu0 0.0
    %829 = vmatpush1.msra.mxu0 %v480
    %830 = vmatprep.subr.mxu0 0.0
    %831 = vmatpush1.msra.mxu0 0.0
    %832 = vmatprep.subr.mxu0 0.0
    %833 = vmatpush1.msra.mxu0 0.0
    %834 = vmatprep.subr.mxu0 0.0
    %835 = vmatpush1.msra.mxu0 0.0
    %836 = vmatprep.subr.mxu0 0.0
    %837 = vmatpush1.msra.mxu0 0.0
    %838 = vmatprep.subr.mxu0 0.0
    %839 = vmatpush1.msra.mxu0 0.0
    %840 = vmatprep.subr.mxu0 0.0
    %841 = vmatpush1.msra.mxu0 0.0
    %842 = vmatprep.subr.mxu0 0.0
    %843 = vmatpush1.msra.mxu0 0.0
    %844 = vmatprep.subr.mxu0 0.0
    %845 = vmatpush1.msra.mxu0 0.0
    %846 = vmatprep.subr.mxu0 0.0
    %847 = vmatpush1.msra.mxu0 0.0
    %848 = vmatprep.subr.mxu0 0.0
    %849 = vmatpush1.msra.mxu0 0.0
    %850 = vmatprep.subr.mxu0 0.0
    %851 = vmatpush1.msra.mxu0 0.0
    %852 = vmatprep.subr.mxu0 0.0
    %853 = vmatpush1.msra.mxu0 0.0
    %854 = vmatprep.subr.mxu0 0.0
    %855 = vmatpush1.msra.mxu0 0.0
    %856 = vmatprep.subr.mxu0 0.0
    %857 = vmatpush1.msra.mxu0 0.0
    %858 = vmatprep.subr.mxu0 0.0
    %859 = vmatpush1.msra.mxu0 0.0
    %860 = vmatprep.subr.mxu0 0.0
    %861 = vmatpush1.msra.mxu0 0.0
    %862 = vmatprep.subr.mxu0 0.0
    %863 = vmatpush1.msra.mxu0 0.0
    %864 = vmatprep.subr.mxu0 0.0
    %865 = vmatpush1.msra.mxu0 0.0
    %866 = vmatprep.subr.mxu0 0.0
    %867 = vmatpush1.msra.mxu0 0.0
    %868 = vmatprep.subr.mxu0 0.0
    %869 = vmatpush1.msra.mxu0 0.0
    %870 = vmatprep.subr.mxu0 0.0
    %871 = vmatpush1.msra.mxu0 0.0
    %872 = vmatprep.subr.mxu0 0.0
    %873 = vmatpush1.msra.mxu0 0.0
    %874 = vmatprep.subr.mxu0 0.0
    %875 = vmatpush1.msra.mxu0 0.0
    %876 = vmatprep.subr.mxu0 0.0
    %877 = vmatpush1.msra.mxu0 0.0
    %878 = vmatprep.subr.mxu0 0.0
    %879 = vmatpush1.msra.mxu0 0.0
    %880 = vmatprep.subr.mxu0 0.0
    %881 = vmatpush1.msra.mxu0 0.0
    %882 = vmatprep.subr.mxu0 0.0
    %883 = vmatpush1.msra.mxu0 0.0
    %884 = vmatprep.subr.mxu0 0.0
    %885 = vmatpush1.msra.mxu0 0.0
    %886 = vmatprep.mubr.f32.mxu0 0.0
    %887 = vmatmul.mubr.f32.gmra.mrb[0].mxu0 %v811
    %v888 = vpop.f32.mrb[0].mxu0
    %v889 = vadd.f32 0.0, %v888
    %v890 = vpop.f32.mrb[0].mxu0
    %891 = vmatprep.mubr.f32.mxu0 0.0
    %892 = vmatmul.mubr.f32.gmra.mrb[0].mxu0 %v814
    %v893 = vpop.f32.mrb[0].mxu0
    %v894 = vadd.f32 0.0, %v893
    %v895 = vpop.f32.mrb[0].mxu0
    %896 = vmatprep.mubr.f32.mxu0 0.0
    %897 = vmatmul.mubr.f32.gmra.mrb[0].mxu0 %v817
    %v898 = vpop.f32.mrb[0].mxu0
    %v899 = vadd.f32 0.0, %v898
    %v900 = vpop.f32.mrb[0].mxu0
    %901 = vmatprep.mubr.f32.mxu0 0.0
    %902 = vmatmul.mubr.f32.gmra.mrb[0].mxu0 %v820
    %v903 = vpop.f32.mrb[0].mxu0
    %v904 = vadd.f32 0.0, %v903
    %v905 = vpop.f32.mrb[0].mxu0
    %906 = vdwg.mxu0
    %v908 = vsel %vm145, %v806, 0
    %v911 = vsel %vm145, %v807, 0
    %v914 = vsel %vm145, %v808, 0
    %v917 = vsel %vm145, %v809, 0
    %919 = vmatprep.subr.mxu0 0.0
    %920 = vmatpush1.msra.mxu0 %v798
    %921 = vmatprep.subr.mxu0 0.0
    %922 = vmatpush1.msra.mxu0 %v799
    %923 = vmatprep.subr.mxu0 0.0
    %924 = vmatpush1.msra.mxu0 %v800
    %925 = vmatprep.subr.mxu0 0.0
    %926 = vmatpush1.msra.mxu0 %v801
    %927 = vmatprep.subr.mxu0 0.0
    %928 = vmatpush1.msra.mxu0 0.0
    %929 = vmatprep.subr.mxu0 0.0
    %930 = vmatpush1.msra.mxu0 0.0
    %931 = vmatprep.subr.mxu0 0.0
    %932 = vmatpush1.msra.mxu0 0.0
    %933 = vmatprep.subr.mxu0 0.0
    %934 = vmatpush1.msra.mxu0 0.0
    %935 = vmatprep.subr.mxu0 0.0
    %936 = vmatpush1.msra.mxu0 0.0
    %937 = vmatprep.subr.mxu0 0.0
    %938 = vmatpush1.msra.mxu0 0.0
    %939 = vmatprep.subr.mxu0 0.0
    %940 = vmatpush1.msra.mxu0 0.0
    %941 = vmatprep.subr.mxu0 0.0
    %942 = vmatpush1.msra.mxu0 0.0
    %943 = vmatprep.subr.mxu0 0.0
    %944 = vmatpush1.msra.mxu0 0.0
    %945 = vmatprep.subr.mxu0 0.0
    %946 = vmatpush1.msra.mxu0 0.0
    %947 = vmatprep.subr.mxu0 0.0
    %948 = vmatpush1.msra.mxu0 0.0
    %949 = vmatprep.subr.mxu0 0.0
    %950 = vmatpush1.msra.mxu0 0.0
    %951 = vmatprep.subr.mxu0 0.0
    %952 = vmatpush1.msra.mxu0 0.0
    %953 = vmatprep.subr.mxu0 0.0
    %954 = vmatpush1.msra.mxu0 0.0
    %955 = vmatprep.subr.mxu0 0.0
    %956 = vmatpush1.msra.mxu0 0.0
    %957 = vmatprep.subr.mxu0 0.0
    %958 = vmatpush1.msra.mxu0 0.0
    %959 = vmatprep.subr.mxu0 0.0
    %960 = vmatpush1.msra.mxu0 0.0
    %961 = vmatprep.subr.mxu0 0.0
    %962 = vmatpush1.msra.mxu0 0.0
    %963 = vmatprep.subr.mxu0 0.0
    %964 = vmatpush1.msra.mxu0 0.0
    %965 = vmatprep.subr.mxu0 0.0
    %966 = vmatpush1.msra.mxu0 0.0
    %967 = vmatprep.subr.mxu0 0.0
    %968 = vmatpush1.msra.mxu0 0.0
    %969 = vmatprep.subr.mxu0 0.0
    %970 = vmatpush1.msra.mxu0 0.0
    %971 = vmatprep.subr.mxu0 0.0
    %972 = vmatpush1.msra.mxu0 0.0
    %973 = vmatprep.subr.mxu0 0.0
    %974 = vmatpush1.msra.mxu0 0.0
    %975 = vmatprep.subr.mxu0 0.0
    %976 = vmatpush1.msra.mxu0 0.0
    %977 = vmatprep.subr.mxu0 0.0
    %978 = vmatpush1.msra.mxu0 0.0
    %979 = vmatprep.subr.mxu0 0.0
    %980 = vmatpush1.msra.mxu0 0.0
    %981 = vmatprep.subr.mxu0 0.0
    %982 = vmatpush1.msra.mxu0 0.0
    %983 = vmatprep.mubr.f32.mxu0 0.0
    %984 = vmatmul.mubr.f32.gmra.mrb[0].mxu0 %v908
    %v985 = vpop.f32.mrb[0].mxu0
    %v986 = vadd.f32 0.0, %v985
    %v987 = vpop.f32.mrb[0].mxu0
    %988 = vmatprep.mubr.f32.mxu0 0.0
    %989 = vmatmul.mubr.f32.gmra.mrb[0].mxu0 %v911
    %v990 = vpop.f32.mrb[0].mxu0
    %v991 = vadd.f32 0.0, %v990
    %v992 = vpop.f32.mrb[0].mxu0
    %993 = vmatprep.mubr.f32.mxu0 0.0
    %994 = vmatmul.mubr.f32.gmra.mrb[0].mxu0 %v914
    %v995 = vpop.f32.mrb[0].mxu0
    %v996 = vadd.f32 0.0, %v995
    %v997 = vpop.f32.mrb[0].mxu0
    %998 = vmatprep.mubr.f32.mxu0 0.0
    %999 = vmatmul.mubr.f32.gmra.mrb[0].mxu0 %v917
    %v1000 = vpop.f32.mrb[0].mxu0
    %v1001 = vadd.f32 0.0, %v1000
    %v1002 = vpop.f32.mrb[0].mxu0
    %1003 = vdwg.mxu0
    %v1005 = vsel %vm452, %v986, 0
    %v1008 = vsel %vm452, %v991, 0
    %v1011 = vsel %vm452, %v996, 0
    %v1014 = vsel %vm452, %v1001, 0
    %1016 = vmatprep.subr.mxu0 0.0
    %1017 = vmatpush1.msra.mxu0 %v59
    %1018 = vmatprep.subr.mxu0 0.0
    %1019 = vmatpush1.msra.mxu0 %v60
    %1020 = vmatprep.subr.mxu0 0.0
    %1021 = vmatpush1.msra.mxu0 0.0
    %1022 = vmatprep.subr.mxu0 0.0
    %1023 = vmatpush1.msra.mxu0 0.0
    %1024 = vmatprep.subr.mxu0 0.0
    %1025 = vmatpush1.msra.mxu0 0.0
    %1026 = vmatprep.subr.mxu0 0.0
    %1027 = vmatpush1.msra.mxu0 0.0
    %1028 = vmatprep.subr.mxu0 0.0
    %1029 = vmatpush1.msra.mxu0 0.0
    %1030 = vmatprep.subr.mxu0 0.0
    %1031 = vmatpush1.msra.mxu0 0.0
    %1032 = vmatprep.subr.mxu0 0.0
    %1033 = vmatpush1.msra.mxu0 0.0
    %1034 = vmatprep.subr.mxu0 0.0
    %1035 = vmatpush1.msra.mxu0 0.0
    %1036 = vmatprep.subr.mxu0 0.0
    %1037 = vmatpush1.msra.mxu0 0.0
    %1038 = vmatprep.subr.mxu0 0.0
    %1039 = vmatpush1.msra.mxu0 0.0
    %1040 = vmatprep.subr.mxu0 0.0
    %1041 = vmatpush1.msra.mxu0 0.0
    %1042 = vmatprep.subr.mxu0 0.0
    %1043 = vmatpush1.msra.mxu0 0.0
    %1044 = vmatprep.subr.mxu0 0.0
    %1045 = vmatpush1.msra.mxu0 0.0
    %1046 = vmatprep.subr.mxu0 0.0
    %1047 = vmatpush1.msra.mxu0 0.0
    %1048 = vmatprep.subr.mxu0 0.0
    %1049 = vmatpush1.msra.mxu0 0.0
    %1050 = vmatprep.subr.mxu0 0.0
    %1051 = vmatpush1.msra.mxu0 0.0
    %1052 = vmatprep.subr.mxu0 0.0
    %1053 = vmatpush1.msra.mxu0 0.0
    %1054 = vmatprep.subr.mxu0 0.0
    %1055 = vmatpush1.msra.mxu0 0.0
    %1056 = vmatprep.subr.mxu0 0.0
    %1057 = vmatpush1.msra.mxu0 0.0
    %1058 = vmatprep.subr.mxu0 0.0
    %1059 = vmatpush1.msra.mxu0 0.0
    %1060 = vmatprep.subr.mxu0 0.0
    %1061 = vmatpush1.msra.mxu0 0.0
    %1062 = vmatprep.subr.mxu0 0.0
    %1063 = vmatpush1.msra.mxu0 0.0
    %1064 = vmatprep.subr.mxu0 0.0
    %1065 = vmatpush1.msra.mxu0 0.0
    %1066 = vmatprep.subr.mxu0 0.0
    %1067 = vmatpush1.msra.mxu0 0.0
    %1068 = vmatprep.subr.mxu0 0.0
    %1069 = vmatpush1.msra.mxu0 0.0
    %1070 = vmatprep.subr.mxu0 0.0
    %1071 = vmatpush1.msra.mxu0 0.0
    %1072 = vmatprep.subr.mxu0 0.0
    %1073 = vmatpush1.msra.mxu0 0.0
    %1074 = vmatprep.subr.mxu0 0.0
    %1075 = vmatpush1.msra.mxu0 0.0
    %1076 = vmatprep.subr.mxu0 0.0
    %1077 = vmatpush1.msra.mxu0 0.0
    %1078 = vmatprep.subr.mxu0 0.0
    %1079 = vmatpush1.msra.mxu0 0.0
    %1080 = vmatprep.mubr.f32.mxu0 0.0
    %1081 = vmatmul.mubr.f32.gmra.mrb[0].mxu0 %v1005
    %v1082 = vpop.f32.mrb[0].mxu0
    %v1083 = vadd.f32 0.0, %v1082
    %v1084 = vpop.f32.mrb[0].mxu0
    %1085 = vmatprep.mubr.f32.mxu0 0.0
    %1086 = vmatmul.mubr.f32.gmra.mrb[0].mxu0 %v1008
    %v1087 = vpop.f32.mrb[0].mxu0
    %v1088 = vadd.f32 0.0, %v1087
    %v1089 = vpop.f32.mrb[0].mxu0
    %1090 = vmatprep.mubr.f32.mxu0 0.0
    %1091 = vmatmul.mubr.f32.gmra.mrb[0].mxu0 %v1011
    %v1092 = vpop.f32.mrb[0].mxu0
    %v1093 = vadd.f32 0.0, %v1092
    %v1094 = vpop.f32.mrb[0].mxu0
    %1095 = vmatprep.mubr.f32.mxu0 0.0
    %1096 = vmatmul.mubr.f32.gmra.mrb[0].mxu0 %v1014
    %v1097 = vpop.f32.mrb[0].mxu0
    %v1098 = vadd.f32 0.0, %v1097
    %v1099 = vpop.f32.mrb[0].mxu0
    %1100 = vdwg.mxu0
    %v1102 = vsel %vm452, %v889, 0
    %v1105 = vsel %vm452, %v894, 0
    %v1108 = vsel %vm452, %v899, 0
    %v1111 = vsel %vm452, %v904, 0
    %1113 = vmatprep.subr.mxu0 0.0
    %1114 = vmatpush1.msra.mxu0 %v57
    %1115 = vmatprep.subr.mxu0 0.0
    %1116 = vmatpush1.msra.mxu0 %v58
    %1117 = vmatprep.subr.mxu0 0.0
    %1118 = vmatpush1.msra.mxu0 0.0
    %1119 = vmatprep.subr.mxu0 0.0
    %1120 = vmatpush1.msra.mxu0 0.0
    %1121 = vmatprep.subr.mxu0 0.0
    %1122 = vmatpush1.msra.mxu0 0.0
    %1123 = vmatprep.subr.mxu0 0.0
    %1124 = vmatpush1.msra.mxu0 0.0
    %1125 = vmatprep.subr.mxu0 0.0
    %1126 = vmatpush1.msra.mxu0 0.0
    %1127 = vmatprep.subr.mxu0 0.0
    %1128 = vmatpush1.msra.mxu0 0.0
    %1129 = vmatprep.subr.mxu0 0.0
    %1130 = vmatpush1.msra.mxu0 0.0
    %1131 = vmatprep.subr.mxu0 0.0
    %1132 = vmatpush1.msra.mxu0 0.0
    %1133 = vmatprep.subr.mxu0 0.0
    %1134 = vmatpush1.msra.mxu0 0.0
    %1135 = vmatprep.subr.mxu0 0.0
    %1136 = vmatpush1.msra.mxu0 0.0
    %1137 = vmatprep.subr.mxu0 0.0
    %1138 = vmatpush1.msra.mxu0 0.0
    %1139 = vmatprep.subr.mxu0 0.0
    %1140 = vmatpush1.msra.mxu0 0.0
    %1141 = vmatprep.subr.mxu0 0.0
    %1142 = vmatpush1.msra.mxu0 0.0
    %1143 = vmatprep.subr.mxu0 0.0
    %1144 = vmatpush1.msra.mxu0 0.0
    %1145 = vmatprep.subr.mxu0 0.0
    %1146 = vmatpush1.msra.mxu0 0.0
    %1147 = vmatprep.subr.mxu0 0.0
    %1148 = vmatpush1.msra.mxu0 0.0
    %1149 = vmatprep.subr.mxu0 0.0
    %1150 = vmatpush1.msra.mxu0 0.0
    %1151 = vmatprep.subr.mxu0 0.0
    %1152 = vmatpush1.msra.mxu0 0.0
    %1153 = vmatprep.subr.mxu0 0.0
    %1154 = vmatpush1.msra.mxu0 0.0
    %1155 = vmatprep.subr.mxu0 0.0
    %1156 = vmatpush1.msra.mxu0 0.0
    %1157 = vmatprep.subr.mxu0 0.0
    %1158 = vmatpush1.msra.mxu0 0.0
    %1159 = vmatprep.subr.mxu0 0.0
    %1160 = vmatpush1.msra.mxu0 0.0
    %1161 = vmatprep.subr.mxu0 0.0
    %1162 = vmatpush1.msra.mxu0 0.0
    %1163 = vmatprep.subr.mxu0 0.0
    %1164 = vmatpush1.msra.mxu0 0.0
    %1165 = vmatprep.subr.mxu0 0.0
    %1166 = vmatpush1.msra.mxu0 0.0
    %1167 = vmatprep.subr.mxu0 0.0
    %1168 = vmatpush1.msra.mxu0 0.0
    %1169 = vmatprep.subr.mxu0 0.0
    %1170 = vmatpush1.msra.mxu0 0.0
    %1171 = vmatprep.subr.mxu0 0.0
    %1172 = vmatpush1.msra.mxu0 0.0
    %1173 = vmatprep.subr.mxu0 0.0
    %1174 = vmatpush1.msra.mxu0 0.0
    %1175 = vmatprep.subr.mxu0 0.0
    %1176 = vmatpush1.msra.mxu0 0.0
    %1177 = vmatprep.mubr.f32.mxu0 0.0
    %1178 = vmatmul.mubr.f32.gmra.mrb[0].mxu0 %v1102
    %v1179 = vpop.f32.mrb[0].mxu0
    %v1180 = vadd.f32 %v1083, %v1179
    %v1181 = vpop.f32.mrb[0].mxu0
    %1182 = vmatprep.mubr.f32.mxu0 0.0
    %1183 = vmatmul.mubr.f32.gmra.mrb[0].mxu0 %v1105
    %v1184 = vpop.f32.mrb[0].mxu0
    %v1185 = vadd.f32 %v1088, %v1184
    %v1186 = vpop.f32.mrb[0].mxu0
    %1187 = vmatprep.mubr.f32.mxu0 0.0
    %1188 = vmatmul.mubr.f32.gmra.mrb[0].mxu0 %v1108
    %v1189 = vpop.f32.mrb[0].mxu0
    %v1190 = vadd.f32 %v1093, %v1189
    %v1191 = vpop.f32.mrb[0].mxu0
    %1192 = vmatprep.mubr.f32.mxu0 0.0
    %1193 = vmatmul.mubr.f32.gmra.mrb[0].mxu0 %v1111
    %v1194 = vpop.f32.mrb[0].mxu0
    %v1195 = vadd.f32 %v1098, %v1194
    %v1196 = vpop.f32.mrb[0].mxu0
    %1197 = vdwg.mxu0
    %v1199 = vsel %vm452, %v477, 0
    %v1202 = vsel %vm452, %v478, 0
    %v1205 = vsel %vm452, %v479, 0
    %v1208 = vsel %vm452, %v480, 0
    %1210 = vmatprep.subr.mxu0 0.0
    %1211 = vmatpush1.msra.mxu0 %v61
    %1212 = vmatprep.subr.mxu0 0.0
    %1213 = vmatpush1.msra.mxu0 %v62
    %1214 = vmatprep.subr.mxu0 0.0
    %1215 = vmatpush1.msra.mxu0 0.0
    %1216 = vmatprep.subr.mxu0 0.0
    %1217 = vmatpush1.msra.mxu0 0.0
    %1218 = vmatprep.subr.mxu0 0.0
    %1219 = vmatpush1.msra.mxu0 0.0
    %1220 = vmatprep.subr.mxu0 0.0
    %1221 = vmatpush1.msra.mxu0 0.0
    %1222 = vmatprep.subr.mxu0 0.0
    %1223 = vmatpush1.msra.mxu0 0.0
    %1224 = vmatprep.subr.mxu0 0.0
    %1225 = vmatpush1.msra.mxu0 0.0
    %1226 = vmatprep.subr.mxu0 0.0
    %1227 = vmatpush1.msra.mxu0 0.0
    %1228 = vmatprep.subr.mxu0 0.0
    %1229 = vmatpush1.msra.mxu0 0.0
    %1230 = vmatprep.subr.mxu0 0.0
    %1231 = vmatpush1.msra.mxu0 0.0
    %1232 = vmatprep.subr.mxu0 0.0
    %1233 = vmatpush1.msra.mxu0 0.0
    %1234 = vmatprep.subr.mxu0 0.0
    %1235 = vmatpush1.msra.mxu0 0.0
    %1236 = vmatprep.subr.mxu0 0.0
    %1237 = vmatpush1.msra.mxu0 0.0
    %1238 = vmatprep.subr.mxu0 0.0
    %1239 = vmatpush1.msra.mxu0 0.0
    %1240 = vmatprep.subr.mxu0 0.0
    %1241 = vmatpush1.msra.mxu0 0.0
    %1242 = vmatprep.subr.mxu0 0.0
    %1243 = vmatpush1.msra.mxu0 0.0
    %1244 = vmatprep.subr.mxu0 0.0
    %1245 = vmatpush1.msra.mxu0 0.0
    %1246 = vmatprep.subr.mxu0 0.0
    %1247 = vmatpush1.msra.mxu0 0.0
    %1248 = vmatprep.subr.mxu0 0.0
    %1249 = vmatpush1.msra.mxu0 0.0
    %1250 = vmatprep.subr.mxu0 0.0
    %1251 = vmatpush1.msra.mxu0 0.0
    %1252 = vmatprep.subr.mxu0 0.0
    %1253 = vmatpush1.msra.mxu0 0.0
    %1254 = vmatprep.subr.mxu0 0.0
    %1255 = vmatpush1.msra.mxu0 0.0
    %1256 = vmatprep.subr.mxu0 0.0
    %1257 = vmatpush1.msra.mxu0 0.0
    %1258 = vmatprep.subr.mxu0 0.0
    %1259 = vmatpush1.msra.mxu0 0.0
    %1260 = vmatprep.subr.mxu0 0.0
    %1261 = vmatpush1.msra.mxu0 0.0
    %1262 = vmatprep.subr.mxu0 0.0
    %1263 = vmatpush1.msra.mxu0 0.0
    %1264 = vmatprep.subr.mxu0 0.0
    %1265 = vmatpush1.msra.mxu0 0.0
    %1266 = vmatprep.subr.mxu0 0.0
    %1267 = vmatpush1.msra.mxu0 0.0
    %1268 = vmatprep.subr.mxu0 0.0
    %1269 = vmatpush1.msra.mxu0 0.0
    %1270 = vmatprep.subr.mxu0 0.0
    %1271 = vmatpush1.msra.mxu0 0.0
    %1272 = vmatprep.subr.mxu0 0.0
    %1273 = vmatpush1.msra.mxu0 0.0
    %1274 = vmatprep.mubr.f32.mxu0 0.0
    %1275 = vmatmul.mubr.f32.gmra.mrb[0].mxu0 %v1199
    %v1276 = vpop.f32.mrb[0].mxu0
    %v1277 = vadd.f32 0.0, %v1276
    %v1278 = vpop.f32.mrb[0].mxu0
    %1279 = vmatprep.mubr.f32.mxu0 0.0
    %1280 = vmatmul.mubr.f32.gmra.mrb[0].mxu0 %v1202
    %v1281 = vpop.f32.mrb[0].mxu0
    %v1282 = vadd.f32 0.0, %v1281
    %v1283 = vpop.f32.mrb[0].mxu0
    %1284 = vmatprep.mubr.f32.mxu0 0.0
    %1285 = vmatmul.mubr.f32.gmra.mrb[0].mxu0 %v1205
    %v1286 = vpop.f32.mrb[0].mxu0
    %v1287 = vadd.f32 0.0, %v1286
    %v1288 = vpop.f32.mrb[0].mxu0
    %1289 = vmatprep.mubr.f32.mxu0 0.0
    %1290 = vmatmul.mubr.f32.gmra.mrb[0].mxu0 %v1208
    %v1291 = vpop.f32.mrb[0].mxu0
    %v1292 = vadd.f32 0.0, %v1291
    %v1293 = vpop.f32.mrb[0].mxu0
    %1294 = vdwg.mxu0
    %v1295 = vadd.f32 %v1180, %v1277
    %v1296 = vadd.f32 %v1185, %v1282
    %v1297 = vadd.f32 %v1190, %v1287
    %v1298 = vadd.f32 %v1195, %v1292
    %v1300 = vlaneseq
    %v1301 = vshrl.u32 %v1300, 7
    %v1302 = vsub.s32 0, %v1301
    %v1303 = vrot.slane %v63, %v1302
    %v1305 = vadd.f32 %v1295, %v1303
    %v1306 = vadd.f32 %v1296, %v1303
    %v1307 = vadd.f32 %v1297, %v1303
    %v1308 = vadd.f32 %v1298, %v1303
    %v1309 = vmul.f32 %v1305, %v1305
    %v1310 = vmul.f32 %v1306, %v1306
    %v1311 = vmul.f32 %v1307, %v1307
    %v1312 = vmul.f32 %v1308, %v1308
    %v1313 = vsel %vm452, %v1309, 0.0
    %1314 = vadd.xlane.f32.xlu0 %v1313
    %v1315 = vpop.xlane.xlu0 %1314
    %v1316 = vsel %vm452, %v1310, 0.0
    %1317 = vadd.xlane.f32.xlu0 %v1316
    %v1318 = vpop.xlane.xlu0 %1317
    %v1319 = vsel %vm452, %v1311, 0.0
    %1320 = vadd.xlane.f32.xlu0 %v1319
    %v1321 = vpop.xlane.xlu0 %1320
    %v1322 = vsel %vm452, %v1312, 0.0
    %1323 = vadd.xlane.f32.xlu0 %v1322
    %v1324 = vpop.xlane.xlu0 %1323
    %v1325 = vmax.f32 %v1315, 1e-24
    %v1326 = vmax.f32 %v1318, 1e-24
    %v1327 = vmax.f32 %v1321, 1e-24
    %v1328 = vmax.f32 %v1324, 1e-24
    %v1329 = vrsqrt.pop %v1325
    %v1330 = vrsqrt.pop %v1326
    %v1331 = vrsqrt.pop %v1327
    %v1332 = vrsqrt.pop %v1328
    %v1333 = vmul.f32 %v1305, %v1329
    %v1334 = vmul.f32 %v1306, %v1330
    %v1335 = vmul.f32 %v1307, %v1331
    %v1336 = vmul.f32 %v1308, %v1332
    %v1337 = vtanh.pop %v1333
    %v1338 = vtanh.pop %v1334
    %v1339 = vtanh.pop %v1335
    %v1340 = vtanh.pop %v1336
    %1341 = vmatprep.subr.mxu0 0.0
    %1342 = vmatpush1.msra.mxu0 %v798
    %1343 = vmatprep.subr.mxu0 0.0
    %1344 = vmatpush1.msra.mxu0 %v799
    %1345 = vmatprep.subr.mxu0 0.0
    %1346 = vmatpush1.msra.mxu0 %v800
    %1347 = vmatprep.subr.mxu0 0.0
    %1348 = vmatpush1.msra.mxu0 %v801
    %1349 = vmatprep.subr.mxu0 0.0
    %1350 = vmatpush1.msra.mxu0 0.0
    %1351 = vmatprep.subr.mxu0 0.0
    %1352 = vmatpush1.msra.mxu0 0.0
    %1353 = vmatprep.subr.mxu0 0.0
    %1354 = vmatpush1.msra.mxu0 0.0
    %1355 = vmatprep.subr.mxu0 0.0
    %1356 = vmatpush1.msra.mxu0 0.0
    %1357 = vmatprep.subr.mxu0 0.0
    %1358 = vmatpush1.msra.mxu0 0.0
    %1359 = vmatprep.subr.mxu0 0.0
    %1360 = vmatpush1.msra.mxu0 0.0
    %1361 = vmatprep.subr.mxu0 0.0
    %1362 = vmatpush1.msra.mxu0 0.0
    %1363 = vmatprep.subr.mxu0 0.0
    %1364 = vmatpush1.msra.mxu0 0.0
    %1365 = vmatprep.subr.mxu0 0.0
    %1366 = vmatpush1.msra.mxu0 0.0
    %1367 = vmatprep.subr.mxu0 0.0
    %1368 = vmatpush1.msra.mxu0 0.0
    %1369 = vmatprep.subr.mxu0 0.0
    %1370 = vmatpush1.msra.mxu0 0.0
    %1371 = vmatprep.subr.mxu0 0.0
    %1372 = vmatpush1.msra.mxu0 0.0
    %1373 = vmatprep.subr.mxu0 0.0
    %1374 = vmatpush1.msra.mxu0 0.0
    %1375 = vmatprep.subr.mxu0 0.0
    %1376 = vmatpush1.msra.mxu0 0.0
    %1377 = vmatprep.subr.mxu0 0.0
    %1378 = vmatpush1.msra.mxu0 0.0
    %1379 = vmatprep.subr.mxu0 0.0
    %1380 = vmatpush1.msra.mxu0 0.0
    %1381 = vmatprep.subr.mxu0 0.0
    %1382 = vmatpush1.msra.mxu0 0.0
    %1383 = vmatprep.subr.mxu0 0.0
    %1384 = vmatpush1.msra.mxu0 0.0
    %1385 = vmatprep.subr.mxu0 0.0
    %1386 = vmatpush1.msra.mxu0 0.0
    %1387 = vmatprep.subr.mxu0 0.0
    %1388 = vmatpush1.msra.mxu0 0.0
    %1389 = vmatprep.subr.mxu0 0.0
    %1390 = vmatpush1.msra.mxu0 0.0
    %1391 = vmatprep.subr.mxu0 0.0
    %1392 = vmatpush1.msra.mxu0 0.0
    %1393 = vmatprep.subr.mxu0 0.0
    %1394 = vmatpush1.msra.mxu0 0.0
    %1395 = vmatprep.subr.mxu0 0.0
    %1396 = vmatpush1.msra.mxu0 0.0
    %1397 = vmatprep.subr.mxu0 0.0
    %1398 = vmatpush1.msra.mxu0 0.0
    %1399 = vmatprep.subr.mxu0 0.0
    %1400 = vmatpush1.msra.mxu0 0.0
    %1401 = vmatprep.subr.mxu0 0.0
    %1402 = vmatpush1.msra.mxu0 0.0
    %1403 = vmatprep.subr.mxu0 0.0
    %1404 = vmatpush1.msra.mxu0 0.0
    %1405 = vmatprep.mubr.f32.mxu0 0.0
    %1406 = vmatmul.mubr.f32.gmra.mrb[0].mxu0 %v811
    %v1407 = vpop.f32.mrb[0].mxu0
    %v1408 = vadd.f32 0.0, %v1407
    %v1409 = vpop.f32.mrb[0].mxu0
    %1410 = vmatprep.mubr.f32.mxu0 0.0
    %1411 = vmatmul.mubr.f32.gmra.mrb[0].mxu0 %v814
    %v1412 = vpop.f32.mrb[0].mxu0
    %v1413 = vadd.f32 0.0, %v1412
    %v1414 = vpop.f32.mrb[0].mxu0
    %1415 = vmatprep.mubr.f32.mxu0 0.0
    %1416 = vmatmul.mubr.f32.gmra.mrb[0].mxu0 %v817
    %v1417 = vpop.f32.mrb[0].mxu0
    %v1418 = vadd.f32 0.0, %v1417
    %v1419 = vpop.f32.mrb[0].mxu0
    %1420 = vmatprep.mubr.f32.mxu0 0.0
    %1421 = vmatmul.mubr.f32.gmra.mrb[0].mxu0 %v820
    %v1422 = vpop.f32.mrb[0].mxu0
    %v1423 = vadd.f32 0.0, %v1422
    %v1424 = vpop.f32.mrb[0].mxu0
    %1425 = vdwg.mxu0
    %1426 = vmatprep.subr.mxu0 0.0
    %1427 = vmatpush1.msra.mxu0 %v477
    %1428 = vmatprep.subr.mxu0 0.0
    %1429 = vmatpush1.msra.mxu0 %v478
    %1430 = vmatprep.subr.mxu0 0.0
    %1431 = vmatpush1.msra.mxu0 %v479
    %1432 = vmatprep.subr.mxu0 0.0
    %1433 = vmatpush1.msra.mxu0 %v480
    %1434 = vmatprep.subr.mxu0 0.0
    %1435 = vmatpush1.msra.mxu0 0.0
    %1436 = vmatprep.subr.mxu0 0.0
    %1437 = vmatpush1.msra.mxu0 0.0
    %1438 = vmatprep.subr.mxu0 0.0
    %1439 = vmatpush1.msra.mxu0 0.0
    %1440 = vmatprep.subr.mxu0 0.0
    %1441 = vmatpush1.msra.mxu0 0.0
    %1442 = vmatprep.subr.mxu0 0.0
    %1443 = vmatpush1.msra.mxu0 0.0
    %1444 = vmatprep.subr.mxu0 0.0
    %1445 = vmatpush1.msra.mxu0 0.0
    %1446 = vmatprep.subr.mxu0 0.0
    %1447 = vmatpush1.msra.mxu0 0.0
    %1448 = vmatprep.subr.mxu0 0.0
    %1449 = vmatpush1.msra.mxu0 0.0
    %1450 = vmatprep.subr.mxu0 0.0
    %1451 = vmatpush1.msra.mxu0 0.0
    %1452 = vmatprep.subr.mxu0 0.0
    %1453 = vmatpush1.msra.mxu0 0.0
    %1454 = vmatprep.subr.mxu0 0.0
    %1455 = vmatpush1.msra.mxu0 0.0
    %1456 = vmatprep.subr.mxu0 0.0
    %1457 = vmatpush1.msra.mxu0 0.0
    %1458 = vmatprep.subr.mxu0 0.0
    %1459 = vmatpush1.msra.mxu0 0.0
    %1460 = vmatprep.subr.mxu0 0.0
    %1461 = vmatpush1.msra.mxu0 0.0
    %1462 = vmatprep.subr.mxu0 0.0
    %1463 = vmatpush1.msra.mxu0 0.0
    %1464 = vmatprep.subr.mxu0 0.0
    %1465 = vmatpush1.msra.mxu0 0.0
    %1466 = vmatprep.subr.mxu0 0.0
    %1467 = vmatpush1.msra.mxu0 0.0
    %1468 = vmatprep.subr.mxu0 0.0
    %1469 = vmatpush1.msra.mxu0 0.0
    %1470 = vmatprep.subr.mxu0 0.0
    %1471 = vmatpush1.msra.mxu0 0.0
    %1472 = vmatprep.subr.mxu0 0.0
    %1473 = vmatpush1.msra.mxu0 0.0
    %1474 = vmatprep.subr.mxu0 0.0
    %1475 = vmatpush1.msra.mxu0 0.0
    %1476 = vmatprep.subr.mxu0 0.0
    %1477 = vmatpush1.msra.mxu0 0.0
    %1478 = vmatprep.subr.mxu0 0.0
    %1479 = vmatpush1.msra.mxu0 0.0
    %1480 = vmatprep.subr.mxu0 0.0
    %1481 = vmatpush1.msra.mxu0 0.0
    %1482 = vmatprep.subr.mxu0 0.0
    %1483 = vmatpush1.msra.mxu0 0.0
    %1484 = vmatprep.subr.mxu0 0.0
    %1485 = vmatpush1.msra.mxu0 0.0
    %1486 = vmatprep.subr.mxu0 0.0
    %1487 = vmatpush1.msra.mxu0 0.0
    %1488 = vmatprep.subr.mxu0 0.0
    %1489 = vmatpush1.msra.mxu0 0.0
    %1490 = vmatprep.mubr.f32.mxu0 0.0
    %1491 = vmatmul.mubr.f32.gmra.mrb[0].mxu0 %v908
    %v1492 = vpop.f32.mrb[0].mxu0
    %v1493 = vadd.f32 0.0, %v1492
    %v1494 = vpop.f32.mrb[0].mxu0
    %1495 = vmatprep.mubr.f32.mxu0 0.0
    %1496 = vmatmul.mubr.f32.gmra.mrb[0].mxu0 %v911
    %v1497 = vpop.f32.mrb[0].mxu0
    %v1498 = vadd.f32 0.0, %v1497
    %v1499 = vpop.f32.mrb[0].mxu0
    %1500 = vmatprep.mubr.f32.mxu0 0.0
    %1501 = vmatmul.mubr.f32.gmra.mrb[0].mxu0 %v914
    %v1502 = vpop.f32.mrb[0].mxu0
    %v1503 = vadd.f32 0.0, %v1502
    %v1504 = vpop.f32.mrb[0].mxu0
    %1505 = vmatprep.mubr.f32.mxu0 0.0
    %1506 = vmatmul.mubr.f32.gmra.mrb[0].mxu0 %v917
    %v1507 = vpop.f32.mrb[0].mxu0
    %v1508 = vadd.f32 0.0, %v1507
    %v1509 = vpop.f32.mrb[0].mxu0
    %1510 = vdwg.mxu0
    %v1512 = vsel %vm452, %v1493, 0
    %v1515 = vsel %vm452, %v1498, 0
    %v1518 = vsel %vm452, %v1503, 0
    %v1521 = vsel %vm452, %v1508, 0
    %1523 = vmatprep.subr.mxu0 0.0
    %1524 = vmatpush1.msra.mxu0 %v66
    %1525 = vmatprep.subr.mxu0 0.0
    %1526 = vmatpush1.msra.mxu0 %v67
    %1527 = vmatprep.subr.mxu0 0.0
    %1528 = vmatpush1.msra.mxu0 0.0
    %1529 = vmatprep.subr.mxu0 0.0
    %1530 = vmatpush1.msra.mxu0 0.0
    %1531 = vmatprep.subr.mxu0 0.0
    %1532 = vmatpush1.msra.mxu0 0.0
    %1533 = vmatprep.subr.mxu0 0.0
    %1534 = vmatpush1.msra.mxu0 0.0
    %1535 = vmatprep.subr.mxu0 0.0
    %1536 = vmatpush1.msra.mxu0 0.0
    %1537 = vmatprep.subr.mxu0 0.0
    %1538 = vmatpush1.msra.mxu0 0.0
    %1539 = vmatprep.subr.mxu0 0.0
    %1540 = vmatpush1.msra.mxu0 0.0
    %1541 = vmatprep.subr.mxu0 0.0
    %1542 = vmatpush1.msra.mxu0 0.0
    %1543 = vmatprep.subr.mxu0 0.0
    %1544 = vmatpush1.msra.mxu0 0.0
    %1545 = vmatprep.subr.mxu0 0.0
    %1546 = vmatpush1.msra.mxu0 0.0
    %1547 = vmatprep.subr.mxu0 0.0
    %1548 = vmatpush1.msra.mxu0 0.0
    %1549 = vmatprep.subr.mxu0 0.0
    %1550 = vmatpush1.msra.mxu0 0.0
    %1551 = vmatprep.subr.mxu0 0.0
    %1552 = vmatpush1.msra.mxu0 0.0
    %1553 = vmatprep.subr.mxu0 0.0
    %1554 = vmatpush1.msra.mxu0 0.0
    %1555 = vmatprep.subr.mxu0 0.0
    %1556 = vmatpush1.msra.mxu0 0.0
    %1557 = vmatprep.subr.mxu0 0.0
    %1558 = vmatpush1.msra.mxu0 0.0
    %1559 = vmatprep.subr.mxu0 0.0
    %1560 = vmatpush1.msra.mxu0 0.0
    %1561 = vmatprep.subr.mxu0 0.0
    %1562 = vmatpush1.msra.mxu0 0.0
    %1563 = vmatprep.subr.mxu0 0.0
    %1564 = vmatpush1.msra.mxu0 0.0
    %1565 = vmatprep.subr.mxu0 0.0
    %1566 = vmatpush1.msra.mxu0 0.0
    %1567 = vmatprep.subr.mxu0 0.0
    %1568 = vmatpush1.msra.mxu0 0.0
    %1569 = vmatprep.subr.mxu0 0.0
    %1570 = vmatpush1.msra.mxu0 0.0
    %1571 = vmatprep.subr.mxu0 0.0
    %1572 = vmatpush1.msra.mxu0 0.0
    %1573 = vmatprep.subr.mxu0 0.0
    %1574 = vmatpush1.msra.mxu0 0.0
    %1575 = vmatprep.subr.mxu0 0.0
    %1576 = vmatpush1.msra.mxu0 0.0
    %1577 = vmatprep.subr.mxu0 0.0
    %1578 = vmatpush1.msra.mxu0 0.0
    %1579 = vmatprep.subr.mxu0 0.0
    %1580 = vmatpush1.msra.mxu0 0.0
    %1581 = vmatprep.subr.mxu0 0.0
    %1582 = vmatpush1.msra.mxu0 0.0
    %1583 = vmatprep.subr.mxu0 0.0
    %1584 = vmatpush1.msra.mxu0 0.0
    %1585 = vmatprep.subr.mxu0 0.0
    %1586 = vmatpush1.msra.mxu0 0.0
    %1587 = vmatprep.mubr.f32.mxu0 0.0
    %1588 = vmatmul.mubr.f32.gmra.mrb[0].mxu0 %v1512
    %v1589 = vpop.f32.mrb[0].mxu0
    %v1590 = vadd.f32 0.0, %v1589
    %v1591 = vpop.f32.mrb[0].mxu0
    %1592 = vmatprep.mubr.f32.mxu0 0.0
    %1593 = vmatmul.mubr.f32.gmra.mrb[0].mxu0 %v1515
    %v1594 = vpop.f32.mrb[0].mxu0
    %v1595 = vadd.f32 0.0, %v1594
    %v1596 = vpop.f32.mrb[0].mxu0
    %1597 = vmatprep.mubr.f32.mxu0 0.0
    %1598 = vmatmul.mubr.f32.gmra.mrb[0].mxu0 %v1518
    %v1599 = vpop.f32.mrb[0].mxu0
    %v1600 = vadd.f32 0.0, %v1599
    %v1601 = vpop.f32.mrb[0].mxu0
    %1602 = vmatprep.mubr.f32.mxu0 0.0
    %1603 = vmatmul.mubr.f32.gmra.mrb[0].mxu0 %v1521
    %v1604 = vpop.f32.mrb[0].mxu0
    %v1605 = vadd.f32 0.0, %v1604
    %v1606 = vpop.f32.mrb[0].mxu0
    %1607 = vdwg.mxu0
    %v1609 = vsel %vm452, %v1408, 0
    %v1612 = vsel %vm452, %v1413, 0
    %v1615 = vsel %vm452, %v1418, 0
    %v1618 = vsel %vm452, %v1423, 0
    %1620 = vmatprep.subr.mxu0 0.0
    %1621 = vmatpush1.msra.mxu0 %v64
    %1622 = vmatprep.subr.mxu0 0.0
    %1623 = vmatpush1.msra.mxu0 %v65
    %1624 = vmatprep.subr.mxu0 0.0
    %1625 = vmatpush1.msra.mxu0 0.0
    %1626 = vmatprep.subr.mxu0 0.0
    %1627 = vmatpush1.msra.mxu0 0.0
    %1628 = vmatprep.subr.mxu0 0.0
    %1629 = vmatpush1.msra.mxu0 0.0
    %1630 = vmatprep.subr.mxu0 0.0
    %1631 = vmatpush1.msra.mxu0 0.0
    %1632 = vmatprep.subr.mxu0 0.0
    %1633 = vmatpush1.msra.mxu0 0.0
    %1634 = vmatprep.subr.mxu0 0.0
    %1635 = vmatpush1.msra.mxu0 0.0
    %1636 = vmatprep.subr.mxu0 0.0
    %1637 = vmatpush1.msra.mxu0 0.0
    %1638 = vmatprep.subr.mxu0 0.0
    %1639 = vmatpush1.msra.mxu0 0.0
    %1640 = vmatprep.subr.mxu0 0.0
    %1641 = vmatpush1.msra.mxu0 0.0
    %1642 = vmatprep.subr.mxu0 0.0
    %1643 = vmatpush1.msra.mxu0 0.0
    %1644 = vmatprep.subr.mxu0 0.0
    %1645 = vmatpush1.msra.mxu0 0.0
    %1646 = vmatprep.subr.mxu0 0.0
    %1647 = vmatpush1.msra.mxu0 0.0
    %1648 = vmatprep.subr.mxu0 0.0
    %1649 = vmatpush1.msra.mxu0 0.0
    %1650 = vmatprep.subr.mxu0 0.0
    %1651 = vmatpush1.msra.mxu0 0.0
    %1652 = vmatprep.subr.mxu0 0.0
    %1653 = vmatpush1.msra.mxu0 0.0
    %1654 = vmatprep.subr.mxu0 0.0
    %1655 = vmatpush1.msra.mxu0 0.0
    %1656 = vmatprep.subr.mxu0 0.0
    %1657 = vmatpush1.msra.mxu0 0.0
    %1658 = vmatprep.subr.mxu0 0.0
    %1659 = vmatpush1.msra.mxu0 0.0
    %1660 = vmatprep.subr.mxu0 0.0
    %1661 = vmatpush1.msra.mxu0 0.0
    %1662 = vmatprep.subr.mxu0 0.0
    %1663 = vmatpush1.msra.mxu0 0.0
    %1664 = vmatprep.subr.mxu0 0.0
    %1665 = vmatpush1.msra.mxu0 0.0
    %1666 = vmatprep.subr.mxu0 0.0
    %1667 = vmatpush1.msra.mxu0 0.0
    %1668 = vmatprep.subr.mxu0 0.0
    %1669 = vmatpush1.msra.mxu0 0.0
    %1670 = vmatprep.subr.mxu0 0.0
    %1671 = vmatpush1.msra.mxu0 0.0
    %1672 = vmatprep.subr.mxu0 0.0
    %1673 = vmatpush1.msra.mxu0 0.0
    %1674 = vmatprep.subr.mxu0 0.0
    %1675 = vmatpush1.msra.mxu0 0.0
    %1676 = vmatprep.subr.mxu0 0.0
    %1677 = vmatpush1.msra.mxu0 0.0
    %1678 = vmatprep.subr.mxu0 0.0
    %1679 = vmatpush1.msra.mxu0 0.0
    %1680 = vmatprep.subr.mxu0 0.0
    %1681 = vmatpush1.msra.mxu0 0.0
    %1682 = vmatprep.subr.mxu0 0.0
    %1683 = vmatpush1.msra.mxu0 0.0
    %1684 = vmatprep.mubr.f32.mxu0 0.0
    %1685 = vmatmul.mubr.f32.gmra.mrb[0].mxu0 %v1609
    %v1686 = vpop.f32.mrb[0].mxu0
    %v1687 = vadd.f32 %v1590, %v1686
    %v1688 = vpop.f32.mrb[0].mxu0
    %1689 = vmatprep.mubr.f32.mxu0 0.0
    %1690 = vmatmul.mubr.f32.gmra.mrb[0].mxu0 %v1612
    %v1691 = vpop.f32.mrb[0].mxu0
    %v1692 = vadd.f32 %v1595, %v1691
    %v1693 = vpop.f32.mrb[0].mxu0
    %1694 = vmatprep.mubr.f32.mxu0 0.0
    %1695 = vmatmul.mubr.f32.gmra.mrb[0].mxu0 %v1615
    %v1696 = vpop.f32.mrb[0].mxu0
    %v1697 = vadd.f32 %v1600, %v1696
    %v1698 = vpop.f32.mrb[0].mxu0
    %1699 = vmatprep.mubr.f32.mxu0 0.0
    %1700 = vmatmul.mubr.f32.gmra.mrb[0].mxu0 %v1618
    %v1701 = vpop.f32.mrb[0].mxu0
    %v1702 = vadd.f32 %v1605, %v1701
    %v1703 = vpop.f32.mrb[0].mxu0
    %1704 = vdwg.mxu0
    %v1706 = vsel %vm452, %v798, 0
    %v1709 = vsel %vm452, %v799, 0
    %v1712 = vsel %vm452, %v800, 0
    %v1715 = vsel %vm452, %v801, 0
    %1717 = vmatprep.subr.mxu0 0.0
    %1718 = vmatpush1.msra.mxu0 %v68
    %1719 = vmatprep.subr.mxu0 0.0
    %1720 = vmatpush1.msra.mxu0 %v69
    %1721 = vmatprep.subr.mxu0 0.0
    %1722 = vmatpush1.msra.mxu0 0.0
    %1723 = vmatprep.subr.mxu0 0.0
    %1724 = vmatpush1.msra.mxu0 0.0
    %1725 = vmatprep.subr.mxu0 0.0
    %1726 = vmatpush1.msra.mxu0 0.0
    %1727 = vmatprep.subr.mxu0 0.0
    %1728 = vmatpush1.msra.mxu0 0.0
    %1729 = vmatprep.subr.mxu0 0.0
    %1730 = vmatpush1.msra.mxu0 0.0
    %1731 = vmatprep.subr.mxu0 0.0
    %1732 = vmatpush1.msra.mxu0 0.0
    %1733 = vmatprep.subr.mxu0 0.0
    %1734 = vmatpush1.msra.mxu0 0.0
    %1735 = vmatprep.subr.mxu0 0.0
    %1736 = vmatpush1.msra.mxu0 0.0
    %1737 = vmatprep.subr.mxu0 0.0
    %1738 = vmatpush1.msra.mxu0 0.0
    %1739 = vmatprep.subr.mxu0 0.0
    %1740 = vmatpush1.msra.mxu0 0.0
    %1741 = vmatprep.subr.mxu0 0.0
    %1742 = vmatpush1.msra.mxu0 0.0
    %1743 = vmatprep.subr.mxu0 0.0
    %1744 = vmatpush1.msra.mxu0 0.0
    %1745 = vmatprep.subr.mxu0 0.0
    %1746 = vmatpush1.msra.mxu0 0.0
    %1747 = vmatprep.subr.mxu0 0.0
    %1748 = vmatpush1.msra.mxu0 0.0
    %1749 = vmatprep.subr.mxu0 0.0
    %1750 = vmatpush1.msra.mxu0 0.0
    %1751 = vmatprep.subr.mxu0 0.0
    %1752 = vmatpush1.msra.mxu0 0.0
    %1753 = vmatprep.subr.mxu0 0.0
    %1754 = vmatpush1.msra.mxu0 0.0
    %1755 = vmatprep.subr.mxu0 0.0
    %1756 = vmatpush1.msra.mxu0 0.0
    %1757 = vmatprep.subr.mxu0 0.0
    %1758 = vmatpush1.msra.mxu0 0.0
    %1759 = vmatprep.subr.mxu0 0.0
    %1760 = vmatpush1.msra.mxu0 0.0
    %1761 = vmatprep.subr.mxu0 0.0
    %1762 = vmatpush1.msra.mxu0 0.0
    %1763 = vmatprep.subr.mxu0 0.0
    %1764 = vmatpush1.msra.mxu0 0.0
    %1765 = vmatprep.subr.mxu0 0.0
    %1766 = vmatpush1.msra.mxu0 0.0
    %1767 = vmatprep.subr.mxu0 0.0
    %1768 = vmatpush1.msra.mxu0 0.0
    %1769 = vmatprep.subr.mxu0 0.0
    %1770 = vmatpush1.msra.mxu0 0.0
    %1771 = vmatprep.subr.mxu0 0.0
    %1772 = vmatpush1.msra.mxu0 0.0
    %1773 = vmatprep.subr.mxu0 0.0
    %1774 = vmatpush1.msra.mxu0 0.0
    %1775 = vmatprep.subr.mxu0 0.0
    %1776 = vmatpush1.msra.mxu0 0.0
    %1777 = vmatprep.subr.mxu0 0.0
    %1778 = vmatpush1.msra.mxu0 0.0
    %1779 = vmatprep.subr.mxu0 0.0
    %1780 = vmatpush1.msra.mxu0 0.0
    %1781 = vmatprep.mubr.f32.mxu0 0.0
    %1782 = vmatmul.mubr.f32.gmra.mrb[0].mxu0 %v1706
    %v1783 = vpop.f32.mrb[0].mxu0
    %v1784 = vadd.f32 0.0, %v1783
    %v1785 = vpop.f32.mrb[0].mxu0
    %1786 = vmatprep.mubr.f32.mxu0 0.0
    %1787 = vmatmul.mubr.f32.gmra.mrb[0].mxu0 %v1709
    %v1788 = vpop.f32.mrb[0].mxu0
    %v1789 = vadd.f32 0.0, %v1788
    %v1790 = vpop.f32.mrb[0].mxu0
    %1791 = vmatprep.mubr.f32.mxu0 0.0
    %1792 = vmatmul.mubr.f32.gmra.mrb[0].mxu0 %v1712
    %v1793 = vpop.f32.mrb[0].mxu0
    %v1794 = vadd.f32 0.0, %v1793
    %v1795 = vpop.f32.mrb[0].mxu0
    %1796 = vmatprep.mubr.f32.mxu0 0.0
    %1797 = vmatmul.mubr.f32.gmra.mrb[0].mxu0 %v1715
    %v1798 = vpop.f32.mrb[0].mxu0
    %v1799 = vadd.f32 0.0, %v1798
    %v1800 = vpop.f32.mrb[0].mxu0
    %1801 = vdwg.mxu0
    %v1802 = vadd.f32 %v1687, %v1784
    %v1803 = vadd.f32 %v1692, %v1789
    %v1804 = vadd.f32 %v1697, %v1794
    %v1805 = vadd.f32 %v1702, %v1799
    %v1807 = vlaneseq
    %v1808 = vshrl.u32 %v1807, 7
    %v1809 = vsub.s32 0, %v1808
    %v1810 = vrot.slane %v70, %v1809
    %v1812 = vadd.f32 %v1802, %v1810
    %v1813 = vadd.f32 %v1803, %v1810
    %v1814 = vadd.f32 %v1804, %v1810
    %v1815 = vadd.f32 %v1805, %v1810
    %v1816 = vmul.f32 %v1812, %v1812
    %v1817 = vmul.f32 %v1813, %v1813
    %v1818 = vmul.f32 %v1814, %v1814
    %v1819 = vmul.f32 %v1815, %v1815
    %v1820 = vsel %vm452, %v1816, 0.0
    %1821 = vadd.xlane.f32.xlu0 %v1820
    %v1822 = vpop.xlane.xlu0 %1821
    %v1823 = vsel %vm452, %v1817, 0.0
    %1824 = vadd.xlane.f32.xlu0 %v1823
    %v1825 = vpop.xlane.xlu0 %1824
    %v1826 = vsel %vm452, %v1818, 0.0
    %1827 = vadd.xlane.f32.xlu0 %v1826
    %v1828 = vpop.xlane.xlu0 %1827
    %v1829 = vsel %vm452, %v1819, 0.0
    %1830 = vadd.xlane.f32.xlu0 %v1829
    %v1831 = vpop.xlane.xlu0 %1830
    %v1832 = vmax.f32 %v1822, 1e-24
    %v1833 = vmax.f32 %v1825, 1e-24
    %v1834 = vmax.f32 %v1828, 1e-24
    %v1835 = vmax.f32 %v1831, 1e-24
    %v1836 = vrsqrt.pop %v1832
    %v1837 = vrsqrt.pop %v1833
    %v1838 = vrsqrt.pop %v1834
    %v1839 = vrsqrt.pop %v1835
    %v1840 = vmul.f32 %v1812, %v1836
    %v1841 = vmul.f32 %v1813, %v1837
    %v1842 = vmul.f32 %v1814, %v1838
    %v1843 = vmul.f32 %v1815, %v1839
    %v1844 = vtanh.pop %v1840
    %v1845 = vtanh.pop %v1841
    %v1846 = vtanh.pop %v1842
    %v1847 = vtanh.pop %v1843
    %1848 = vst.msk [vmem:[%s16] sm:$0xff] %vm452, %v1337
    %1849 = vst.msk [vmem:[%s16 + $0x8] sm:$0xff] %vm452, %v1338
    %1850 = vst.msk [vmem:[%s16 + $0x10] sm:$0xff] %vm452, %v1339
    %1851 = vst.msk [vmem:[%s16 + $0x18] sm:$0xff] %vm452, %v1340
    %1852 = vst.msk [vmem:[%s17] sm:$0xff] %vm452, %v1844
    %1853 = vst.msk [vmem:[%s17 + $0x8] sm:$0xff] %vm452, %v1845
    %1854 = vst.msk [vmem:[%s17 + $0x10] sm:$0xff] %vm452, %v1846
    %1855 = vst.msk [vmem:[%s17 + $0x18] sm:$0xff] %vm452, %v1847
    %v1857 = vsel %vm145, %v79, 0
    %v1860 = vsel %vm145, %v80, 0
    %v1863 = vsel %vm145, %v81, 0
    %v1866 = vsel %vm145, %v82, 0
    %v1869 = vsel %vm145, %v83, 0
    %v1872 = vsel %vm145, %v84, 0
    %v1875 = vsel %vm145, %v85, 0
    %v1878 = vsel %vm145, %v86, 0
    %v1881 = vsel %vm145, %v87, 0
    %v1884 = vsel %vm145, %v88, 0
    %v1887 = vsel %vm145, %v89, 0
    %v1890 = vsel %vm145, %v90, 0
    %v1893 = vsel %vm145, %v91, 0
    %v1896 = vsel %vm145, %v92, 0
    %v1899 = vsel %vm145, %v93, 0
    %v1902 = vsel %vm145, %v94, 0
    %v1905 = vsel %vm145, %v95, 0
    %v1908 = vsel %vm145, %v96, 0
    %v1911 = vsel %vm145, %v97, 0
    %v1914 = vsel %vm145, %v98, 0
    %v1917 = vsel %vm145, %v99, 0
    %v1920 = vsel %vm145, %v100, 0
    %v1923 = vsel %vm145, %v101, 0
    %v1926 = vsel %vm145, %v102, 0
    %1928 = vmatprep.subr.mxu0 0.0
    %1929 = vmatpush1.msra.mxu0 %v1337
    %1930 = vmatprep.subr.mxu0 0.0
    %1931 = vmatpush1.msra.mxu0 %v1338
    %1932 = vmatprep.subr.mxu0 0.0
    %1933 = vmatpush1.msra.mxu0 %v1339
    %1934 = vmatprep.subr.mxu0 0.0
    %1935 = vmatpush1.msra.mxu0 %v1340
    %1936 = vmatprep.subr.mxu0 0.0
    %1937 = vmatpush1.msra.mxu0 0.0
    %1938 = vmatprep.subr.mxu0 0.0
    %1939 = vmatpush1.msra.mxu0 0.0
    %1940 = vmatprep.subr.mxu0 0.0
    %1941 = vmatpush1.msra.mxu0 0.0
    %1942 = vmatprep.subr.mxu0 0.0
    %1943 = vmatpush1.msra.mxu0 0.0
    %1944 = vmatprep.subr.mxu0 0.0
    %1945 = vmatpush1.msra.mxu0 0.0
    %1946 = vmatprep.subr.mxu0 0.0
    %1947 = vmatpush1.msra.mxu0 0.0
    %1948 = vmatprep.subr.mxu0 0.0
    %1949 = vmatpush1.msra.mxu0 0.0
    %1950 = vmatprep.subr.mxu0 0.0
    %1951 = vmatpush1.msra.mxu0 0.0
    %1952 = vmatprep.subr.mxu0 0.0
    %1953 = vmatpush1.msra.mxu0 0.0
    %1954 = vmatprep.subr.mxu0 0.0
    %1955 = vmatpush1.msra.mxu0 0.0
    %1956 = vmatprep.subr.mxu0 0.0
    %1957 = vmatpush1.msra.mxu0 0.0
    %1958 = vmatprep.subr.mxu0 0.0
    %1959 = vmatpush1.msra.mxu0 0.0
    %1960 = vmatprep.subr.mxu0 0.0
    %1961 = vmatpush1.msra.mxu0 0.0
    %1962 = vmatprep.subr.mxu0 0.0
    %1963 = vmatpush1.msra.mxu0 0.0
    %1964 = vmatprep.subr.mxu0 0.0
    %1965 = vmatpush1.msra.mxu0 0.0
    %1966 = vmatprep.subr.mxu0 0.0
    %1967 = vmatpush1.msra.mxu0 0.0
    %1968 = vmatprep.subr.mxu0 0.0
    %1969 = vmatpush1.msra.mxu0 0.0
    %1970 = vmatprep.subr.mxu0 0.0
    %1971 = vmatpush1.msra.mxu0 0.0
    %1972 = vmatprep.subr.mxu0 0.0
    %1973 = vmatpush1.msra.mxu0 0.0
    %1974 = vmatprep.subr.mxu0 0.0
    %1975 = vmatpush1.msra.mxu0 0.0
    %1976 = vmatprep.subr.mxu0 0.0
    %1977 = vmatpush1.msra.mxu0 0.0
    %1978 = vmatprep.subr.mxu0 0.0
    %1979 = vmatpush1.msra.mxu0 0.0
    %1980 = vmatprep.subr.mxu0 0.0
    %1981 = vmatpush1.msra.mxu0 0.0
    %1982 = vmatprep.subr.mxu0 0.0
    %1983 = vmatpush1.msra.mxu0 0.0
    %1984 = vmatprep.subr.mxu0 0.0
    %1985 = vmatpush1.msra.mxu0 0.0
    %1986 = vmatprep.subr.mxu0 0.0
    %1987 = vmatpush1.msra.mxu0 0.0
    %1988 = vmatprep.subr.mxu0 0.0
    %1989 = vmatpush1.msra.mxu0 0.0
    %1990 = vmatprep.subr.mxu0 0.0
    %1991 = vmatpush1.msra.mxu0 0.0
    %1992 = vmatprep.mubr.f32.mxu0 0.0
    %1993 = vmatmul.mubr.f32.gmra.mrb[0].mxu0 %v1857
    %v1994 = vpop.f32.mrb[0].mxu0
    %v1995 = vadd.f32 0.0, %v1994
    %v1996 = vpop.f32.mrb[0].mxu0
    %1997 = vmatprep.mubr.f32.mxu0 0.0
    %1998 = vmatmul.mubr.f32.gmra.mrb[0].mxu0 %v1860
    %v1999 = vpop.f32.mrb[0].mxu0
    %v2000 = vadd.f32 0.0, %v1999
    %v2001 = vpop.f32.mrb[0].mxu0
    %2002 = vmatprep.mubr.f32.mxu0 0.0
    %2003 = vmatmul.mubr.f32.gmra.mrb[0].mxu0 %v1863
    %v2004 = vpop.f32.mrb[0].mxu0
    %v2005 = vadd.f32 0.0, %v2004
    %v2006 = vpop.f32.mrb[0].mxu0
    %2007 = vmatprep.mubr.f32.mxu0 0.0
    %2008 = vmatmul.mubr.f32.gmra.mrb[0].mxu0 %v1866
    %v2009 = vpop.f32.mrb[0].mxu0
    %v2010 = vadd.f32 0.0, %v2009
    %v2011 = vpop.f32.mrb[0].mxu0
    %2012 = vmatprep.mubr.f32.mxu0 0.0
    %2013 = vmatmul.mubr.f32.gmra.mrb[0].mxu0 %v1869
    %v2014 = vpop.f32.mrb[0].mxu0
    %v2015 = vadd.f32 0.0, %v2014
    %v2016 = vpop.f32.mrb[0].mxu0
    %2017 = vmatprep.mubr.f32.mxu0 0.0
    %2018 = vmatmul.mubr.f32.gmra.mrb[0].mxu0 %v1872
    %v2019 = vpop.f32.mrb[0].mxu0
    %v2020 = vadd.f32 0.0, %v2019
    %v2021 = vpop.f32.mrb[0].mxu0
    %2022 = vmatprep.mubr.f32.mxu0 0.0
    %2023 = vmatmul.mubr.f32.gmra.mrb[0].mxu0 %v1875
    %v2024 = vpop.f32.mrb[0].mxu0
    %v2025 = vadd.f32 0.0, %v2024
    %v2026 = vpop.f32.mrb[0].mxu0
    %2027 = vmatprep.mubr.f32.mxu0 0.0
    %2028 = vmatmul.mubr.f32.gmra.mrb[0].mxu0 %v1878
    %v2029 = vpop.f32.mrb[0].mxu0
    %v2030 = vadd.f32 0.0, %v2029
    %v2031 = vpop.f32.mrb[0].mxu0
    %2032 = vmatprep.mubr.f32.mxu0 0.0
    %2033 = vmatmul.mubr.f32.gmra.mrb[0].mxu0 %v1881
    %v2034 = vpop.f32.mrb[0].mxu0
    %v2035 = vadd.f32 0.0, %v2034
    %v2036 = vpop.f32.mrb[0].mxu0
    %2037 = vmatprep.mubr.f32.mxu0 0.0
    %2038 = vmatmul.mubr.f32.gmra.mrb[0].mxu0 %v1884
    %v2039 = vpop.f32.mrb[0].mxu0
    %v2040 = vadd.f32 0.0, %v2039
    %v2041 = vpop.f32.mrb[0].mxu0
    %2042 = vmatprep.mubr.f32.mxu0 0.0
    %2043 = vmatmul.mubr.f32.gmra.mrb[0].mxu0 %v1887
    %v2044 = vpop.f32.mrb[0].mxu0
    %v2045 = vadd.f32 0.0, %v2044
    %v2046 = vpop.f32.mrb[0].mxu0
    %2047 = vmatprep.mubr.f32.mxu0 0.0
    %2048 = vmatmul.mubr.f32.gmra.mrb[0].mxu0 %v1890
    %v2049 = vpop.f32.mrb[0].mxu0
    %v2050 = vadd.f32 0.0, %v2049
    %v2051 = vpop.f32.mrb[0].mxu0
    %2052 = vmatprep.mubr.f32.mxu0 0.0
    %2053 = vmatmul.mubr.f32.gmra.mrb[0].mxu0 %v1893
    %v2054 = vpop.f32.mrb[0].mxu0
    %v2055 = vadd.f32 0.0, %v2054
    %v2056 = vpop.f32.mrb[0].mxu0
    %2057 = vmatprep.mubr.f32.mxu0 0.0
    %2058 = vmatmul.mubr.f32.gmra.mrb[0].mxu0 %v1896
    %v2059 = vpop.f32.mrb[0].mxu0
    %v2060 = vadd.f32 0.0, %v2059
    %v2061 = vpop.f32.mrb[0].mxu0
    %2062 = vmatprep.mubr.f32.mxu0 0.0
    %2063 = vmatmul.mubr.f32.gmra.mrb[0].mxu0 %v1899
    %v2064 = vpop.f32.mrb[0].mxu0
    %v2065 = vadd.f32 0.0, %v2064
    %v2066 = vpop.f32.mrb[0].mxu0
    %2067 = vmatprep.mubr.f32.mxu0 0.0
    %2068 = vmatmul.mubr.f32.gmra.mrb[0].mxu0 %v1902
    %v2069 = vpop.f32.mrb[0].mxu0
    %v2070 = vadd.f32 0.0, %v2069
    %v2071 = vpop.f32.mrb[0].mxu0
    %2072 = vmatprep.mubr.f32.mxu0 0.0
    %2073 = vmatmul.mubr.f32.gmra.mrb[0].mxu0 %v1905
    %v2074 = vpop.f32.mrb[0].mxu0
    %v2075 = vadd.f32 0.0, %v2074
    %v2076 = vpop.f32.mrb[0].mxu0
    %2077 = vmatprep.mubr.f32.mxu0 0.0
    %2078 = vmatmul.mubr.f32.gmra.mrb[0].mxu0 %v1908
    %v2079 = vpop.f32.mrb[0].mxu0
    %v2080 = vadd.f32 0.0, %v2079
    %v2081 = vpop.f32.mrb[0].mxu0
    %2082 = vmatprep.mubr.f32.mxu0 0.0
    %2083 = vmatmul.mubr.f32.gmra.mrb[0].mxu0 %v1911
    %v2084 = vpop.f32.mrb[0].mxu0
    %v2085 = vadd.f32 0.0, %v2084
    %v2086 = vpop.f32.mrb[0].mxu0
    %2087 = vmatprep.mubr.f32.mxu0 0.0
    %2088 = vmatmul.mubr.f32.gmra.mrb[0].mxu0 %v1914
    %v2089 = vpop.f32.mrb[0].mxu0
    %v2090 = vadd.f32 0.0, %v2089
    %v2091 = vpop.f32.mrb[0].mxu0
    %2092 = vmatprep.mubr.f32.mxu0 0.0
    %2093 = vmatmul.mubr.f32.gmra.mrb[0].mxu0 %v1917
    %v2094 = vpop.f32.mrb[0].mxu0
    %v2095 = vadd.f32 0.0, %v2094
    %v2096 = vpop.f32.mrb[0].mxu0
    %2097 = vmatprep.mubr.f32.mxu0 0.0
    %2098 = vmatmul.mubr.f32.gmra.mrb[0].mxu0 %v1920
    %v2099 = vpop.f32.mrb[0].mxu0
    %v2100 = vadd.f32 0.0, %v2099
    %v2101 = vpop.f32.mrb[0].mxu0
    %2102 = vmatprep.mubr.f32.mxu0 0.0
    %2103 = vmatmul.mubr.f32.gmra.mrb[0].mxu0 %v1923
    %v2104 = vpop.f32.mrb[0].mxu0
    %v2105 = vadd.f32 0.0, %v2104
    %v2106 = vpop.f32.mrb[0].mxu0
    %2107 = vmatprep.mubr.f32.mxu0 0.0
    %2108 = vmatmul.mubr.f32.gmra.mrb[0].mxu0 %v1926
    %v2109 = vpop.f32.mrb[0].mxu0
    %v2110 = vadd.f32 0.0, %v2109
    %v2111 = vpop.f32.mrb[0].mxu0
    %2112 = vdwg.mxu0
    %2113 = vmatprep.subr.mxu0 0.0
    %2114 = vmatpush1.msra.mxu0 %v1844
    %2115 = vmatprep.subr.mxu0 0.0
    %2116 = vmatpush1.msra.mxu0 %v1845
    %2117 = vmatprep.subr.mxu0 0.0
    %2118 = vmatpush1.msra.mxu0 %v1846
    %2119 = vmatprep.subr.mxu0 0.0
    %2120 = vmatpush1.msra.mxu0 %v1847
    %2121 = vmatprep.subr.mxu0 0.0
    %2122 = vmatpush1.msra.mxu0 0.0
    %2123 = vmatprep.subr.mxu0 0.0
    %2124 = vmatpush1.msra.mxu0 0.0
    %2125 = vmatprep.subr.mxu0 0.0
    %2126 = vmatpush1.msra.mxu0 0.0
    %2127 = vmatprep.subr.mxu0 0.0
    %2128 = vmatpush1.msra.mxu0 0.0
    %2129 = vmatprep.subr.mxu0 0.0
    %2130 = vmatpush1.msra.mxu0 0.0
    %2131 = vmatprep.subr.mxu0 0.0
    %2132 = vmatpush1.msra.mxu0 0.0
    %2133 = vmatprep.subr.mxu0 0.0
    %2134 = vmatpush1.msra.mxu0 0.0
    %2135 = vmatprep.subr.mxu0 0.0
    %2136 = vmatpush1.msra.mxu0 0.0
    %2137 = vmatprep.subr.mxu0 0.0
    %2138 = vmatpush1.msra.mxu0 0.0
    %2139 = vmatprep.subr.mxu0 0.0
    %2140 = vmatpush1.msra.mxu0 0.0
    %2141 = vmatprep.subr.mxu0 0.0
    %2142 = vmatpush1.msra.mxu0 0.0
    %2143 = vmatprep.subr.mxu0 0.0
    %2144 = vmatpush1.msra.mxu0 0.0
    %2145 = vmatprep.subr.mxu0 0.0
    %2146 = vmatpush1.msra.mxu0 0.0
    %2147 = vmatprep.subr.mxu0 0.0
    %2148 = vmatpush1.msra.mxu0 0.0
    %2149 = vmatprep.subr.mxu0 0.0
    %2150 = vmatpush1.msra.mxu0 0.0
    %2151 = vmatprep.subr.mxu0 0.0
    %2152 = vmatpush1.msra.mxu0 0.0
    %2153 = vmatprep.subr.mxu0 0.0
    %2154 = vmatpush1.msra.mxu0 0.0
    %2155 = vmatprep.subr.mxu0 0.0
    %2156 = vmatpush1.msra.mxu0 0.0
    %2157 = vmatprep.subr.mxu0 0.0
    %2158 = vmatpush1.msra.mxu0 0.0
    %2159 = vmatprep.subr.mxu0 0.0
    %2160 = vmatpush1.msra.mxu0 0.0
    %2161 = vmatprep.subr.mxu0 0.0
    %2162 = vmatpush1.msra.mxu0 0.0
    %2163 = vmatprep.subr.mxu0 0.0
    %2164 = vmatpush1.msra.mxu0 0.0
    %2165 = vmatprep.subr.mxu0 0.0
    %2166 = vmatpush1.msra.mxu0 0.0
    %2167 = vmatprep.subr.mxu0 0.0
    %2168 = vmatpush1.msra.mxu0 0.0
    %2169 = vmatprep.subr.mxu0 0.0
    %2170 = vmatpush1.msra.mxu0 0.0
    %2171 = vmatprep.subr.mxu0 0.0
    %2172 = vmatpush1.msra.mxu0 0.0
    %2173 = vmatprep.subr.mxu0 0.0
    %2174 = vmatpush1.msra.mxu0 0.0
    %2175 = vmatprep.subr.mxu0 0.0
    %2176 = vmatpush1.msra.mxu0 0.0
    %2177 = vmatprep.mubr.f32.mxu0 0.0
    %2178 = vmatmul.mubr.f32.gmra.mrb[0].mxu0 %v1857
    %v2179 = vpop.f32.mrb[0].mxu0
    %v2180 = vadd.f32 0.0, %v2179
    %v2181 = vpop.f32.mrb[0].mxu0
    %2182 = vmatprep.mubr.f32.mxu0 0.0
    %2183 = vmatmul.mubr.f32.gmra.mrb[0].mxu0 %v1860
    %v2184 = vpop.f32.mrb[0].mxu0
    %v2185 = vadd.f32 0.0, %v2184
    %v2186 = vpop.f32.mrb[0].mxu0
    %2187 = vmatprep.mubr.f32.mxu0 0.0
    %2188 = vmatmul.mubr.f32.gmra.mrb[0].mxu0 %v1863
    %v2189 = vpop.f32.mrb[0].mxu0
    %v2190 = vadd.f32 0.0, %v2189
    %v2191 = vpop.f32.mrb[0].mxu0
    %2192 = vmatprep.mubr.f32.mxu0 0.0
    %2193 = vmatmul.mubr.f32.gmra.mrb[0].mxu0 %v1866
    %v2194 = vpop.f32.mrb[0].mxu0
    %v2195 = vadd.f32 0.0, %v2194
    %v2196 = vpop.f32.mrb[0].mxu0
    %2197 = vmatprep.mubr.f32.mxu0 0.0
    %2198 = vmatmul.mubr.f32.gmra.mrb[0].mxu0 %v1869
    %v2199 = vpop.f32.mrb[0].mxu0
    %v2200 = vadd.f32 0.0, %v2199
    %v2201 = vpop.f32.mrb[0].mxu0
    %2202 = vmatprep.mubr.f32.mxu0 0.0
    %2203 = vmatmul.mubr.f32.gmra.mrb[0].mxu0 %v1872
    %v2204 = vpop.f32.mrb[0].mxu0
    %v2205 = vadd.f32 0.0, %v2204
    %v2206 = vpop.f32.mrb[0].mxu0
    %2207 = vmatprep.mubr.f32.mxu0 0.0
    %2208 = vmatmul.mubr.f32.gmra.mrb[0].mxu0 %v1875
    %v2209 = vpop.f32.mrb[0].mxu0
    %v2210 = vadd.f32 0.0, %v2209
    %v2211 = vpop.f32.mrb[0].mxu0
    %2212 = vmatprep.mubr.f32.mxu0 0.0
    %2213 = vmatmul.mubr.f32.gmra.mrb[0].mxu0 %v1878
    %v2214 = vpop.f32.mrb[0].mxu0
    %v2215 = vadd.f32 0.0, %v2214
    %v2216 = vpop.f32.mrb[0].mxu0
    %2217 = vmatprep.mubr.f32.mxu0 0.0
    %2218 = vmatmul.mubr.f32.gmra.mrb[0].mxu0 %v1881
    %v2219 = vpop.f32.mrb[0].mxu0
    %v2220 = vadd.f32 0.0, %v2219
    %v2221 = vpop.f32.mrb[0].mxu0
    %2222 = vmatprep.mubr.f32.mxu0 0.0
    %2223 = vmatmul.mubr.f32.gmra.mrb[0].mxu0 %v1884
    %v2224 = vpop.f32.mrb[0].mxu0
    %v2225 = vadd.f32 0.0, %v2224
    %v2226 = vpop.f32.mrb[0].mxu0
    %2227 = vmatprep.mubr.f32.mxu0 0.0
    %2228 = vmatmul.mubr.f32.gmra.mrb[0].mxu0 %v1887
    %v2229 = vpop.f32.mrb[0].mxu0
    %v2230 = vadd.f32 0.0, %v2229
    %v2231 = vpop.f32.mrb[0].mxu0
    %2232 = vmatprep.mubr.f32.mxu0 0.0
    %2233 = vmatmul.mubr.f32.gmra.mrb[0].mxu0 %v1890
    %v2234 = vpop.f32.mrb[0].mxu0
    %v2235 = vadd.f32 0.0, %v2234
    %v2236 = vpop.f32.mrb[0].mxu0
    %2237 = vmatprep.mubr.f32.mxu0 0.0
    %2238 = vmatmul.mubr.f32.gmra.mrb[0].mxu0 %v1893
    %v2239 = vpop.f32.mrb[0].mxu0
    %v2240 = vadd.f32 0.0, %v2239
    %v2241 = vpop.f32.mrb[0].mxu0
    %2242 = vmatprep.mubr.f32.mxu0 0.0
    %2243 = vmatmul.mubr.f32.gmra.mrb[0].mxu0 %v1896
    %v2244 = vpop.f32.mrb[0].mxu0
    %v2245 = vadd.f32 0.0, %v2244
    %v2246 = vpop.f32.mrb[0].mxu0
    %2247 = vmatprep.mubr.f32.mxu0 0.0
    %2248 = vmatmul.mubr.f32.gmra.mrb[0].mxu0 %v1899
    %v2249 = vpop.f32.mrb[0].mxu0
    %v2250 = vadd.f32 0.0, %v2249
    %v2251 = vpop.f32.mrb[0].mxu0
    %2252 = vmatprep.mubr.f32.mxu0 0.0
    %2253 = vmatmul.mubr.f32.gmra.mrb[0].mxu0 %v1902
    %v2254 = vpop.f32.mrb[0].mxu0
    %v2255 = vadd.f32 0.0, %v2254
    %v2256 = vpop.f32.mrb[0].mxu0
    %2257 = vmatprep.mubr.f32.mxu0 0.0
    %2258 = vmatmul.mubr.f32.gmra.mrb[0].mxu0 %v1905
    %v2259 = vpop.f32.mrb[0].mxu0
    %v2260 = vadd.f32 0.0, %v2259
    %v2261 = vpop.f32.mrb[0].mxu0
    %2262 = vmatprep.mubr.f32.mxu0 0.0
    %2263 = vmatmul.mubr.f32.gmra.mrb[0].mxu0 %v1908
    %v2264 = vpop.f32.mrb[0].mxu0
    %v2265 = vadd.f32 0.0, %v2264
    %v2266 = vpop.f32.mrb[0].mxu0
    %2267 = vmatprep.mubr.f32.mxu0 0.0
    %2268 = vmatmul.mubr.f32.gmra.mrb[0].mxu0 %v1911
    %v2269 = vpop.f32.mrb[0].mxu0
    %v2270 = vadd.f32 0.0, %v2269
    %v2271 = vpop.f32.mrb[0].mxu0
    %2272 = vmatprep.mubr.f32.mxu0 0.0
    %2273 = vmatmul.mubr.f32.gmra.mrb[0].mxu0 %v1914
    %v2274 = vpop.f32.mrb[0].mxu0
    %v2275 = vadd.f32 0.0, %v2274
    %v2276 = vpop.f32.mrb[0].mxu0
    %2277 = vmatprep.mubr.f32.mxu0 0.0
    %2278 = vmatmul.mubr.f32.gmra.mrb[0].mxu0 %v1917
    %v2279 = vpop.f32.mrb[0].mxu0
    %v2280 = vadd.f32 0.0, %v2279
    %v2281 = vpop.f32.mrb[0].mxu0
    %2282 = vmatprep.mubr.f32.mxu0 0.0
    %2283 = vmatmul.mubr.f32.gmra.mrb[0].mxu0 %v1920
    %v2284 = vpop.f32.mrb[0].mxu0
    %v2285 = vadd.f32 0.0, %v2284
    %v2286 = vpop.f32.mrb[0].mxu0
    %2287 = vmatprep.mubr.f32.mxu0 0.0
    %2288 = vmatmul.mubr.f32.gmra.mrb[0].mxu0 %v1923
    %v2289 = vpop.f32.mrb[0].mxu0
    %v2290 = vadd.f32 0.0, %v2289
    %v2291 = vpop.f32.mrb[0].mxu0
    %2292 = vmatprep.mubr.f32.mxu0 0.0
    %2293 = vmatmul.mubr.f32.gmra.mrb[0].mxu0 %v1926
    %v2294 = vpop.f32.mrb[0].mxu0
    %v2295 = vadd.f32 0.0, %v2294
    %v2296 = vpop.f32.mrb[0].mxu0
    %2297 = vdwg.mxu0
    %v2298 = vsub.f32 %v1995, %v2020
    %v2299 = vsub.f32 %v2000, %v2025
    %v2300 = vsub.f32 %v2005, %v2030
    %v2301 = vsub.f32 %v2010, %v2035
    %v2302 = vsub.f32 %v2015, %v2040
    %v2303 = vmul.f32 %v2298, %v2298
    %v2304 = vmul.f32 %v2299, %v2299
    %v2305 = vmul.f32 %v2300, %v2300
    %v2306 = vmul.f32 %v2301, %v2301
    %v2307 = vmul.f32 %v2302, %v2302
    %v2308 = vsel %vm452, %v2303, 0.0
    %2309 = vadd.xlane.f32.xlu0 %v2308
    %v2310 = vpop.xlane.xlu0 %2309
    %v2311 = vsel %vm452, %v2304, 0.0
    %2312 = vadd.xlane.f32.xlu0 %v2311
    %v2313 = vpop.xlane.xlu0 %2312
    %v2314 = vsel %vm452, %v2305, 0.0
    %2315 = vadd.xlane.f32.xlu0 %v2314
    %v2316 = vpop.xlane.xlu0 %2315
    %v2317 = vsel %vm452, %v2306, 0.0
    %2318 = vadd.xlane.f32.xlu0 %v2317
    %v2319 = vpop.xlane.xlu0 %2318
    %v2320 = vsel %vm452, %v2307, 0.0
    %2321 = vadd.xlane.f32.xlu0 %v2320
    %v2322 = vpop.xlane.xlu0 %2321
    %v2323 = vsub.f32 %v2180, %v2205
    %v2324 = vsub.f32 %v2185, %v2210
    %v2325 = vsub.f32 %v2190, %v2215
    %v2326 = vsub.f32 %v2195, %v2220
    %v2327 = vsub.f32 %v2200, %v2225
    %v2328 = vmul.f32 %v2323, %v2323
    %v2329 = vmul.f32 %v2324, %v2324
    %v2330 = vmul.f32 %v2325, %v2325
    %v2331 = vmul.f32 %v2326, %v2326
    %v2332 = vmul.f32 %v2327, %v2327
    %v2333 = vsel %vm452, %v2328, 0.0
    %2334 = vadd.xlane.f32.xlu0 %v2333
    %v2335 = vpop.xlane.xlu0 %2334
    %v2336 = vsel %vm452, %v2329, 0.0
    %2337 = vadd.xlane.f32.xlu0 %v2336
    %v2338 = vpop.xlane.xlu0 %2337
    %v2339 = vsel %vm452, %v2330, 0.0
    %2340 = vadd.xlane.f32.xlu0 %v2339
    %v2341 = vpop.xlane.xlu0 %2340
    %v2342 = vsel %vm452, %v2331, 0.0
    %2343 = vadd.xlane.f32.xlu0 %v2342
    %v2344 = vpop.xlane.xlu0 %2343
    %v2345 = vsel %vm452, %v2332, 0.0
    %2346 = vadd.xlane.f32.xlu0 %v2345
    %v2347 = vpop.xlane.xlu0 %2346
    %v2348 = vadd.f32 %v2310, %v2335
    %v2349 = vadd.f32 %v2313, %v2338
    %v2350 = vadd.f32 %v2316, %v2341
    %v2351 = vadd.f32 %v2319, %v2344
    %v2352 = vadd.f32 %v2322, %v2347
    %v2353 = vsub.f32 %v1995, %v2045
    %v2354 = vsub.f32 %v2000, %v2050
    %v2355 = vsub.f32 %v2005, %v2055
    %v2356 = vsub.f32 %v2010, %v2060
    %v2357 = vsub.f32 %v2015, %v2065
    %v2358 = vmul.f32 %v2353, %v2353
    %v2359 = vmul.f32 %v2354, %v2354
    %v2360 = vmul.f32 %v2355, %v2355
    %v2361 = vmul.f32 %v2356, %v2356
    %v2362 = vmul.f32 %v2357, %v2357
    %v2363 = vsel %vm452, %v2358, 0.0
    %2364 = vadd.xlane.f32.xlu0 %v2363
    %v2365 = vpop.xlane.xlu0 %2364
    %v2366 = vsel %vm452, %v2359, 0.0
    %2367 = vadd.xlane.f32.xlu0 %v2366
    %v2368 = vpop.xlane.xlu0 %2367
    %v2369 = vsel %vm452, %v2360, 0.0
    %2370 = vadd.xlane.f32.xlu0 %v2369
    %v2371 = vpop.xlane.xlu0 %2370
    %v2372 = vsel %vm452, %v2361, 0.0
    %2373 = vadd.xlane.f32.xlu0 %v2372
    %v2374 = vpop.xlane.xlu0 %2373
    %v2375 = vsel %vm452, %v2362, 0.0
    %2376 = vadd.xlane.f32.xlu0 %v2375
    %v2377 = vpop.xlane.xlu0 %2376
    %v2378 = vsub.f32 %v2180, %v2230
    %v2379 = vsub.f32 %v2185, %v2235
    %v2380 = vsub.f32 %v2190, %v2240
    %v2381 = vsub.f32 %v2195, %v2245
    %v2382 = vsub.f32 %v2200, %v2250
    %v2383 = vmul.f32 %v2378, %v2378
    %v2384 = vmul.f32 %v2379, %v2379
    %v2385 = vmul.f32 %v2380, %v2380
    %v2386 = vmul.f32 %v2381, %v2381
    %v2387 = vmul.f32 %v2382, %v2382
    %v2388 = vsel %vm452, %v2383, 0.0
    %2389 = vadd.xlane.f32.xlu0 %v2388
    %v2390 = vpop.xlane.xlu0 %2389
    %v2391 = vsel %vm452, %v2384, 0.0
    %2392 = vadd.xlane.f32.xlu0 %v2391
    %v2393 = vpop.xlane.xlu0 %2392
    %v2394 = vsel %vm452, %v2385, 0.0
    %2395 = vadd.xlane.f32.xlu0 %v2394
    %v2396 = vpop.xlane.xlu0 %2395
    %v2397 = vsel %vm452, %v2386, 0.0
    %2398 = vadd.xlane.f32.xlu0 %v2397
    %v2399 = vpop.xlane.xlu0 %2398
    %v2400 = vsel %vm452, %v2387, 0.0
    %2401 = vadd.xlane.f32.xlu0 %v2400
    %v2402 = vpop.xlane.xlu0 %2401
    %v2403 = vadd.f32 %v2365, %v2390
    %v2404 = vadd.f32 %v2368, %v2393
    %v2405 = vadd.f32 %v2371, %v2396
    %v2406 = vadd.f32 %v2374, %v2399
    %v2407 = vadd.f32 %v2377, %v2402
    %v2408 = vsub.f32 %v2348, %v2403
    %v2409 = vsub.f32 %v2349, %v2404
    %v2410 = vsub.f32 %v2350, %v2405
    %v2411 = vsub.f32 %v2351, %v2406
    %v2412 = vsub.f32 %v2352, %v2407
    %v2413 = vmax.f32 %v2408, 0.0
    %v2414 = vmax.f32 %v2409, 0.0
    %v2415 = vmax.f32 %v2410, 0.0
    %v2416 = vmax.f32 %v2411, 0.0
    %v2417 = vmax.f32 %v2412, 0.0
    %vm2418 = vcmask 7168
    %v2419 = vsel %vm2418, %v2413, 0.0
    %v2420 = vsel %vm2418, %v2414, 0.0
    %v2421 = vadd.f32 %v2419, %v2420
    %v2422 = vsel %vm2418, %v2415, 0.0
    %v2423 = vadd.f32 %v2421, %v2422
    %v2424 = vsel %vm2418, %v2416, 0.0
    %v2425 = vadd.f32 %v2423, %v2424
    %v2426 = vsel %vm2418, %v2417, 0.0
    %v2427 = vadd.f32 %v2425, %v2426
    %2428 = vadd.xlane.f32.xlu0 %v2427
    %v2429 = vpop.xlane.xlu0 %2428
    %v2430 = vrot.slane %v2429, 4
    %v2431 = vadd.f32 %v2429, %v2430
    %v2432 = vrot.slane %v2431, 2
    %v2433 = vadd.f32 %v2431, %v2432
    %v2434 = vrot.slane %v2433, 1
    %v2435 = vadd.f32 %v2433, %v2434
    %s2436 = vtos %v2435
    %v2437 = vrcp.pop 40.0
    %s2438 = vtos %v2437
    %s2439 = smul.f32 %s2436, %s2438
    %v2440 = vsub.f32 %v2070, %v2085
    %v2441 = vsub.f32 %v2075, %v2090
    %v2442 = vsub.f32 %v2080, %v2095
    %v2443 = vmul.f32 %v2440, %v2440
    %v2444 = vmul.f32 %v2441, %v2441
    %v2445 = vmul.f32 %v2442, %v2442
    %v2446 = vsel %vm452, %v2443, 0.0
    %2447 = vadd.xlane.f32.xlu0 %v2446
    %v2448 = vpop.xlane.xlu0 %2447
    %v2449 = vsel %vm452, %v2444, 0.0
    %2450 = vadd.xlane.f32.xlu0 %v2449
    %v2451 = vpop.xlane.xlu0 %2450
    %v2452 = vsel %vm452, %v2445, 0.0
    %2453 = vadd.xlane.f32.xlu0 %v2452
    %v2454 = vpop.xlane.xlu0 %2453
    %v2455 = vsub.f32 %v2255, %v2270
    %v2456 = vsub.f32 %v2260, %v2275
    %v2457 = vsub.f32 %v2265, %v2280
    %v2458 = vmul.f32 %v2455, %v2455
    %v2459 = vmul.f32 %v2456, %v2456
    %v2460 = vmul.f32 %v2457, %v2457
    %v2461 = vsel %vm452, %v2458, 0.0
    %2462 = vadd.xlane.f32.xlu0 %v2461
    %v2463 = vpop.xlane.xlu0 %2462
    %v2464 = vsel %vm452, %v2459, 0.0
    %2465 = vadd.xlane.f32.xlu0 %v2464
    %v2466 = vpop.xlane.xlu0 %2465
    %v2467 = vsel %vm452, %v2460, 0.0
    %2468 = vadd.xlane.f32.xlu0 %v2467
    %v2469 = vpop.xlane.xlu0 %2468
    %v2470 = vadd.f32 %v2448, %v2463
    %v2471 = vadd.f32 %v2451, %v2466
    %v2472 = vadd.f32 %v2454, %v2469
    %v2473 = vsub.f32 %v2070, %v2100
    %v2474 = vsub.f32 %v2075, %v2105
    %v2475 = vsub.f32 %v2080, %v2110
    %v2476 = vmul.f32 %v2473, %v2473
    %v2477 = vmul.f32 %v2474, %v2474
    %v2478 = vmul.f32 %v2475, %v2475
    %v2479 = vsel %vm452, %v2476, 0.0
    %2480 = vadd.xlane.f32.xlu0 %v2479
    %v2481 = vpop.xlane.xlu0 %2480
    %v2482 = vsel %vm452, %v2477, 0.0
    %2483 = vadd.xlane.f32.xlu0 %v2482
    %v2484 = vpop.xlane.xlu0 %2483
    %v2485 = vsel %vm452, %v2478, 0.0
    %2486 = vadd.xlane.f32.xlu0 %v2485
    %v2487 = vpop.xlane.xlu0 %2486
    %v2488 = vsub.f32 %v2255, %v2285
    %v2489 = vsub.f32 %v2260, %v2290
    %v2490 = vsub.f32 %v2265, %v2295
    %v2491 = vmul.f32 %v2488, %v2488
    %v2492 = vmul.f32 %v2489, %v2489
    %v2493 = vmul.f32 %v2490, %v2490
    %v2494 = vsel %vm452, %v2491, 0.0
    %2495 = vadd.xlane.f32.xlu0 %v2494
    %v2496 = vpop.xlane.xlu0 %2495
    %v2497 = vsel %vm452, %v2492, 0.0
    %2498 = vadd.xlane.f32.xlu0 %v2497
    %v2499 = vpop.xlane.xlu0 %2498
    %v2500 = vsel %vm452, %v2493, 0.0
    %2501 = vadd.xlane.f32.xlu0 %v2500
    %v2502 = vpop.xlane.xlu0 %2501
    %v2503 = vadd.f32 %v2481, %v2496
    %v2504 = vadd.f32 %v2484, %v2499
    %v2505 = vadd.f32 %v2487, %v2502
    %v2506 = vsub.f32 %v2503, %v2470
    %v2507 = vsub.f32 %v2504, %v2471
    %v2508 = vsub.f32 %v2505, %v2472
    %v2509 = vmax.f32 %v2506, 0.0
    %v2510 = vmax.f32 %v2507, 0.0
    %v2511 = vmax.f32 %v2508, 0.0
    %v2512 = vsel %vm2418, %v2509, 0.0
    %v2513 = vsel %vm2418, %v2510, 0.0
    %v2514 = vadd.f32 %v2512, %v2513
    %v2515 = vsel %vm2418, %v2511, 0.0
    %v2516 = vadd.f32 %v2514, %v2515
    %2517 = vadd.xlane.f32.xlu0 %v2516
    %v2518 = vpop.xlane.xlu0 %2517
    %v2519 = vrot.slane %v2518, 4
    %v2520 = vadd.f32 %v2518, %v2519
    %v2521 = vrot.slane %v2520, 2
    %v2522 = vadd.f32 %v2520, %v2521
    %v2523 = vrot.slane %v2522, 1
    %v2524 = vadd.f32 %v2522, %v2523
    %s2525 = vtos %v2524
    %v2526 = vrcp.pop 24.0
    %s2527 = vtos %v2526
    %s2528 = smul.f32 %s2525, %s2527
    %v2530 = vsel %vm452, %v2180, 0
    %v2533 = vsel %vm452, %v2185, 0
    %v2536 = vsel %vm452, %v2190, 0
    %v2539 = vsel %vm452, %v2195, 0
    %v2542 = vsel %vm452, %v2200, 0
    %v2545 = vsel %vm452, %v2205, 0
    %v2548 = vsel %vm452, %v2210, 0
    %v2551 = vsel %vm452, %v2215, 0
    %v2554 = vsel %vm452, %v2220, 0
    %v2557 = vsel %vm452, %v2225, 0
    %v2560 = vsel %vm452, %v2230, 0
    %v2563 = vsel %vm452, %v2235, 0
    %v2566 = vsel %vm452, %v2240, 0
    %v2569 = vsel %vm452, %v2245, 0
    %v2572 = vsel %vm452, %v2250, 0
    %v2575 = vsel %vm452, %v2255, 0
    %v2578 = vsel %vm452, %v2260, 0
    %v2581 = vsel %vm452, %v2265, 0
    %v2584 = vsel %vm452, %v2270, 0
    %v2587 = vsel %vm452, %v2275, 0
    %v2590 = vsel %vm452, %v2280, 0
    %v2593 = vsel %vm452, %v2285, 0
    %v2596 = vsel %vm452, %v2290, 0
    %v2599 = vsel %vm452, %v2295, 0
    %2601 = vmatprep.subr.mxu0 0.0
    %2602 = vmatpush1.msra.mxu0 %v73
    %2603 = vmatprep.subr.mxu0 0.0
    %2604 = vmatpush1.msra.mxu0 %v74
    %2605 = vmatprep.subr.mxu0 0.0
    %2606 = vmatpush1.msra.mxu0 0.0
    %2607 = vmatprep.subr.mxu0 0.0
    %2608 = vmatpush1.msra.mxu0 0.0
    %2609 = vmatprep.subr.mxu0 0.0
    %2610 = vmatpush1.msra.mxu0 0.0
    %2611 = vmatprep.subr.mxu0 0.0
    %2612 = vmatpush1.msra.mxu0 0.0
    %2613 = vmatprep.subr.mxu0 0.0
    %2614 = vmatpush1.msra.mxu0 0.0
    %2615 = vmatprep.subr.mxu0 0.0
    %2616 = vmatpush1.msra.mxu0 0.0
    %2617 = vmatprep.subr.mxu0 0.0
    %2618 = vmatpush1.msra.mxu0 0.0
    %2619 = vmatprep.subr.mxu0 0.0
    %2620 = vmatpush1.msra.mxu0 0.0
    %2621 = vmatprep.subr.mxu0 0.0
    %2622 = vmatpush1.msra.mxu0 0.0
    %2623 = vmatprep.subr.mxu0 0.0
    %2624 = vmatpush1.msra.mxu0 0.0
    %2625 = vmatprep.subr.mxu0 0.0
    %2626 = vmatpush1.msra.mxu0 0.0
    %2627 = vmatprep.subr.mxu0 0.0
    %2628 = vmatpush1.msra.mxu0 0.0
    %2629 = vmatprep.subr.mxu0 0.0
    %2630 = vmatpush1.msra.mxu0 0.0
    %2631 = vmatprep.subr.mxu0 0.0
    %2632 = vmatpush1.msra.mxu0 0.0
    %2633 = vmatprep.subr.mxu0 0.0
    %2634 = vmatpush1.msra.mxu0 0.0
    %2635 = vmatprep.subr.mxu0 0.0
    %2636 = vmatpush1.msra.mxu0 0.0
    %2637 = vmatprep.subr.mxu0 0.0
    %2638 = vmatpush1.msra.mxu0 0.0
    %2639 = vmatprep.subr.mxu0 0.0
    %2640 = vmatpush1.msra.mxu0 0.0
    %2641 = vmatprep.subr.mxu0 0.0
    %2642 = vmatpush1.msra.mxu0 0.0
    %2643 = vmatprep.subr.mxu0 0.0
    %2644 = vmatpush1.msra.mxu0 0.0
    %2645 = vmatprep.subr.mxu0 0.0
    %2646 = vmatpush1.msra.mxu0 0.0
    %2647 = vmatprep.subr.mxu0 0.0
    %2648 = vmatpush1.msra.mxu0 0.0
    %2649 = vmatprep.subr.mxu0 0.0
    %2650 = vmatpush1.msra.mxu0 0.0
    %2651 = vmatprep.subr.mxu0 0.0
    %2652 = vmatpush1.msra.mxu0 0.0
    %2653 = vmatprep.subr.mxu0 0.0
    %2654 = vmatpush1.msra.mxu0 0.0
    %2655 = vmatprep.subr.mxu0 0.0
    %2656 = vmatpush1.msra.mxu0 0.0
    %2657 = vmatprep.subr.mxu0 0.0
    %2658 = vmatpush1.msra.mxu0 0.0
    %2659 = vmatprep.subr.mxu0 0.0
    %2660 = vmatpush1.msra.mxu0 0.0
    %2661 = vmatprep.subr.mxu0 0.0
    %2662 = vmatpush1.msra.mxu0 0.0
    %2663 = vmatprep.subr.mxu0 0.0
    %2664 = vmatpush1.msra.mxu0 0.0
    %2665 = vmatprep.mubr.f32.mxu0 0.0
    %2666 = vmatmul.mubr.f32.gmra.mrb[0].mxu0 %v2530
    %v2667 = vpop.f32.mrb[0].mxu0
    %v2668 = vadd.f32 0.0, %v2667
    %v2669 = vpop.f32.mrb[0].mxu0
    %2670 = vmatprep.mubr.f32.mxu0 0.0
    %2671 = vmatmul.mubr.f32.gmra.mrb[0].mxu0 %v2533
    %v2672 = vpop.f32.mrb[0].mxu0
    %v2673 = vadd.f32 0.0, %v2672
    %v2674 = vpop.f32.mrb[0].mxu0
    %2675 = vmatprep.mubr.f32.mxu0 0.0
    %2676 = vmatmul.mubr.f32.gmra.mrb[0].mxu0 %v2536
    %v2677 = vpop.f32.mrb[0].mxu0
    %v2678 = vadd.f32 0.0, %v2677
    %v2679 = vpop.f32.mrb[0].mxu0
    %2680 = vmatprep.mubr.f32.mxu0 0.0
    %2681 = vmatmul.mubr.f32.gmra.mrb[0].mxu0 %v2539
    %v2682 = vpop.f32.mrb[0].mxu0
    %v2683 = vadd.f32 0.0, %v2682
    %v2684 = vpop.f32.mrb[0].mxu0
    %2685 = vmatprep.mubr.f32.mxu0 0.0
    %2686 = vmatmul.mubr.f32.gmra.mrb[0].mxu0 %v2542
    %v2687 = vpop.f32.mrb[0].mxu0
    %v2688 = vadd.f32 0.0, %v2687
    %v2689 = vpop.f32.mrb[0].mxu0
    %2690 = vmatprep.mubr.f32.mxu0 0.0
    %2691 = vmatmul.mubr.f32.gmra.mrb[0].mxu0 %v2545
    %v2692 = vpop.f32.mrb[0].mxu0
    %v2693 = vadd.f32 0.0, %v2692
    %v2694 = vpop.f32.mrb[0].mxu0
    %2695 = vmatprep.mubr.f32.mxu0 0.0
    %2696 = vmatmul.mubr.f32.gmra.mrb[0].mxu0 %v2548
    %v2697 = vpop.f32.mrb[0].mxu0
    %v2698 = vadd.f32 0.0, %v2697
    %v2699 = vpop.f32.mrb[0].mxu0
    %2700 = vmatprep.mubr.f32.mxu0 0.0
    %2701 = vmatmul.mubr.f32.gmra.mrb[0].mxu0 %v2551
    %v2702 = vpop.f32.mrb[0].mxu0
    %v2703 = vadd.f32 0.0, %v2702
    %v2704 = vpop.f32.mrb[0].mxu0
    %2705 = vmatprep.mubr.f32.mxu0 0.0
    %2706 = vmatmul.mubr.f32.gmra.mrb[0].mxu0 %v2554
    %v2707 = vpop.f32.mrb[0].mxu0
    %v2708 = vadd.f32 0.0, %v2707
    %v2709 = vpop.f32.mrb[0].mxu0
    %2710 = vmatprep.mubr.f32.mxu0 0.0
    %2711 = vmatmul.mubr.f32.gmra.mrb[0].mxu0 %v2557
    %v2712 = vpop.f32.mrb[0].mxu0
    %v2713 = vadd.f32 0.0, %v2712
    %v2714 = vpop.f32.mrb[0].mxu0
    %2715 = vmatprep.mubr.f32.mxu0 0.0
    %2716 = vmatmul.mubr.f32.gmra.mrb[0].mxu0 %v2560
    %v2717 = vpop.f32.mrb[0].mxu0
    %v2718 = vpop.f32.mrb[0].mxu0
    %2719 = vmatprep.mubr.f32.mxu0 0.0
    %2720 = vmatmul.mubr.f32.gmra.mrb[0].mxu0 %v2563
    %v2721 = vpop.f32.mrb[0].mxu0
    %v2722 = vpop.f32.mrb[0].mxu0
    %2723 = vmatprep.mubr.f32.mxu0 0.0
    %2724 = vmatmul.mubr.f32.gmra.mrb[0].mxu0 %v2566
    %v2725 = vpop.f32.mrb[0].mxu0
    %v2726 = vpop.f32.mrb[0].mxu0
    %2727 = vmatprep.mubr.f32.mxu0 0.0
    %2728 = vmatmul.mubr.f32.gmra.mrb[0].mxu0 %v2569
    %v2729 = vpop.f32.mrb[0].mxu0
    %v2730 = vpop.f32.mrb[0].mxu0
    %2731 = vmatprep.mubr.f32.mxu0 0.0
    %2732 = vmatmul.mubr.f32.gmra.mrb[0].mxu0 %v2572
    %v2733 = vpop.f32.mrb[0].mxu0
    %v2734 = vpop.f32.mrb[0].mxu0
    %2735 = vmatprep.mubr.f32.mxu0 0.0
    %2736 = vmatmul.mubr.f32.gmra.mrb[0].mxu0 %v2575
    %v2737 = vpop.f32.mrb[0].mxu0
    %v2738 = vadd.f32 0.0, %v2737
    %v2739 = vpop.f32.mrb[0].mxu0
    %2740 = vmatprep.mubr.f32.mxu0 0.0
    %2741 = vmatmul.mubr.f32.gmra.mrb[0].mxu0 %v2578
    %v2742 = vpop.f32.mrb[0].mxu0
    %v2743 = vadd.f32 0.0, %v2742
    %v2744 = vpop.f32.mrb[0].mxu0
    %2745 = vmatprep.mubr.f32.mxu0 0.0
    %2746 = vmatmul.mubr.f32.gmra.mrb[0].mxu0 %v2581
    %v2747 = vpop.f32.mrb[0].mxu0
    %v2748 = vadd.f32 0.0, %v2747
    %v2749 = vpop.f32.mrb[0].mxu0
    %2750 = vmatprep.mubr.f32.mxu0 0.0
    %2751 = vmatmul.mubr.f32.gmra.mrb[0].mxu0 %v2584
    %v2752 = vpop.f32.mrb[0].mxu0
    %v2753 = vadd.f32 0.0, %v2752
    %v2754 = vpop.f32.mrb[0].mxu0
    %2755 = vmatprep.mubr.f32.mxu0 0.0
    %2756 = vmatmul.mubr.f32.gmra.mrb[0].mxu0 %v2587
    %v2757 = vpop.f32.mrb[0].mxu0
    %v2758 = vadd.f32 0.0, %v2757
    %v2759 = vpop.f32.mrb[0].mxu0
    %2760 = vmatprep.mubr.f32.mxu0 0.0
    %2761 = vmatmul.mubr.f32.gmra.mrb[0].mxu0 %v2590
    %v2762 = vpop.f32.mrb[0].mxu0
    %v2763 = vadd.f32 0.0, %v2762
    %v2764 = vpop.f32.mrb[0].mxu0
    %2765 = vmatprep.mubr.f32.mxu0 0.0
    %2766 = vmatmul.mubr.f32.gmra.mrb[0].mxu0 %v2593
    %v2767 = vpop.f32.mrb[0].mxu0
    %v2768 = vpop.f32.mrb[0].mxu0
    %2769 = vmatprep.mubr.f32.mxu0 0.0
    %2770 = vmatmul.mubr.f32.gmra.mrb[0].mxu0 %v2596
    %v2771 = vpop.f32.mrb[0].mxu0
    %v2772 = vpop.f32.mrb[0].mxu0
    %2773 = vmatprep.mubr.f32.mxu0 0.0
    %2774 = vmatmul.mubr.f32.gmra.mrb[0].mxu0 %v2599
    %v2775 = vpop.f32.mrb[0].mxu0
    %v2776 = vpop.f32.mrb[0].mxu0
    %2777 = vdwg.mxu0
    %v2779 = vsel %vm452, %v1995, 0
    %v2782 = vsel %vm452, %v2000, 0
    %v2785 = vsel %vm452, %v2005, 0
    %v2788 = vsel %vm452, %v2010, 0
    %v2791 = vsel %vm452, %v2015, 0
    %v2794 = vsel %vm452, %v2020, 0
    %v2797 = vsel %vm452, %v2025, 0
    %v2800 = vsel %vm452, %v2030, 0
    %v2803 = vsel %vm452, %v2035, 0
    %v2806 = vsel %vm452, %v2040, 0
    %v2809 = vsel %vm452, %v2045, 0
    %v2812 = vsel %vm452, %v2050, 0
    %v2815 = vsel %vm452, %v2055, 0
    %v2818 = vsel %vm452, %v2060, 0
    %v2821 = vsel %vm452, %v2065, 0
    %v2824 = vsel %vm452, %v2070, 0
    %v2827 = vsel %vm452, %v2075, 0
    %v2830 = vsel %vm452, %v2080, 0
    %v2833 = vsel %vm452, %v2085, 0
    %v2836 = vsel %vm452, %v2090, 0
    %v2839 = vsel %vm452, %v2095, 0
    %v2842 = vsel %vm452, %v2100, 0
    %v2845 = vsel %vm452, %v2105, 0
    %v2848 = vsel %vm452, %v2110, 0
    %2850 = vmatprep.subr.mxu0 0.0
    %2851 = vmatpush1.msra.mxu0 %v71
    %2852 = vmatprep.subr.mxu0 0.0
    %2853 = vmatpush1.msra.mxu0 %v72
    %2854 = vmatprep.subr.mxu0 0.0
    %2855 = vmatpush1.msra.mxu0 0.0
    %2856 = vmatprep.subr.mxu0 0.0
    %2857 = vmatpush1.msra.mxu0 0.0
    %2858 = vmatprep.subr.mxu0 0.0
    %2859 = vmatpush1.msra.mxu0 0.0
    %2860 = vmatprep.subr.mxu0 0.0
    %2861 = vmatpush1.msra.mxu0 0.0
    %2862 = vmatprep.subr.mxu0 0.0
    %2863 = vmatpush1.msra.mxu0 0.0
    %2864 = vmatprep.subr.mxu0 0.0
    %2865 = vmatpush1.msra.mxu0 0.0
    %2866 = vmatprep.subr.mxu0 0.0
    %2867 = vmatpush1.msra.mxu0 0.0
    %2868 = vmatprep.subr.mxu0 0.0
    %2869 = vmatpush1.msra.mxu0 0.0
    %2870 = vmatprep.subr.mxu0 0.0
    %2871 = vmatpush1.msra.mxu0 0.0
    %2872 = vmatprep.subr.mxu0 0.0
    %2873 = vmatpush1.msra.mxu0 0.0
    %2874 = vmatprep.subr.mxu0 0.0
    %2875 = vmatpush1.msra.mxu0 0.0
    %2876 = vmatprep.subr.mxu0 0.0
    %2877 = vmatpush1.msra.mxu0 0.0
    %2878 = vmatprep.subr.mxu0 0.0
    %2879 = vmatpush1.msra.mxu0 0.0
    %2880 = vmatprep.subr.mxu0 0.0
    %2881 = vmatpush1.msra.mxu0 0.0
    %2882 = vmatprep.subr.mxu0 0.0
    %2883 = vmatpush1.msra.mxu0 0.0
    %2884 = vmatprep.subr.mxu0 0.0
    %2885 = vmatpush1.msra.mxu0 0.0
    %2886 = vmatprep.subr.mxu0 0.0
    %2887 = vmatpush1.msra.mxu0 0.0
    %2888 = vmatprep.subr.mxu0 0.0
    %2889 = vmatpush1.msra.mxu0 0.0
    %2890 = vmatprep.subr.mxu0 0.0
    %2891 = vmatpush1.msra.mxu0 0.0
    %2892 = vmatprep.subr.mxu0 0.0
    %2893 = vmatpush1.msra.mxu0 0.0
    %2894 = vmatprep.subr.mxu0 0.0
    %2895 = vmatpush1.msra.mxu0 0.0
    %2896 = vmatprep.subr.mxu0 0.0
    %2897 = vmatpush1.msra.mxu0 0.0
    %2898 = vmatprep.subr.mxu0 0.0
    %2899 = vmatpush1.msra.mxu0 0.0
    %2900 = vmatprep.subr.mxu0 0.0
    %2901 = vmatpush1.msra.mxu0 0.0
    %2902 = vmatprep.subr.mxu0 0.0
    %2903 = vmatpush1.msra.mxu0 0.0
    %2904 = vmatprep.subr.mxu0 0.0
    %2905 = vmatpush1.msra.mxu0 0.0
    %2906 = vmatprep.subr.mxu0 0.0
    %2907 = vmatpush1.msra.mxu0 0.0
    %2908 = vmatprep.subr.mxu0 0.0
    %2909 = vmatpush1.msra.mxu0 0.0
    %2910 = vmatprep.subr.mxu0 0.0
    %2911 = vmatpush1.msra.mxu0 0.0
    %2912 = vmatprep.subr.mxu0 0.0
    %2913 = vmatpush1.msra.mxu0 0.0
    %2914 = vmatprep.mubr.f32.mxu0 0.0
    %2915 = vmatmul.mubr.f32.gmra.mrb[0].mxu0 %v2779
    %v2916 = vpop.f32.mrb[0].mxu0
    %v2917 = vadd.f32 %v2668, %v2916
    %v2918 = vpop.f32.mrb[0].mxu0
    %2919 = vmatprep.mubr.f32.mxu0 0.0
    %2920 = vmatmul.mubr.f32.gmra.mrb[0].mxu0 %v2782
    %v2921 = vpop.f32.mrb[0].mxu0
    %v2922 = vadd.f32 %v2673, %v2921
    %v2923 = vpop.f32.mrb[0].mxu0
    %2924 = vmatprep.mubr.f32.mxu0 0.0
    %2925 = vmatmul.mubr.f32.gmra.mrb[0].mxu0 %v2785
    %v2926 = vpop.f32.mrb[0].mxu0
    %v2927 = vadd.f32 %v2678, %v2926
    %v2928 = vpop.f32.mrb[0].mxu0
    %2929 = vmatprep.mubr.f32.mxu0 0.0
    %2930 = vmatmul.mubr.f32.gmra.mrb[0].mxu0 %v2788
    %v2931 = vpop.f32.mrb[0].mxu0
    %v2932 = vadd.f32 %v2683, %v2931
    %v2933 = vpop.f32.mrb[0].mxu0
    %2934 = vmatprep.mubr.f32.mxu0 0.0
    %2935 = vmatmul.mubr.f32.gmra.mrb[0].mxu0 %v2791
    %v2936 = vpop.f32.mrb[0].mxu0
    %v2937 = vadd.f32 %v2688, %v2936
    %v2938 = vpop.f32.mrb[0].mxu0
    %2939 = vmatprep.mubr.f32.mxu0 0.0
    %2940 = vmatmul.mubr.f32.gmra.mrb[0].mxu0 %v2794
    %v2941 = vpop.f32.mrb[0].mxu0
    %v2942 = vadd.f32 %v2693, %v2941
    %v2943 = vpop.f32.mrb[0].mxu0
    %2944 = vmatprep.mubr.f32.mxu0 0.0
    %2945 = vmatmul.mubr.f32.gmra.mrb[0].mxu0 %v2797
    %v2946 = vpop.f32.mrb[0].mxu0
    %v2947 = vadd.f32 %v2698, %v2946
    %v2948 = vpop.f32.mrb[0].mxu0
    %2949 = vmatprep.mubr.f32.mxu0 0.0
    %2950 = vmatmul.mubr.f32.gmra.mrb[0].mxu0 %v2800
    %v2951 = vpop.f32.mrb[0].mxu0
    %v2952 = vadd.f32 %v2703, %v2951
    %v2953 = vpop.f32.mrb[0].mxu0
    %2954 = vmatprep.mubr.f32.mxu0 0.0
    %2955 = vmatmul.mubr.f32.gmra.mrb[0].mxu0 %v2803
    %v2956 = vpop.f32.mrb[0].mxu0
    %v2957 = vadd.f32 %v2708, %v2956
    %v2958 = vpop.f32.mrb[0].mxu0
    %2959 = vmatprep.mubr.f32.mxu0 0.0
    %2960 = vmatmul.mubr.f32.gmra.mrb[0].mxu0 %v2806
    %v2961 = vpop.f32.mrb[0].mxu0
    %v2962 = vadd.f32 %v2713, %v2961
    %v2963 = vpop.f32.mrb[0].mxu0
    %2964 = vmatprep.mubr.f32.mxu0 0.0
    %2965 = vmatmul.mubr.f32.gmra.mrb[0].mxu0 %v2809
    %v2966 = vpop.f32.mrb[0].mxu0
    %v2967 = vpop.f32.mrb[0].mxu0
    %2968 = vmatprep.mubr.f32.mxu0 0.0
    %2969 = vmatmul.mubr.f32.gmra.mrb[0].mxu0 %v2812
    %v2970 = vpop.f32.mrb[0].mxu0
    %v2971 = vpop.f32.mrb[0].mxu0
    %2972 = vmatprep.mubr.f32.mxu0 0.0
    %2973 = vmatmul.mubr.f32.gmra.mrb[0].mxu0 %v2815
    %v2974 = vpop.f32.mrb[0].mxu0
    %v2975 = vpop.f32.mrb[0].mxu0
    %2976 = vmatprep.mubr.f32.mxu0 0.0
    %2977 = vmatmul.mubr.f32.gmra.mrb[0].mxu0 %v2818
    %v2978 = vpop.f32.mrb[0].mxu0
    %v2979 = vpop.f32.mrb[0].mxu0
    %2980 = vmatprep.mubr.f32.mxu0 0.0
    %2981 = vmatmul.mubr.f32.gmra.mrb[0].mxu0 %v2821
    %v2982 = vpop.f32.mrb[0].mxu0
    %v2983 = vpop.f32.mrb[0].mxu0
    %2984 = vmatprep.mubr.f32.mxu0 0.0
    %2985 = vmatmul.mubr.f32.gmra.mrb[0].mxu0 %v2824
    %v2986 = vpop.f32.mrb[0].mxu0
    %v2987 = vadd.f32 %v2738, %v2986
    %v2988 = vpop.f32.mrb[0].mxu0
    %2989 = vmatprep.mubr.f32.mxu0 0.0
    %2990 = vmatmul.mubr.f32.gmra.mrb[0].mxu0 %v2827
    %v2991 = vpop.f32.mrb[0].mxu0
    %v2992 = vadd.f32 %v2743, %v2991
    %v2993 = vpop.f32.mrb[0].mxu0
    %2994 = vmatprep.mubr.f32.mxu0 0.0
    %2995 = vmatmul.mubr.f32.gmra.mrb[0].mxu0 %v2830
    %v2996 = vpop.f32.mrb[0].mxu0
    %v2997 = vadd.f32 %v2748, %v2996
    %v2998 = vpop.f32.mrb[0].mxu0
    %2999 = vmatprep.mubr.f32.mxu0 0.0
    %3000 = vmatmul.mubr.f32.gmra.mrb[0].mxu0 %v2833
    %v3001 = vpop.f32.mrb[0].mxu0
    %v3002 = vadd.f32 %v2753, %v3001
    %v3003 = vpop.f32.mrb[0].mxu0
    %3004 = vmatprep.mubr.f32.mxu0 0.0
    %3005 = vmatmul.mubr.f32.gmra.mrb[0].mxu0 %v2836
    %v3006 = vpop.f32.mrb[0].mxu0
    %v3007 = vadd.f32 %v2758, %v3006
    %v3008 = vpop.f32.mrb[0].mxu0
    %3009 = vmatprep.mubr.f32.mxu0 0.0
    %3010 = vmatmul.mubr.f32.gmra.mrb[0].mxu0 %v2839
    %v3011 = vpop.f32.mrb[0].mxu0
    %v3012 = vadd.f32 %v2763, %v3011
    %v3013 = vpop.f32.mrb[0].mxu0
    %3014 = vmatprep.mubr.f32.mxu0 0.0
    %3015 = vmatmul.mubr.f32.gmra.mrb[0].mxu0 %v2842
    %v3016 = vpop.f32.mrb[0].mxu0
    %v3017 = vpop.f32.mrb[0].mxu0
    %3018 = vmatprep.mubr.f32.mxu0 0.0
    %3019 = vmatmul.mubr.f32.gmra.mrb[0].mxu0 %v2845
    %v3020 = vpop.f32.mrb[0].mxu0
    %v3021 = vpop.f32.mrb[0].mxu0
    %3022 = vmatprep.mubr.f32.mxu0 0.0
    %3023 = vmatmul.mubr.f32.gmra.mrb[0].mxu0 %v2848
    %v3024 = vpop.f32.mrb[0].mxu0
    %v3025 = vpop.f32.mrb[0].mxu0
    %3026 = vdwg.mxu0
    %3027 = vmatprep.subr.mxu0 0.0
    %3028 = vmatpush1.msra.mxu0 %v77
    %3029 = vmatprep.subr.mxu0 0.0
    %3030 = vmatpush1.msra.mxu0 %v78
    %3031 = vmatprep.subr.mxu0 0.0
    %3032 = vmatpush1.msra.mxu0 0.0
    %3033 = vmatprep.subr.mxu0 0.0
    %3034 = vmatpush1.msra.mxu0 0.0
    %3035 = vmatprep.subr.mxu0 0.0
    %3036 = vmatpush1.msra.mxu0 0.0
    %3037 = vmatprep.subr.mxu0 0.0
    %3038 = vmatpush1.msra.mxu0 0.0
    %3039 = vmatprep.subr.mxu0 0.0
    %3040 = vmatpush1.msra.mxu0 0.0
    %3041 = vmatprep.subr.mxu0 0.0
    %3042 = vmatpush1.msra.mxu0 0.0
    %3043 = vmatprep.subr.mxu0 0.0
    %3044 = vmatpush1.msra.mxu0 0.0
    %3045 = vmatprep.subr.mxu0 0.0
    %3046 = vmatpush1.msra.mxu0 0.0
    %3047 = vmatprep.subr.mxu0 0.0
    %3048 = vmatpush1.msra.mxu0 0.0
    %3049 = vmatprep.subr.mxu0 0.0
    %3050 = vmatpush1.msra.mxu0 0.0
    %3051 = vmatprep.subr.mxu0 0.0
    %3052 = vmatpush1.msra.mxu0 0.0
    %3053 = vmatprep.subr.mxu0 0.0
    %3054 = vmatpush1.msra.mxu0 0.0
    %3055 = vmatprep.subr.mxu0 0.0
    %3056 = vmatpush1.msra.mxu0 0.0
    %3057 = vmatprep.subr.mxu0 0.0
    %3058 = vmatpush1.msra.mxu0 0.0
    %3059 = vmatprep.subr.mxu0 0.0
    %3060 = vmatpush1.msra.mxu0 0.0
    %3061 = vmatprep.subr.mxu0 0.0
    %3062 = vmatpush1.msra.mxu0 0.0
    %3063 = vmatprep.subr.mxu0 0.0
    %3064 = vmatpush1.msra.mxu0 0.0
    %3065 = vmatprep.subr.mxu0 0.0
    %3066 = vmatpush1.msra.mxu0 0.0
    %3067 = vmatprep.subr.mxu0 0.0
    %3068 = vmatpush1.msra.mxu0 0.0
    %3069 = vmatprep.subr.mxu0 0.0
    %3070 = vmatpush1.msra.mxu0 0.0
    %3071 = vmatprep.subr.mxu0 0.0
    %3072 = vmatpush1.msra.mxu0 0.0
    %3073 = vmatprep.subr.mxu0 0.0
    %3074 = vmatpush1.msra.mxu0 0.0
    %3075 = vmatprep.subr.mxu0 0.0
    %3076 = vmatpush1.msra.mxu0 0.0
    %3077 = vmatprep.subr.mxu0 0.0
    %3078 = vmatpush1.msra.mxu0 0.0
    %3079 = vmatprep.subr.mxu0 0.0
    %3080 = vmatpush1.msra.mxu0 0.0
    %3081 = vmatprep.subr.mxu0 0.0
    %3082 = vmatpush1.msra.mxu0 0.0
    %3083 = vmatprep.subr.mxu0 0.0
    %3084 = vmatpush1.msra.mxu0 0.0
    %3085 = vmatprep.subr.mxu0 0.0
    %3086 = vmatpush1.msra.mxu0 0.0
    %3087 = vmatprep.subr.mxu0 0.0
    %3088 = vmatpush1.msra.mxu0 0.0
    %3089 = vmatprep.subr.mxu0 0.0
    %3090 = vmatpush1.msra.mxu0 0.0
    %3091 = vmatprep.mubr.f32.mxu0 0.0
    %3092 = vmatmul.mubr.f32.gmra.mrb[0].mxu0 %v2530
    %v3093 = vpop.f32.mrb[0].mxu0
    %v3094 = vpop.f32.mrb[0].mxu0
    %3095 = vmatprep.mubr.f32.mxu0 0.0
    %3096 = vmatmul.mubr.f32.gmra.mrb[0].mxu0 %v2533
    %v3097 = vpop.f32.mrb[0].mxu0
    %v3098 = vpop.f32.mrb[0].mxu0
    %3099 = vmatprep.mubr.f32.mxu0 0.0
    %3100 = vmatmul.mubr.f32.gmra.mrb[0].mxu0 %v2536
    %v3101 = vpop.f32.mrb[0].mxu0
    %v3102 = vpop.f32.mrb[0].mxu0
    %3103 = vmatprep.mubr.f32.mxu0 0.0
    %3104 = vmatmul.mubr.f32.gmra.mrb[0].mxu0 %v2539
    %v3105 = vpop.f32.mrb[0].mxu0
    %v3106 = vpop.f32.mrb[0].mxu0
    %3107 = vmatprep.mubr.f32.mxu0 0.0
    %3108 = vmatmul.mubr.f32.gmra.mrb[0].mxu0 %v2542
    %v3109 = vpop.f32.mrb[0].mxu0
    %v3110 = vpop.f32.mrb[0].mxu0
    %3111 = vmatprep.mubr.f32.mxu0 0.0
    %3112 = vmatmul.mubr.f32.gmra.mrb[0].mxu0 %v2545
    %v3113 = vpop.f32.mrb[0].mxu0
    %v3114 = vadd.f32 0.0, %v3113
    %v3115 = vpop.f32.mrb[0].mxu0
    %3116 = vmatprep.mubr.f32.mxu0 0.0
    %3117 = vmatmul.mubr.f32.gmra.mrb[0].mxu0 %v2548
    %v3118 = vpop.f32.mrb[0].mxu0
    %v3119 = vadd.f32 0.0, %v3118
    %v3120 = vpop.f32.mrb[0].mxu0
    %3121 = vmatprep.mubr.f32.mxu0 0.0
    %3122 = vmatmul.mubr.f32.gmra.mrb[0].mxu0 %v2551
    %v3123 = vpop.f32.mrb[0].mxu0
    %v3124 = vadd.f32 0.0, %v3123
    %v3125 = vpop.f32.mrb[0].mxu0
    %3126 = vmatprep.mubr.f32.mxu0 0.0
    %3127 = vmatmul.mubr.f32.gmra.mrb[0].mxu0 %v2554
    %v3128 = vpop.f32.mrb[0].mxu0
    %v3129 = vadd.f32 0.0, %v3128
    %v3130 = vpop.f32.mrb[0].mxu0
    %3131 = vmatprep.mubr.f32.mxu0 0.0
    %3132 = vmatmul.mubr.f32.gmra.mrb[0].mxu0 %v2557
    %v3133 = vpop.f32.mrb[0].mxu0
    %v3134 = vadd.f32 0.0, %v3133
    %v3135 = vpop.f32.mrb[0].mxu0
    %3136 = vmatprep.mubr.f32.mxu0 0.0
    %3137 = vmatmul.mubr.f32.gmra.mrb[0].mxu0 %v2560
    %v3138 = vpop.f32.mrb[0].mxu0
    %v3139 = vadd.f32 0.0, %v3138
    %v3140 = vpop.f32.mrb[0].mxu0
    %3141 = vmatprep.mubr.f32.mxu0 0.0
    %3142 = vmatmul.mubr.f32.gmra.mrb[0].mxu0 %v2563
    %v3143 = vpop.f32.mrb[0].mxu0
    %v3144 = vadd.f32 0.0, %v3143
    %v3145 = vpop.f32.mrb[0].mxu0
    %3146 = vmatprep.mubr.f32.mxu0 0.0
    %3147 = vmatmul.mubr.f32.gmra.mrb[0].mxu0 %v2566
    %v3148 = vpop.f32.mrb[0].mxu0
    %v3149 = vadd.f32 0.0, %v3148
    %v3150 = vpop.f32.mrb[0].mxu0
    %3151 = vmatprep.mubr.f32.mxu0 0.0
    %3152 = vmatmul.mubr.f32.gmra.mrb[0].mxu0 %v2569
    %v3153 = vpop.f32.mrb[0].mxu0
    %v3154 = vadd.f32 0.0, %v3153
    %v3155 = vpop.f32.mrb[0].mxu0
    %3156 = vmatprep.mubr.f32.mxu0 0.0
    %3157 = vmatmul.mubr.f32.gmra.mrb[0].mxu0 %v2572
    %v3158 = vpop.f32.mrb[0].mxu0
    %v3159 = vadd.f32 0.0, %v3158
    %v3160 = vpop.f32.mrb[0].mxu0
    %3161 = vmatprep.mubr.f32.mxu0 0.0
    %3162 = vmatmul.mubr.f32.gmra.mrb[0].mxu0 %v2575
    %v3163 = vpop.f32.mrb[0].mxu0
    %v3164 = vpop.f32.mrb[0].mxu0
    %3165 = vmatprep.mubr.f32.mxu0 0.0
    %3166 = vmatmul.mubr.f32.gmra.mrb[0].mxu0 %v2578
    %v3167 = vpop.f32.mrb[0].mxu0
    %v3168 = vpop.f32.mrb[0].mxu0
    %3169 = vmatprep.mubr.f32.mxu0 0.0
    %3170 = vmatmul.mubr.f32.gmra.mrb[0].mxu0 %v2581
    %v3171 = vpop.f32.mrb[0].mxu0
    %v3172 = vpop.f32.mrb[0].mxu0
    %3173 = vmatprep.mubr.f32.mxu0 0.0
    %3174 = vmatmul.mubr.f32.gmra.mrb[0].mxu0 %v2584
    %v3175 = vpop.f32.mrb[0].mxu0
    %v3176 = vadd.f32 0.0, %v3175
    %v3177 = vpop.f32.mrb[0].mxu0
    %3178 = vmatprep.mubr.f32.mxu0 0.0
    %3179 = vmatmul.mubr.f32.gmra.mrb[0].mxu0 %v2587
    %v3180 = vpop.f32.mrb[0].mxu0
    %v3181 = vadd.f32 0.0, %v3180
    %v3182 = vpop.f32.mrb[0].mxu0
    %3183 = vmatprep.mubr.f32.mxu0 0.0
    %3184 = vmatmul.mubr.f32.gmra.mrb[0].mxu0 %v2590
    %v3185 = vpop.f32.mrb[0].mxu0
    %v3186 = vadd.f32 0.0, %v3185
    %v3187 = vpop.f32.mrb[0].mxu0
    %3188 = vmatprep.mubr.f32.mxu0 0.0
    %3189 = vmatmul.mubr.f32.gmra.mrb[0].mxu0 %v2593
    %v3190 = vpop.f32.mrb[0].mxu0
    %v3191 = vadd.f32 0.0, %v3190
    %v3192 = vpop.f32.mrb[0].mxu0
    %3193 = vmatprep.mubr.f32.mxu0 0.0
    %3194 = vmatmul.mubr.f32.gmra.mrb[0].mxu0 %v2596
    %v3195 = vpop.f32.mrb[0].mxu0
    %v3196 = vadd.f32 0.0, %v3195
    %v3197 = vpop.f32.mrb[0].mxu0
    %3198 = vmatprep.mubr.f32.mxu0 0.0
    %3199 = vmatmul.mubr.f32.gmra.mrb[0].mxu0 %v2599
    %v3200 = vpop.f32.mrb[0].mxu0
    %v3201 = vadd.f32 0.0, %v3200
    %v3202 = vpop.f32.mrb[0].mxu0
    %3203 = vdwg.mxu0
    %3204 = vmatprep.subr.mxu0 0.0
    %3205 = vmatpush1.msra.mxu0 %v75
    %3206 = vmatprep.subr.mxu0 0.0
    %3207 = vmatpush1.msra.mxu0 %v76
    %3208 = vmatprep.subr.mxu0 0.0
    %3209 = vmatpush1.msra.mxu0 0.0
    %3210 = vmatprep.subr.mxu0 0.0
    %3211 = vmatpush1.msra.mxu0 0.0
    %3212 = vmatprep.subr.mxu0 0.0
    %3213 = vmatpush1.msra.mxu0 0.0
    %3214 = vmatprep.subr.mxu0 0.0
    %3215 = vmatpush1.msra.mxu0 0.0
    %3216 = vmatprep.subr.mxu0 0.0
    %3217 = vmatpush1.msra.mxu0 0.0
    %3218 = vmatprep.subr.mxu0 0.0
    %3219 = vmatpush1.msra.mxu0 0.0
    %3220 = vmatprep.subr.mxu0 0.0
    %3221 = vmatpush1.msra.mxu0 0.0
    %3222 = vmatprep.subr.mxu0 0.0
    %3223 = vmatpush1.msra.mxu0 0.0
    %3224 = vmatprep.subr.mxu0 0.0
    %3225 = vmatpush1.msra.mxu0 0.0
    %3226 = vmatprep.subr.mxu0 0.0
    %3227 = vmatpush1.msra.mxu0 0.0
    %3228 = vmatprep.subr.mxu0 0.0
    %3229 = vmatpush1.msra.mxu0 0.0
    %3230 = vmatprep.subr.mxu0 0.0
    %3231 = vmatpush1.msra.mxu0 0.0
    %3232 = vmatprep.subr.mxu0 0.0
    %3233 = vmatpush1.msra.mxu0 0.0
    %3234 = vmatprep.subr.mxu0 0.0
    %3235 = vmatpush1.msra.mxu0 0.0
    %3236 = vmatprep.subr.mxu0 0.0
    %3237 = vmatpush1.msra.mxu0 0.0
    %3238 = vmatprep.subr.mxu0 0.0
    %3239 = vmatpush1.msra.mxu0 0.0
    %3240 = vmatprep.subr.mxu0 0.0
    %3241 = vmatpush1.msra.mxu0 0.0
    %3242 = vmatprep.subr.mxu0 0.0
    %3243 = vmatpush1.msra.mxu0 0.0
    %3244 = vmatprep.subr.mxu0 0.0
    %3245 = vmatpush1.msra.mxu0 0.0
    %3246 = vmatprep.subr.mxu0 0.0
    %3247 = vmatpush1.msra.mxu0 0.0
    %3248 = vmatprep.subr.mxu0 0.0
    %3249 = vmatpush1.msra.mxu0 0.0
    %3250 = vmatprep.subr.mxu0 0.0
    %3251 = vmatpush1.msra.mxu0 0.0
    %3252 = vmatprep.subr.mxu0 0.0
    %3253 = vmatpush1.msra.mxu0 0.0
    %3254 = vmatprep.subr.mxu0 0.0
    %3255 = vmatpush1.msra.mxu0 0.0
    %3256 = vmatprep.subr.mxu0 0.0
    %3257 = vmatpush1.msra.mxu0 0.0
    %3258 = vmatprep.subr.mxu0 0.0
    %3259 = vmatpush1.msra.mxu0 0.0
    %3260 = vmatprep.subr.mxu0 0.0
    %3261 = vmatpush1.msra.mxu0 0.0
    %3262 = vmatprep.subr.mxu0 0.0
    %3263 = vmatpush1.msra.mxu0 0.0
    %3264 = vmatprep.subr.mxu0 0.0
    %3265 = vmatpush1.msra.mxu0 0.0
    %3266 = vmatprep.subr.mxu0 0.0
    %3267 = vmatpush1.msra.mxu0 0.0
    %3268 = vmatprep.mubr.f32.mxu0 0.0
    %3269 = vmatmul.mubr.f32.gmra.mrb[0].mxu0 %v2779
    %v3270 = vpop.f32.mrb[0].mxu0
    %v3271 = vpop.f32.mrb[0].mxu0
    %3272 = vmatprep.mubr.f32.mxu0 0.0
    %3273 = vmatmul.mubr.f32.gmra.mrb[0].mxu0 %v2782
    %v3274 = vpop.f32.mrb[0].mxu0
    %v3275 = vpop.f32.mrb[0].mxu0
    %3276 = vmatprep.mubr.f32.mxu0 0.0
    %3277 = vmatmul.mubr.f32.gmra.mrb[0].mxu0 %v2785
    %v3278 = vpop.f32.mrb[0].mxu0
    %v3279 = vpop.f32.mrb[0].mxu0
    %3280 = vmatprep.mubr.f32.mxu0 0.0
    %3281 = vmatmul.mubr.f32.gmra.mrb[0].mxu0 %v2788
    %v3282 = vpop.f32.mrb[0].mxu0
    %v3283 = vpop.f32.mrb[0].mxu0
    %3284 = vmatprep.mubr.f32.mxu0 0.0
    %3285 = vmatmul.mubr.f32.gmra.mrb[0].mxu0 %v2791
    %v3286 = vpop.f32.mrb[0].mxu0
    %v3287 = vpop.f32.mrb[0].mxu0
    %3288 = vmatprep.mubr.f32.mxu0 0.0
    %3289 = vmatmul.mubr.f32.gmra.mrb[0].mxu0 %v2794
    %v3290 = vpop.f32.mrb[0].mxu0
    %v3291 = vadd.f32 %v3114, %v3290
    %v3292 = vpop.f32.mrb[0].mxu0
    %3293 = vmatprep.mubr.f32.mxu0 0.0
    %3294 = vmatmul.mubr.f32.gmra.mrb[0].mxu0 %v2797
    %v3295 = vpop.f32.mrb[0].mxu0
    %v3296 = vadd.f32 %v3119, %v3295
    %v3297 = vpop.f32.mrb[0].mxu0
    %3298 = vmatprep.mubr.f32.mxu0 0.0
    %3299 = vmatmul.mubr.f32.gmra.mrb[0].mxu0 %v2800
    %v3300 = vpop.f32.mrb[0].mxu0
    %v3301 = vadd.f32 %v3124, %v3300
    %v3302 = vpop.f32.mrb[0].mxu0
    %3303 = vmatprep.mubr.f32.mxu0 0.0
    %3304 = vmatmul.mubr.f32.gmra.mrb[0].mxu0 %v2803
    %v3305 = vpop.f32.mrb[0].mxu0
    %v3306 = vadd.f32 %v3129, %v3305
    %v3307 = vpop.f32.mrb[0].mxu0
    %3308 = vmatprep.mubr.f32.mxu0 0.0
    %3309 = vmatmul.mubr.f32.gmra.mrb[0].mxu0 %v2806
    %v3310 = vpop.f32.mrb[0].mxu0
    %v3311 = vadd.f32 %v3134, %v3310
    %v3312 = vpop.f32.mrb[0].mxu0
    %3313 = vmatprep.mubr.f32.mxu0 0.0
    %3314 = vmatmul.mubr.f32.gmra.mrb[0].mxu0 %v2809
    %v3315 = vpop.f32.mrb[0].mxu0
    %v3316 = vadd.f32 %v3139, %v3315
    %v3317 = vpop.f32.mrb[0].mxu0
    %3318 = vmatprep.mubr.f32.mxu0 0.0
    %3319 = vmatmul.mubr.f32.gmra.mrb[0].mxu0 %v2812
    %v3320 = vpop.f32.mrb[0].mxu0
    %v3321 = vadd.f32 %v3144, %v3320
    %v3322 = vpop.f32.mrb[0].mxu0
    %3323 = vmatprep.mubr.f32.mxu0 0.0
    %3324 = vmatmul.mubr.f32.gmra.mrb[0].mxu0 %v2815
    %v3325 = vpop.f32.mrb[0].mxu0
    %v3326 = vadd.f32 %v3149, %v3325
    %v3327 = vpop.f32.mrb[0].mxu0
    %3328 = vmatprep.mubr.f32.mxu0 0.0
    %3329 = vmatmul.mubr.f32.gmra.mrb[0].mxu0 %v2818
    %v3330 = vpop.f32.mrb[0].mxu0
    %v3331 = vadd.f32 %v3154, %v3330
    %v3332 = vpop.f32.mrb[0].mxu0
    %3333 = vmatprep.mubr.f32.mxu0 0.0
    %3334 = vmatmul.mubr.f32.gmra.mrb[0].mxu0 %v2821
    %v3335 = vpop.f32.mrb[0].mxu0
    %v3336 = vadd.f32 %v3159, %v3335
    %v3337 = vpop.f32.mrb[0].mxu0
    %3338 = vmatprep.mubr.f32.mxu0 0.0
    %3339 = vmatmul.mubr.f32.gmra.mrb[0].mxu0 %v2824
    %v3340 = vpop.f32.mrb[0].mxu0
    %v3341 = vpop.f32.mrb[0].mxu0
    %3342 = vmatprep.mubr.f32.mxu0 0.0
    %3343 = vmatmul.mubr.f32.gmra.mrb[0].mxu0 %v2827
    %v3344 = vpop.f32.mrb[0].mxu0
    %v3345 = vpop.f32.mrb[0].mxu0
    %3346 = vmatprep.mubr.f32.mxu0 0.0
    %3347 = vmatmul.mubr.f32.gmra.mrb[0].mxu0 %v2830
    %v3348 = vpop.f32.mrb[0].mxu0
    %v3349 = vpop.f32.mrb[0].mxu0
    %3350 = vmatprep.mubr.f32.mxu0 0.0
    %3351 = vmatmul.mubr.f32.gmra.mrb[0].mxu0 %v2833
    %v3352 = vpop.f32.mrb[0].mxu0
    %v3353 = vadd.f32 %v3176, %v3352
    %v3354 = vpop.f32.mrb[0].mxu0
    %3355 = vmatprep.mubr.f32.mxu0 0.0
    %3356 = vmatmul.mubr.f32.gmra.mrb[0].mxu0 %v2836
    %v3357 = vpop.f32.mrb[0].mxu0
    %v3358 = vadd.f32 %v3181, %v3357
    %v3359 = vpop.f32.mrb[0].mxu0
    %3360 = vmatprep.mubr.f32.mxu0 0.0
    %3361 = vmatmul.mubr.f32.gmra.mrb[0].mxu0 %v2839
    %v3362 = vpop.f32.mrb[0].mxu0
    %v3363 = vadd.f32 %v3186, %v3362
    %v3364 = vpop.f32.mrb[0].mxu0
    %3365 = vmatprep.mubr.f32.mxu0 0.0
    %3366 = vmatmul.mubr.f32.gmra.mrb[0].mxu0 %v2842
    %v3367 = vpop.f32.mrb[0].mxu0
    %v3368 = vadd.f32 %v3191, %v3367
    %v3369 = vpop.f32.mrb[0].mxu0
    %3370 = vmatprep.mubr.f32.mxu0 0.0
    %3371 = vmatmul.mubr.f32.gmra.mrb[0].mxu0 %v2845
    %v3372 = vpop.f32.mrb[0].mxu0
    %v3373 = vadd.f32 %v3196, %v3372
    %v3374 = vpop.f32.mrb[0].mxu0
    %3375 = vmatprep.mubr.f32.mxu0 0.0
    %3376 = vmatmul.mubr.f32.gmra.mrb[0].mxu0 %v2848
    %v3377 = vpop.f32.mrb[0].mxu0
    %v3378 = vadd.f32 %v3201, %v3377
    %v3379 = vpop.f32.mrb[0].mxu0
    %3380 = vdwg.mxu0
    %v3381 = vadd.f32 %v2917, %v3291
    %v3382 = vadd.f32 %v2922, %v3296
    %v3383 = vadd.f32 %v2927, %v3301
    %v3384 = vadd.f32 %v2932, %v3306
    %v3385 = vadd.f32 %v2937, %v3311
    %v3386 = vadd.f32 %v2987, %v3353
    %v3387 = vadd.f32 %v2992, %v3358
    %v3388 = vadd.f32 %v2997, %v3363
    %v3389 = vadd.f32 %v2987, %v3368
    %v3390 = vadd.f32 %v2992, %v3373
    %v3391 = vadd.f32 %v2997, %v3378
    %v3392 = vadd.f32 %v3002, %v3368
    %v3393 = vadd.f32 %v3007, %v3373
    %v3394 = vadd.f32 %v3012, %v3378
    %v3395 = vadd.f32 %v2917, %v3316
    %v3396 = vadd.f32 %v2922, %v3321
    %v3397 = vadd.f32 %v2927, %v3326
    %v3398 = vadd.f32 %v2932, %v3331
    %v3399 = vadd.f32 %v2937, %v3336
    %v3400 = vadd.f32 %v2942, %v3316
    %v3401 = vadd.f32 %v2947, %v3321
    %v3402 = vadd.f32 %v2952, %v3326
    %v3403 = vadd.f32 %v2957, %v3331
    %v3404 = vadd.f32 %v2962, %v3336
    %vm3405 = vcmask 23552
    %v3406 = vsel %vm3405, %v3381, -inf
    %3407 = vmax.xlane.f32.xlu0 %v3406
    %v3408 = vpop.xlane.xlu0 %3407
    %v3409 = vsel %vm3405, %v3382, -inf
    %3410 = vmax.xlane.f32.xlu0 %v3409
    %v3411 = vpop.xlane.xlu0 %3410
    %v3412 = vsel %vm3405, %v3383, -inf
    %3413 = vmax.xlane.f32.xlu0 %v3412
    %v3414 = vpop.xlane.xlu0 %3413
    %v3415 = vsel %vm3405, %v3384, -inf
    %3416 = vmax.xlane.f32.xlu0 %v3415
    %v3417 = vpop.xlane.xlu0 %3416
    %v3418 = vsel %vm3405, %v3385, -inf
    %3419 = vmax.xlane.f32.xlu0 %v3418
    %v3420 = vpop.xlane.xlu0 %3419
    %v3421 = vsel %vm3405, %v3386, -inf
    %3422 = vmax.xlane.f32.xlu0 %v3421
    %v3423 = vpop.xlane.xlu0 %3422
    %v3424 = vsel %vm3405, %v3387, -inf
    %3425 = vmax.xlane.f32.xlu0 %v3424
    %v3426 = vpop.xlane.xlu0 %3425
    %v3427 = vsel %vm3405, %v3388, -inf
    %3428 = vmax.xlane.f32.xlu0 %v3427
    %v3429 = vpop.xlane.xlu0 %3428
    %v3430 = vsel %vm3405, %v3389, -inf
    %3431 = vmax.xlane.f32.xlu0 %v3430
    %v3432 = vpop.xlane.xlu0 %3431
    %v3433 = vsel %vm3405, %v3390, -inf
    %3434 = vmax.xlane.f32.xlu0 %v3433
    %v3435 = vpop.xlane.xlu0 %3434
    %v3436 = vsel %vm3405, %v3391, -inf
    %3437 = vmax.xlane.f32.xlu0 %v3436
    %v3438 = vpop.xlane.xlu0 %3437
    %v3439 = vsel %vm3405, %v3392, -inf
    %3440 = vmax.xlane.f32.xlu0 %v3439
    %v3441 = vpop.xlane.xlu0 %3440
    %v3442 = vsel %vm3405, %v3393, -inf
    %3443 = vmax.xlane.f32.xlu0 %v3442
    %v3444 = vpop.xlane.xlu0 %3443
    %v3445 = vsel %vm3405, %v3394, -inf
    %3446 = vmax.xlane.f32.xlu0 %v3445
    %v3447 = vpop.xlane.xlu0 %3446
    %v3448 = vsel %vm3405, %v3395, -inf
    %3449 = vmax.xlane.f32.xlu0 %v3448
    %v3450 = vpop.xlane.xlu0 %3449
    %v3451 = vsel %vm3405, %v3396, -inf
    %3452 = vmax.xlane.f32.xlu0 %v3451
    %v3453 = vpop.xlane.xlu0 %3452
    %v3454 = vsel %vm3405, %v3397, -inf
    %3455 = vmax.xlane.f32.xlu0 %v3454
    %v3456 = vpop.xlane.xlu0 %3455
    %v3457 = vsel %vm3405, %v3398, -inf
    %3458 = vmax.xlane.f32.xlu0 %v3457
    %v3459 = vpop.xlane.xlu0 %3458
    %v3460 = vsel %vm3405, %v3399, -inf
    %3461 = vmax.xlane.f32.xlu0 %v3460
    %v3462 = vpop.xlane.xlu0 %3461
    %v3463 = vsel %vm3405, %v3400, -inf
    %3464 = vmax.xlane.f32.xlu0 %v3463
    %v3465 = vpop.xlane.xlu0 %3464
    %v3466 = vsel %vm3405, %v3401, -inf
    %3467 = vmax.xlane.f32.xlu0 %v3466
    %v3468 = vpop.xlane.xlu0 %3467
    %v3469 = vsel %vm3405, %v3402, -inf
    %3470 = vmax.xlane.f32.xlu0 %v3469
    %v3471 = vpop.xlane.xlu0 %3470
    %v3472 = vsel %vm3405, %v3403, -inf
    %3473 = vmax.xlane.f32.xlu0 %v3472
    %v3474 = vpop.xlane.xlu0 %3473
    %v3475 = vsel %vm3405, %v3404, -inf
    %3476 = vmax.xlane.f32.xlu0 %v3475
    %v3477 = vpop.xlane.xlu0 %3476
    %v3478 = vsub.f32 %v3381, %v3408
    %v3479 = vsub.f32 %v3382, %v3411
    %v3480 = vsub.f32 %v3383, %v3414
    %v3481 = vsub.f32 %v3384, %v3417
    %v3482 = vsub.f32 %v3385, %v3420
    %v3483 = vsub.f32 %v3386, %v3423
    %v3484 = vsub.f32 %v3387, %v3426
    %v3485 = vsub.f32 %v3388, %v3429
    %v3486 = vsub.f32 %v3389, %v3432
    %v3487 = vsub.f32 %v3390, %v3435
    %v3488 = vsub.f32 %v3391, %v3438
    %v3489 = vsub.f32 %v3392, %v3441
    %v3490 = vsub.f32 %v3393, %v3444
    %v3491 = vsub.f32 %v3394, %v3447
    %v3492 = vsub.f32 %v3395, %v3450
    %v3493 = vsub.f32 %v3396, %v3453
    %v3494 = vsub.f32 %v3397, %v3456
    %v3495 = vsub.f32 %v3398, %v3459
    %v3496 = vsub.f32 %v3399, %v3462
    %v3497 = vsub.f32 %v3400, %v3465
    %v3498 = vsub.f32 %v3401, %v3468
    %v3499 = vsub.f32 %v3402, %v3471
    %v3500 = vsub.f32 %v3403, %v3474
    %v3501 = vsub.f32 %v3404, %v3477
    %v3502 = vmul.f32 %v3478, 1.442695
    %v3503 = vpow.pop %v3502
    %v3504 = vmul.f32 %v3479, 1.442695
    %v3505 = vpow.pop %v3504
    %v3506 = vmul.f32 %v3480, 1.442695
    %v3507 = vpow.pop %v3506
    %v3508 = vmul.f32 %v3481, 1.442695
    %v3509 = vpow.pop %v3508
    %v3510 = vmul.f32 %v3482, 1.442695
    %v3511 = vpow.pop %v3510
    %v3512 = vmul.f32 %v3483, 1.442695
    %v3513 = vpow.pop %v3512
    %v3514 = vmul.f32 %v3484, 1.442695
    %v3515 = vpow.pop %v3514
    %v3516 = vmul.f32 %v3485, 1.442695
    %v3517 = vpow.pop %v3516
    %v3518 = vmul.f32 %v3486, 1.442695
    %v3519 = vpow.pop %v3518
    %v3520 = vmul.f32 %v3487, 1.442695
    %v3521 = vpow.pop %v3520
    %v3522 = vmul.f32 %v3488, 1.442695
    %v3523 = vpow.pop %v3522
    %v3524 = vmul.f32 %v3489, 1.442695
    %v3525 = vpow.pop %v3524
    %v3526 = vmul.f32 %v3490, 1.442695
    %v3527 = vpow.pop %v3526
    %v3528 = vmul.f32 %v3491, 1.442695
    %v3529 = vpow.pop %v3528
    %v3530 = vmul.f32 %v3492, 1.442695
    %v3531 = vpow.pop %v3530
    %v3532 = vmul.f32 %v3493, 1.442695
    %v3533 = vpow.pop %v3532
    %v3534 = vmul.f32 %v3494, 1.442695
    %v3535 = vpow.pop %v3534
    %v3536 = vmul.f32 %v3495, 1.442695
    %v3537 = vpow.pop %v3536
    %v3538 = vmul.f32 %v3496, 1.442695
    %v3539 = vpow.pop %v3538
    %v3540 = vmul.f32 %v3497, 1.442695
    %v3541 = vpow.pop %v3540
    %v3542 = vmul.f32 %v3498, 1.442695
    %v3543 = vpow.pop %v3542
    %v3544 = vmul.f32 %v3499, 1.442695
    %v3545 = vpow.pop %v3544
    %v3546 = vmul.f32 %v3500, 1.442695
    %v3547 = vpow.pop %v3546
    %v3548 = vmul.f32 %v3501, 1.442695
    %v3549 = vpow.pop %v3548
    %v3550 = vsel %vm3405, %v3503, 0.0
    %3551 = vadd.xlane.f32.xlu0 %v3550
    %v3552 = vpop.xlane.xlu0 %3551
    %v3553 = vsel %vm3405, %v3505, 0.0
    %3554 = vadd.xlane.f32.xlu0 %v3553
    %v3555 = vpop.xlane.xlu0 %3554
    %v3556 = vsel %vm3405, %v3507, 0.0
    %3557 = vadd.xlane.f32.xlu0 %v3556
    %v3558 = vpop.xlane.xlu0 %3557
    %v3559 = vsel %vm3405, %v3509, 0.0
    %3560 = vadd.xlane.f32.xlu0 %v3559
    %v3561 = vpop.xlane.xlu0 %3560
    %v3562 = vsel %vm3405, %v3511, 0.0
    %3563 = vadd.xlane.f32.xlu0 %v3562
    %v3564 = vpop.xlane.xlu0 %3563
    %v3565 = vsel %vm3405, %v3513, 0.0
    %3566 = vadd.xlane.f32.xlu0 %v3565
    %v3567 = vpop.xlane.xlu0 %3566
    %v3568 = vsel %vm3405, %v3515, 0.0
    %3569 = vadd.xlane.f32.xlu0 %v3568
    %v3570 = vpop.xlane.xlu0 %3569
    %v3571 = vsel %vm3405, %v3517, 0.0
    %3572 = vadd.xlane.f32.xlu0 %v3571
    %v3573 = vpop.xlane.xlu0 %3572
    %v3574 = vsel %vm3405, %v3519, 0.0
    %3575 = vadd.xlane.f32.xlu0 %v3574
    %v3576 = vpop.xlane.xlu0 %3575
    %v3577 = vsel %vm3405, %v3521, 0.0
    %3578 = vadd.xlane.f32.xlu0 %v3577
    %v3579 = vpop.xlane.xlu0 %3578
    %v3580 = vsel %vm3405, %v3523, 0.0
    %3581 = vadd.xlane.f32.xlu0 %v3580
    %v3582 = vpop.xlane.xlu0 %3581
    %v3583 = vsel %vm3405, %v3525, 0.0
    %3584 = vadd.xlane.f32.xlu0 %v3583
    %v3585 = vpop.xlane.xlu0 %3584
    %v3586 = vsel %vm3405, %v3527, 0.0
    %3587 = vadd.xlane.f32.xlu0 %v3586
    %v3588 = vpop.xlane.xlu0 %3587
    %v3589 = vsel %vm3405, %v3529, 0.0
    %3590 = vadd.xlane.f32.xlu0 %v3589
    %v3591 = vpop.xlane.xlu0 %3590
    %v3592 = vsel %vm3405, %v3531, 0.0
    %3593 = vadd.xlane.f32.xlu0 %v3592
    %v3594 = vpop.xlane.xlu0 %3593
    %v3595 = vsel %vm3405, %v3533, 0.0
    %3596 = vadd.xlane.f32.xlu0 %v3595
    %v3597 = vpop.xlane.xlu0 %3596
    %v3598 = vsel %vm3405, %v3535, 0.0
    %3599 = vadd.xlane.f32.xlu0 %v3598
    %v3600 = vpop.xlane.xlu0 %3599
    %v3601 = vsel %vm3405, %v3537, 0.0
    %3602 = vadd.xlane.f32.xlu0 %v3601
    %v3603 = vpop.xlane.xlu0 %3602
    %v3604 = vsel %vm3405, %v3539, 0.0
    %3605 = vadd.xlane.f32.xlu0 %v3604
    %v3606 = vpop.xlane.xlu0 %3605
    %v3607 = vsel %vm3405, %v3541, 0.0
    %3608 = vadd.xlane.f32.xlu0 %v3607
    %v3609 = vpop.xlane.xlu0 %3608
    %v3610 = vsel %vm3405, %v3543, 0.0
    %3611 = vadd.xlane.f32.xlu0 %v3610
    %v3612 = vpop.xlane.xlu0 %3611
    %v3613 = vsel %vm3405, %v3545, 0.0
    %3614 = vadd.xlane.f32.xlu0 %v3613
    %v3615 = vpop.xlane.xlu0 %3614
    %v3616 = vsel %vm3405, %v3547, 0.0
    %3617 = vadd.xlane.f32.xlu0 %v3616
    %v3618 = vpop.xlane.xlu0 %3617
    %v3619 = vsel %vm3405, %v3549, 0.0
    %3620 = vadd.xlane.f32.xlu0 %v3619
    %v3621 = vpop.xlane.xlu0 %3620
    %v3622 = vlog2.pop %v3552
    %v3623 = vmul.f32 %v3622, 0.6931472
    %v3624 = vlog2.pop %v3555
    %v3625 = vmul.f32 %v3624, 0.6931472
    %v3626 = vlog2.pop %v3558
    %v3627 = vmul.f32 %v3626, 0.6931472
    %v3628 = vlog2.pop %v3561
    %v3629 = vmul.f32 %v3628, 0.6931472
    %v3630 = vlog2.pop %v3564
    %v3631 = vmul.f32 %v3630, 0.6931472
    %v3632 = vlog2.pop %v3567
    %v3633 = vmul.f32 %v3632, 0.6931472
    %v3634 = vlog2.pop %v3570
    %v3635 = vmul.f32 %v3634, 0.6931472
    %v3636 = vlog2.pop %v3573
    %v3637 = vmul.f32 %v3636, 0.6931472
    %v3638 = vlog2.pop %v3576
    %v3639 = vmul.f32 %v3638, 0.6931472
    %v3640 = vlog2.pop %v3579
    %v3641 = vmul.f32 %v3640, 0.6931472
    %v3642 = vlog2.pop %v3582
    %v3643 = vmul.f32 %v3642, 0.6931472
    %v3644 = vlog2.pop %v3585
    %v3645 = vmul.f32 %v3644, 0.6931472
    %v3646 = vlog2.pop %v3588
    %v3647 = vmul.f32 %v3646, 0.6931472
    %v3648 = vlog2.pop %v3591
    %v3649 = vmul.f32 %v3648, 0.6931472
    %v3650 = vlog2.pop %v3594
    %v3651 = vmul.f32 %v3650, 0.6931472
    %v3652 = vlog2.pop %v3597
    %v3653 = vmul.f32 %v3652, 0.6931472
    %v3654 = vlog2.pop %v3600
    %v3655 = vmul.f32 %v3654, 0.6931472
    %v3656 = vlog2.pop %v3603
    %v3657 = vmul.f32 %v3656, 0.6931472
    %v3658 = vlog2.pop %v3606
    %v3659 = vmul.f32 %v3658, 0.6931472
    %v3660 = vlog2.pop %v3609
    %v3661 = vmul.f32 %v3660, 0.6931472
    %v3662 = vlog2.pop %v3612
    %v3663 = vmul.f32 %v3662, 0.6931472
    %v3664 = vlog2.pop %v3615
    %v3665 = vmul.f32 %v3664, 0.6931472
    %v3666 = vlog2.pop %v3618
    %v3667 = vmul.f32 %v3666, 0.6931472
    %v3668 = vlog2.pop %v3621
    %v3669 = vmul.f32 %v3668, 0.6931472
    %v3670 = vadd.f32 %v3623, %v3408
    %v3671 = vadd.f32 %v3625, %v3411
    %v3672 = vadd.f32 %v3627, %v3414
    %v3673 = vadd.f32 %v3629, %v3417
    %v3674 = vadd.f32 %v3631, %v3420
    %v3675 = vadd.f32 %v3633, %v3423
    %v3676 = vadd.f32 %v3635, %v3426
    %v3677 = vadd.f32 %v3637, %v3429
    %v3678 = vadd.f32 %v3639, %v3432
    %v3679 = vadd.f32 %v3641, %v3435
    %v3680 = vadd.f32 %v3643, %v3438
    %v3681 = vadd.f32 %v3645, %v3441
    %v3682 = vadd.f32 %v3647, %v3444
    %v3683 = vadd.f32 %v3649, %v3447
    %v3684 = vadd.f32 %v3651, %v3450
    %v3685 = vadd.f32 %v3653, %v3453
    %v3686 = vadd.f32 %v3655, %v3456
    %v3687 = vadd.f32 %v3657, %v3459
    %v3688 = vadd.f32 %v3659, %v3462
    %v3689 = vadd.f32 %v3661, %v3465
    %v3690 = vadd.f32 %v3663, %v3468
    %v3691 = vadd.f32 %v3665, %v3471
    %v3692 = vadd.f32 %v3667, %v3474
    %v3693 = vadd.f32 %v3669, %v3477
    %v3694 = vsub.f32 %v3381, %v3670
    %v3695 = vsub.f32 %v3382, %v3671
    %v3696 = vsub.f32 %v3383, %v3672
    %v3697 = vsub.f32 %v3384, %v3673
    %v3698 = vsub.f32 %v3385, %v3674
    %v3699 = vsub.f32 %v3386, %v3675
    %v3700 = vsub.f32 %v3387, %v3676
    %v3701 = vsub.f32 %v3388, %v3677
    %v3702 = vsub.f32 %v3389, %v3678
    %v3703 = vsub.f32 %v3390, %v3679
    %v3704 = vsub.f32 %v3391, %v3680
    %v3705 = vsub.f32 %v3392, %v3681
    %v3706 = vsub.f32 %v3393, %v3682
    %v3707 = vsub.f32 %v3394, %v3683
    %v3708 = vsub.f32 %v3395, %v3684
    %v3709 = vsub.f32 %v3396, %v3685
    %v3710 = vsub.f32 %v3397, %v3686
    %v3711 = vsub.f32 %v3398, %v3687
    %v3712 = vsub.f32 %v3399, %v3688
    %v3713 = vsub.f32 %v3400, %v3689
    %v3714 = vsub.f32 %v3401, %v3690
    %v3715 = vsub.f32 %v3402, %v3691
    %v3716 = vsub.f32 %v3403, %v3692
    %v3717 = vsub.f32 %v3404, %v3693
    %v3718 = vmul.f32 %v3694, %v103
    %v3719 = vmul.f32 %v3695, %v104
    %v3720 = vmul.f32 %v3696, %v105
    %v3721 = vmul.f32 %v3697, %v106
    %v3722 = vmul.f32 %v3698, %v107
    %v3723 = vmul.f32 %v3699, %v108
    %v3724 = vmul.f32 %v3700, %v109
    %v3725 = vmul.f32 %v3701, %v110
    %v3726 = vmul.f32 %v3702, %v111
    %v3727 = vmul.f32 %v3703, %v112
    %v3728 = vmul.f32 %v3704, %v113
    %v3729 = vmul.f32 %v3705, %v114
    %v3730 = vmul.f32 %v3706, %v115
    %v3731 = vmul.f32 %v3707, %v116
    %v3732 = vmul.f32 %v3708, %v117
    %v3733 = vmul.f32 %v3709, %v118
    %v3734 = vmul.f32 %v3710, %v119
    %v3735 = vmul.f32 %v3711, %v120
    %v3736 = vmul.f32 %v3712, %v121
    %v3737 = vmul.f32 %v3713, %v122
    %v3738 = vmul.f32 %v3714, %v123
    %v3739 = vmul.f32 %v3715, %v124
    %v3740 = vmul.f32 %v3716, %v125
    %v3741 = vmul.f32 %v3717, %v126
    %v3742 = vsel %vm3405, %v3718, 0.0
    %3743 = vadd.xlane.f32.xlu0 %v3742
    %v3744 = vpop.xlane.xlu0 %3743
    %v3745 = vsel %vm3405, %v3719, 0.0
    %3746 = vadd.xlane.f32.xlu0 %v3745
    %v3747 = vpop.xlane.xlu0 %3746
    %v3748 = vsel %vm3405, %v3720, 0.0
    %3749 = vadd.xlane.f32.xlu0 %v3748
    %v3750 = vpop.xlane.xlu0 %3749
    %v3751 = vsel %vm3405, %v3721, 0.0
    %3752 = vadd.xlane.f32.xlu0 %v3751
    %v3753 = vpop.xlane.xlu0 %3752
    %v3754 = vsel %vm3405, %v3722, 0.0
    %3755 = vadd.xlane.f32.xlu0 %v3754
    %v3756 = vpop.xlane.xlu0 %3755
    %v3757 = vsel %vm3405, %v3723, 0.0
    %3758 = vadd.xlane.f32.xlu0 %v3757
    %v3759 = vpop.xlane.xlu0 %3758
    %v3760 = vsel %vm3405, %v3724, 0.0
    %3761 = vadd.xlane.f32.xlu0 %v3760
    %v3762 = vpop.xlane.xlu0 %3761
    %v3763 = vsel %vm3405, %v3725, 0.0
    %3764 = vadd.xlane.f32.xlu0 %v3763
    %v3765 = vpop.xlane.xlu0 %3764
    %v3766 = vsel %vm3405, %v3726, 0.0
    %3767 = vadd.xlane.f32.xlu0 %v3766
    %v3768 = vpop.xlane.xlu0 %3767
    %v3769 = vsel %vm3405, %v3727, 0.0
    %3770 = vadd.xlane.f32.xlu0 %v3769
    %v3771 = vpop.xlane.xlu0 %3770
    %v3772 = vsel %vm3405, %v3728, 0.0
    %3773 = vadd.xlane.f32.xlu0 %v3772
    %v3774 = vpop.xlane.xlu0 %3773
    %v3775 = vsel %vm3405, %v3729, 0.0
    %3776 = vadd.xlane.f32.xlu0 %v3775
    %v3777 = vpop.xlane.xlu0 %3776
    %v3778 = vsel %vm3405, %v3730, 0.0
    %3779 = vadd.xlane.f32.xlu0 %v3778
    %v3780 = vpop.xlane.xlu0 %3779
    %v3781 = vsel %vm3405, %v3731, 0.0
    %3782 = vadd.xlane.f32.xlu0 %v3781
    %v3783 = vpop.xlane.xlu0 %3782
    %v3784 = vsel %vm3405, %v3732, 0.0
    %3785 = vadd.xlane.f32.xlu0 %v3784
    %v3786 = vpop.xlane.xlu0 %3785
    %v3787 = vsel %vm3405, %v3733, 0.0
    %3788 = vadd.xlane.f32.xlu0 %v3787
    %v3789 = vpop.xlane.xlu0 %3788
    %v3790 = vsel %vm3405, %v3734, 0.0
    %3791 = vadd.xlane.f32.xlu0 %v3790
    %v3792 = vpop.xlane.xlu0 %3791
    %v3793 = vsel %vm3405, %v3735, 0.0
    %3794 = vadd.xlane.f32.xlu0 %v3793
    %v3795 = vpop.xlane.xlu0 %3794
    %v3796 = vsel %vm3405, %v3736, 0.0
    %3797 = vadd.xlane.f32.xlu0 %v3796
    %v3798 = vpop.xlane.xlu0 %3797
    %v3799 = vsel %vm3405, %v3737, 0.0
    %3800 = vadd.xlane.f32.xlu0 %v3799
    %v3801 = vpop.xlane.xlu0 %3800
    %v3802 = vsel %vm3405, %v3738, 0.0
    %3803 = vadd.xlane.f32.xlu0 %v3802
    %v3804 = vpop.xlane.xlu0 %3803
    %v3805 = vsel %vm3405, %v3739, 0.0
    %3806 = vadd.xlane.f32.xlu0 %v3805
    %v3807 = vpop.xlane.xlu0 %3806
    %v3808 = vsel %vm3405, %v3740, 0.0
    %3809 = vadd.xlane.f32.xlu0 %v3808
    %v3810 = vpop.xlane.xlu0 %3809
    %v3811 = vsel %vm3405, %v3741, 0.0
    %3812 = vadd.xlane.f32.xlu0 %v3811
    %v3813 = vpop.xlane.xlu0 %3812
    %v3814 = vsub.f32 0.0, %v3744
    %v3815 = vsub.f32 0.0, %v3747
    %v3816 = vsub.f32 0.0, %v3750
    %v3817 = vsub.f32 0.0, %v3753
    %v3818 = vsub.f32 0.0, %v3756
    %v3819 = vsub.f32 0.0, %v3759
    %v3820 = vsub.f32 0.0, %v3762
    %v3821 = vsub.f32 0.0, %v3765
    %v3822 = vsub.f32 0.0, %v3768
    %v3823 = vsub.f32 0.0, %v3771
    %v3824 = vsub.f32 0.0, %v3774
    %v3825 = vsub.f32 0.0, %v3777
    %v3826 = vsub.f32 0.0, %v3780
    %v3827 = vsub.f32 0.0, %v3783
    %v3828 = vsub.f32 0.0, %v3786
    %v3829 = vsub.f32 0.0, %v3789
    %v3830 = vsub.f32 0.0, %v3792
    %v3831 = vsub.f32 0.0, %v3795
    %v3832 = vsub.f32 0.0, %v3798
    %v3833 = vsub.f32 0.0, %v3801
    %v3834 = vsub.f32 0.0, %v3804
    %v3835 = vsub.f32 0.0, %v3807
    %v3836 = vsub.f32 0.0, %v3810
    %v3837 = vsub.f32 0.0, %v3813
    %v3838 = vsel %vm2418, %v3814, 0.0
    %v3839 = vsel %vm2418, %v3815, 0.0
    %v3840 = vadd.f32 %v3838, %v3839
    %v3841 = vsel %vm2418, %v3816, 0.0
    %v3842 = vadd.f32 %v3840, %v3841
    %v3843 = vsel %vm2418, %v3817, 0.0
    %v3844 = vadd.f32 %v3842, %v3843
    %v3845 = vsel %vm2418, %v3818, 0.0
    %v3846 = vadd.f32 %v3844, %v3845
    %v3847 = vsel %vm2418, %v3819, 0.0
    %v3848 = vadd.f32 %v3846, %v3847
    %v3849 = vsel %vm2418, %v3820, 0.0
    %v3850 = vadd.f32 %v3848, %v3849
    %v3851 = vsel %vm2418, %v3821, 0.0
    %v3852 = vadd.f32 %v3850, %v3851
    %v3853 = vsel %vm2418, %v3822, 0.0
    %v3854 = vadd.f32 %v3852, %v3853
    %v3855 = vsel %vm2418, %v3823, 0.0
    %v3856 = vadd.f32 %v3854, %v3855
    %v3857 = vsel %vm2418, %v3824, 0.0
    %v3858 = vadd.f32 %v3856, %v3857
    %v3859 = vsel %vm2418, %v3825, 0.0
    %v3860 = vadd.f32 %v3858, %v3859
    %v3861 = vsel %vm2418, %v3826, 0.0
    %v3862 = vadd.f32 %v3860, %v3861
    %v3863 = vsel %vm2418, %v3827, 0.0
    %v3864 = vadd.f32 %v3862, %v3863
    %v3865 = vsel %vm2418, %v3828, 0.0
    %v3866 = vadd.f32 %v3864, %v3865
    %v3867 = vsel %vm2418, %v3829, 0.0
    %v3868 = vadd.f32 %v3866, %v3867
    %v3869 = vsel %vm2418, %v3830, 0.0
    %v3870 = vadd.f32 %v3868, %v3869
    %v3871 = vsel %vm2418, %v3831, 0.0
    %v3872 = vadd.f32 %v3870, %v3871
    %v3873 = vsel %vm2418, %v3832, 0.0
    %v3874 = vadd.f32 %v3872, %v3873
    %v3875 = vsel %vm2418, %v3833, 0.0
    %v3876 = vadd.f32 %v3874, %v3875
    %v3877 = vsel %vm2418, %v3834, 0.0
    %v3878 = vadd.f32 %v3876, %v3877
    %v3879 = vsel %vm2418, %v3835, 0.0
    %v3880 = vadd.f32 %v3878, %v3879
    %v3881 = vsel %vm2418, %v3836, 0.0
    %v3882 = vadd.f32 %v3880, %v3881
    %v3883 = vsel %vm2418, %v3837, 0.0
    %v3884 = vadd.f32 %v3882, %v3883
    %3885 = vadd.xlane.f32.xlu0 %v3884
    %v3886 = vpop.xlane.xlu0 %3885
    %v3887 = vrot.slane %v3886, 4
    %v3888 = vadd.f32 %v3886, %v3887
    %v3889 = vrot.slane %v3888, 2
    %v3890 = vadd.f32 %v3888, %v3889
    %v3891 = vrot.slane %v3890, 1
    %v3892 = vadd.f32 %v3890, %v3891
    %s3893 = vtos %v3892
    %v3894 = vrcp.pop 192.0
    %s3895 = vtos %v3894
    %s3896 = smul.f32 %s3893, %s3895
    %s3897 = sadd.f32 %s2439, %s2528
    %s3898 = sadd.f32 %s3896, %s3897
    %v3899 = vstv %s3898
    %vm3900 = vcmask 0
    %3901 = vst.msk [vmem:[#allocation2] sm:$0x1] %vm3900, %v3899
    // Predicated region
    $region66: #{sgcn_forward.1} parent=1 // pred_check
      _
    $region67: #{sgcn_forward.1} parent=1 // pred_check_branch
      %3903 = sbr.rel (0) target = $region69
    $region68: #{sgcn_forward.1} parent=1 // pred_region
      _
    $region69: #{sgcn_forward.1} parent=1 // pred_fallthru
      _
    // Predicated region
    $region70: #{sgcn_forward.1} parent=1 // pred_check
      _
    $region71: #{sgcn_forward.1} parent=1 // pred_check_branch
      %3905 = sbr.rel (0) target = $region73
    $region72: #{sgcn_forward.1} parent=1 // pred_region
      _
    $region73: #{sgcn_forward.1} parent=1 // pred_fallthru
      _
    // Predicated region
    $region74: #{sgcn_forward.1} parent=1 // pred_check
      _
    $region75: #{sgcn_forward.1} parent=1 // pred_check_branch
      %3907 = sbr.rel (0) target = $region77
    $region76: #{sgcn_forward.1} parent=1 // pred_region
      %s3909 = ssub.s32 16, 16
      %3910 = vsyncadd [#allocation3], %s3909
      %s3912 = sshll.u32 [#allocation2], 4
      %s3913 = int_to_ptr.vmem [resolvable:$true] %s3912
      %3915 = dma.vmem_to_hbm [thread:$0]  %s3913, 16, %s18, [#allocation3]
    $region77: #{sgcn_forward.1} parent=1 // pred_fallthru
      _
    // Predicated region
    $region78: #{sgcn_forward.1} parent=1 // pred_check
      _
    $region79: #{sgcn_forward.1} parent=1 // pred_check_branch
      %3917 = sbr.rel (0) target = $region81
    $region80: #{sgcn_forward.1} parent=1 // pred_region
      _
    $region81: #{sgcn_forward.1} parent=1 // pred_fallthru
      _
    // Predicated region
    $region82: #{sgcn_forward.1} parent=1 // pred_check
      _
    $region83: #{sgcn_forward.1} parent=1 // pred_check_branch
      %3919 = sbr.rel (0) target = $region85
    $region84: #{sgcn_forward.1} parent=1 // pred_region
      _
    $region85: #{sgcn_forward.1} parent=1 // pred_fallthru
      _
    // Predicated region
    $region86: #{sgcn_forward.1} parent=1 // pred_check
      _
    $region87: #{sgcn_forward.1} parent=1 // pred_check_branch
      %3921 = sbr.rel (0) target = $region89
    $region88: #{sgcn_forward.1} parent=1 // pred_region
      %3922 = dma.done [#allocation3], 16
    $region89: #{sgcn_forward.1} parent=1 // pred_fallthru
      _
    %3923 = vsyncpa [#allocation3], 1

</llo_original>
